<compile_context>
chip_gen: v5e
topology: v5e:2x2
jax: 0.10.0
libtpu: 0.0.40
codegen_flags: <defaults>
</compile_context>

<pallas_src>
import functools
import math

import numpy as np
import jax
import jax.numpy as jnp
from jax.experimental import pallas as pl
from jax.experimental.pallas import tpu as pltpu


def _round_up(v, m):
    return (v + m - 1) // m * m


# ----------------------------------------------------------------------------
# Fused tiled matmul:  y = [leaky]( (x @ w) * scale + shift [+ residual] )
# ----------------------------------------------------------------------------
def _mm_kernel(*refs, act, has_res, multi_k):
    if multi_k:
        if has_res:
            x_ref, w_ref, scale_ref, shift_ref, res_ref, o_ref, acc_ref = refs
        else:
            x_ref, w_ref, scale_ref, shift_ref, o_ref, acc_ref = refs
            res_ref = None

        k = pl.program_id(1)

        @pl.when(k == 0)
        def _init():
            acc_ref[...] = jnp.zeros_like(acc_ref)

        acc_ref[...] += jnp.dot(x_ref[...], w_ref[...],
                                preferred_element_type=jnp.float32)

        @pl.when(k == pl.num_programs(1) - 1)
        def _epilogue():
            y = acc_ref[...] * scale_ref[...] + shift_ref[...]
            if res_ref is not None:
                y = y + res_ref[...].astype(jnp.float32)
            if act:
                y = jnp.where(y >= 0, y, 0.1 * y)
            o_ref[...] = y.astype(o_ref.dtype)
    else:
        # Single K block: no scratch accumulator, no phases.
        if has_res:
            x_ref, w_ref, scale_ref, shift_ref, res_ref, o_ref = refs
        else:
            x_ref, w_ref, scale_ref, shift_ref, o_ref = refs
            res_ref = None
        y = jnp.dot(x_ref[...], w_ref[...], preferred_element_type=jnp.float32)
        y = y * scale_ref[...] + shift_ref[...]
        if res_ref is not None:
            y = y + res_ref[...].astype(jnp.float32)
        if act:
            y = jnp.where(y >= 0, y, 0.1 * y)
        o_ref[...] = y.astype(o_ref.dtype)


def fused_matmul(x, w, scale, shift, *, residual=None, act=False,
                 out_dtype=jnp.bfloat16):
    """x:(R,K) @ w:(K,N) + per-channel affine (+residual, +LeakyReLU(0.1))."""
    R, K = x.shape
    K2, N = w.shape
    assert K == K2

    # K tiling (only when K is large and 128-aligned).
    if K % 128 == 0 and K > 512:
        tk = 512 if K % 512 == 0 else (256 if K % 256 == 0 else 128)
    else:
        tk = K                       # full-K block (allowed: equals array dim)
    nk = K // tk
    multi_k = nk > 1

    # Row tiling (pad rows to the tile; slice back afterwards).
    tm = min(256, _round_up(R, 8))
    Rp = _round_up(R, tm)

    mm_dtype = jnp.bfloat16 if K >= 8 else jnp.float32   # bf16 MXU path
    xb = x.astype(mm_dtype)
    wb = w.astype(mm_dtype)
    if Rp != R:
        xb = jnp.pad(xb, ((0, Rp - R), (0, 0)))
    scale2 = scale.reshape(1, N).astype(jnp.float32)
    shift2 = shift.reshape(1, N).astype(jnp.float32)

    has_res = residual is not None
    if has_res:
        rb = residual.astype(jnp.bfloat16)
        if Rp != R:
            rb = jnp.pad(rb, ((0, Rp - R), (0, 0)))

    if multi_k:
        grid = (Rp // tm, nk)
        in_specs = [
            pl.BlockSpec((tm, tk), lambda i, k: (i, k)),
            pl.BlockSpec((tk, N), lambda i, k: (k, 0)),
            pl.BlockSpec((1, N), lambda i, k: (0, 0)),
            pl.BlockSpec((1, N), lambda i, k: (0, 0)),
        ]
        res_spec = pl.BlockSpec((tm, N), lambda i, k: (i, 0))
        out_spec = pl.BlockSpec((tm, N), lambda i, k: (i, 0))
        scratch = [pltpu.VMEM((tm, N), jnp.float32)]
        dims = ("parallel", "arbitrary")
    else:
        grid = (Rp // tm,)
        in_specs = [
            pl.BlockSpec((tm, K), lambda i: (i, 0)),
            pl.BlockSpec((K, N), lambda i: (0, 0)),
            pl.BlockSpec((1, N), lambda i: (0, 0)),
            pl.BlockSpec((1, N), lambda i: (0, 0)),
        ]
        res_spec = pl.BlockSpec((tm, N), lambda i: (i, 0))
        out_spec = pl.BlockSpec((tm, N), lambda i: (i, 0))
        scratch = []
        dims = ("parallel",)

    args = [xb, wb, scale2, shift2]
    if has_res:
        in_specs.append(res_spec)
        args.append(rb)

    out = pl.pallas_call(
        functools.partial(_mm_kernel, act=act, has_res=has_res,
                          multi_k=multi_k),
        out_shape=jax.ShapeDtypeStruct((Rp, N), out_dtype),
        grid=grid,
        in_specs=in_specs,
        out_specs=out_spec,
        scratch_shapes=scratch,
        compiler_params=pltpu.CompilerParams(dimension_semantics=dims),
    )(*args)

    if Rp != R:
        out = out[:R]
    return out


# ----------------------------------------------------------------------------
# Tap conv: out[b, r] = leaky( sum_j x[b, r + j*stride] @ w[j] * scale + shift
#                              + res[b, r] )
# Handles both the (1, ks) conv along V (stride=1 on (T, Vp)-flattened rows,
# padded-V garbage rows sliced off in the wrapper) and the (kt, 1) conv along T
# (stride=V on (Tp, V)-flattened rows, exact).  Taps accumulate in-kernel — no
# HBM im2col.
# ----------------------------------------------------------------------------
def _tap_conv_kernel(x_ref, w_ref, scale_ref, shift_ref, res_ref, o_ref, *,
                     taps, stride, rows):
    acc = jnp.dot(x_ref[0, pl.ds(0, rows), :], w_ref[0],
                  preferred_element_type=jnp.float32)
    for j in range(1, taps):                      # static, small (ks/kt)
        acc = acc + jnp.dot(x_ref[0, pl.ds(j * stride, rows), :], w_ref[j],
                            preferred_element_type=jnp.float32)
    y = acc * scale_ref[...] + shift_ref[...] + res_ref[0].astype(jnp.float32)
    o_ref[0] = jnp.where(y >= 0, y, 0.1 * y).astype(o_ref.dtype)


def tap_conv(x_rows, w_taps, scale, shift, res_rows, *, stride, rows,
             out_dtype=jnp.bfloat16):
    """x_rows:(NM,Rin,Cin) padded flattened rows, w_taps:(taps,Cin,Cout)."""
    NM, Rin, Cin = x_rows.shape
    taps, Cin2, Cout = w_taps.shape
    assert Cin == Cin2
    assert Rin >= rows + (taps - 1) * stride

    return pl.pallas_call(
        functools.partial(_tap_conv_kernel, taps=taps, stride=stride,
                          rows=rows),
        out_shape=jax.ShapeDtypeStruct((NM, rows, Cout), out_dtype),
        grid=(NM,),
        in_specs=[
            pl.BlockSpec((1, Rin, Cin), lambda b: (b, 0, 0)),
            pl.BlockSpec((taps, Cin, Cout), lambda b: (0, 0, 0)),
            pl.BlockSpec((1, Cout), lambda b: (0, 0)),
            pl.BlockSpec((1, Cout), lambda b: (0, 0)),
            pl.BlockSpec((1, rows, Cout), lambda b: (b, 0, 0)),
        ],
        out_specs=pl.BlockSpec((1, rows, Cout), lambda b: (b, 0, 0)),
        compiler_params=pltpu.CompilerParams(
            dimension_semantics=("parallel",)),
    )(x_rows.astype(jnp.bfloat16), w_taps.astype(jnp.bfloat16),
      scale.reshape(1, Cout).astype(jnp.float32),
      shift.reshape(1, Cout).astype(jnp.float32),
      res_rows.astype(jnp.bfloat16))


# ----------------------------------------------------------------------------
# Fused attention kernel: scores (tanh / alpha / att0) + apply, per sample.
# ----------------------------------------------------------------------------
def _sta_attention_kernel(q_ref, k_ref, alpha_ref, att0t_ref, x_ref, o_ref, *,
                          inv_scale, num_heads):
    q = q_ref[0]                       # (H, V, D)  bf16, D = T*qkv
    k = k_ref[0]                       # (H, V, D)
    # Transposed scores: sT[h, v, u] = sum_d k[h,v,d] * q[h,u,d]  (f32 accum)
    sT = jax.lax.dot_general(k, q, (((2,), (2,)), ((0,), (0,))),
                             preferred_element_type=jnp.float32)   # (H, V, V)
    attT = jnp.tanh(sT * inv_scale) * alpha_ref[...] + att0t_ref[...]
    attT = attT.astype(x_ref.dtype)

    x = x_ref[0]                       # (T, V, C)  bf16
    T, V, _ = x.shape
    outs = []
    for h in range(num_heads):         # static, small
        ab = jnp.broadcast_to(attT[h][None], (T, V, V))            # (T, v, u)
        # out[t, v, c] = sum_u att[h, u, v] * x[t, u, c]
        o = jax.lax.dot_general(ab, x, (((2,), (1,)), ((0,), (0,))),
                                preferred_element_type=jnp.float32)  # (T,V,C)
        outs.append(o.astype(o_ref.dtype))
    o_ref[0] = jnp.concatenate(outs, axis=-1)   # (T, V, H*C), head-major chans


def sta_attention(qk_cl, x_cl, alphas, att0T, num_heads, qkv_dim):
    """qk_cl:(NM,T,V,2H*qkv), x_cl:(NM,T,V,C) -> (NM,T,V,H*C) channels-last."""
    NM, T, V, C = x_cl.shape
    H = num_heads
    D = T * qkv_dim
    qk = qk_cl.reshape(NM, T, V, 2 * H, qkv_dim)
    qk = qk.transpose(0, 3, 2, 1, 4).reshape(NM, 2 * H, V, D)   # small reorg
    q = qk[:, :H].astype(jnp.bfloat16)
    k = qk[:, H:].astype(jnp.bfloat16)
    inv_scale = 1.0 / float(qkv_dim * T)

    return pl.pallas_call(
        functools.partial(_sta_attention_kernel, inv_scale=inv_scale,
                          num_heads=H),
        out_shape=jax.ShapeDtypeStruct((NM, T, V, H * C), jnp.bfloat16),
        grid=(NM,),
        in_specs=[
            pl.BlockSpec((1, H, V, D), lambda b: (b, 0, 0, 0)),
            pl.BlockSpec((1, H, V, D), lambda b: (b, 0, 0, 0)),
            pl.BlockSpec((H, 1, 1), lambda b: (0, 0, 0)),
            pl.BlockSpec((H, V, V), lambda b: (0, 0, 0)),
            pl.BlockSpec((1, T, V, C), lambda b: (b, 0, 0, 0)),
        ],
        out_specs=pl.BlockSpec((1, T, V, H * C), lambda b: (b, 0, 0, 0)),
        compiler_params=pltpu.CompilerParams(dimension_semantics=("parallel",)),
    )(q, k, alphas.astype(jnp.float32), att0T.astype(jnp.float32),
      x_cl.astype(jnp.bfloat16))


# ----------------------------------------------------------------------------
# Parameters (eval-mode BN folded into per-channel scale/shift)
# ----------------------------------------------------------------------------
_BN_EPS = 1e-5
_BN_SCALE = 1.0 / math.sqrt(1.0 + _BN_EPS)   # rm=0, rv=1, gamma=1, beta=0


def _kaiming_out(key, cout, cin, kh, kw):
    fan_out = cout * kh * kw
    std = math.sqrt(2.0 / fan_out)
    return jax.random.normal(key, (cout, cin, kh, kw), jnp.float32) * std


def pos_embed_cl(channels, num_frames, num_joints):
    """Pos_Embed buffer in channels-last layout: (1, T, V, C)."""
    pos = np.tile(np.arange(num_joints), num_frames).astype(np.float32)[:, None]
    pe = np.zeros((num_frames * num_joints, channels), dtype=np.float32)
    div_term = np.exp(np.arange(0, channels, 2, dtype=np.float32)
                      * -(math.log(10000.0) / channels))
    pe[:, 0::2] = np.sin(pos * div_term)
    pe[:, 1::2] = np.cos(pos * div_term)
    return jnp.asarray(pe.reshape(num_frames, num_joints, channels)[None])


def make_params(key, num_channels, config, num_heads, kernel_size, t_blk, v_blk):
    keys = iter(jax.random.split(key, 256))
    H = num_heads
    kt, ks = kernel_size

    def conv_bn(cout, cin, kh, kw):
        w = _kaiming_out(next(keys), cout, cin, kh, kw)
        b = jax.random.normal(next(keys), (cout,), jnp.float32) * 0.01
        scale = jnp.full((cout,), _BN_SCALE, jnp.float32)
        shift = b * _BN_SCALE
        return w, scale, shift

    params = {}
    c0 = config[0][0]
    w, s, sh = conv_bn(c0, num_channels, 1, 1)
    params['input_w'] = w.reshape(c0, num_channels).T.astype(jnp.bfloat16)
    params['input_scale'], params['input_shift'] = s, sh

    blocks = []
    for (cin, cout, qkv) in config:
        p = {}
        p['pe'] = pos_embed_cl(cin, t_blk, v_blk)
        # to_qkvs: Conv2d(cin, 2*H*qkv, 1) with bias, no BN.
        wq = _kaiming_out(next(keys), 2 * H * qkv, cin, 1, 1)
        bq = jax.random.normal(next(keys), (2 * H * qkv,), jnp.float32) * 0.01
        p['qkv_w'] = wq.reshape(2 * H * qkv, cin).T.astype(jnp.bfloat16)
        p['qkv_scale'] = jnp.ones((2 * H * qkv,), jnp.float32)
        p['qkv_shift'] = bq
        p['alphas'] = jnp.ones((H, 1, 1), jnp.float32)
        att0 = jnp.ones((H, v_blk, v_blk), jnp.float32) / v_blk
        p['att0T'] = jnp.transpose(att0, (0, 2, 1))   # stored transposed [h,v,u]
        # out_nets: Conv2d(cin*H, cout, (1, ks)) + BN  -> taps (ks, H*cin, cout)
        w, s, sh = conv_bn(cout, cin * H, 1, ks)
        p['outnets_w'] = jnp.transpose(w[:, :, 0, :], (2, 1, 0)).astype(jnp.bfloat16)
        p['outnets_scale'], p['outnets_shift'] = s, sh
        # ff_net: Conv2d(cout, cout, 1) + BN
        w, s, sh = conv_bn(cout, cout, 1, 1)
        p['ff_w'] = w.reshape(cout, cout).T.astype(jnp.bfloat16)
        p['ff_scale'], p['ff_shift'] = s, sh
        # out_nett: Conv2d(cout, cout, (kt, 1)) + BN  -> taps (kt, cout, cout)
        w, s, sh = conv_bn(cout, cout, kt, 1)
        p['outnett_w'] = jnp.transpose(w[:, :, :, 0], (2, 1, 0)).astype(jnp.bfloat16)
        p['outnett_scale'], p['outnett_shift'] = s, sh
        if cin != cout:
            w, s, sh = conv_bn(cout, cin, 1, 1)
            p['ress_w'] = w.reshape(cout, cin).T.astype(jnp.bfloat16)
            p['ress_scale'], p['ress_shift'] = s, sh
            w, s, sh = conv_bn(cout, cout, 1, 1)
            p['rest_w'] = w.reshape(cout, cout).T.astype(jnp.bfloat16)
            p['rest_scale'], p['rest_shift'] = s, sh
        blocks.append(p)
    params['blocks'] = blocks
    return params


# ----------------------------------------------------------------------------
# Model forward (channels-last activations)
# ----------------------------------------------------------------------------
def sta_block(x_cl, p, num_heads):
    NM, T, V, Cin = x_cl.shape
    H = num_heads
    qkv = p['qkv_w'].shape[1] // (2 * H)
    Cout = p['ff_w'].shape[1]
    ks = p['outnets_w'].shape[0]
    kt = p['outnett_w'].shape[0]
    R = NM * T * V

    # --- Spatio-Temporal Tuples Attention ---
    xs = x_cl + p['pe']                                              # pes(x) + x
    qk = fused_matmul(xs.reshape(R, Cin), p['qkv_w'],
                      p['qkv_scale'], p['qkv_shift'], act=False)
    qk_cl = qk.reshape(NM, T, V, 2 * H * qkv)

    xs_att = sta_attention(qk_cl, x_cl, p['alphas'], p['att0T'], H, qkv)
    # xs_att: (NM,T,V,H*Cin), head-major channels (matches torch view(N,H*C,T,V))

    if 'ress_w' in p:
        x_ress = fused_matmul(x_cl.reshape(R, Cin), p['ress_w'],
                              p['ress_scale'], p['ress_shift'], act=False)
    else:
        x_ress = x_cl.reshape(R, Cin)
    x_ress_cl = x_ress.reshape(NM, T, V, Cout)

    # out_nets: (1, ks) conv along V — taps accumulated in-kernel (row-shift
    # trick over (T, Vp)-flattened rows; padded-V rows sliced off afterwards).
    pads = (ks - 1) // 2
    Vp = V + 2 * pads
    rows_v = T * Vp
    xp = jnp.pad(xs_att, ((0, 0), (0, 1), (pads, pads), (0, 0)))  # +1 t-row tail
    x_rows = xp.reshape(NM, (T + 1) * Vp, H * Cin)
    res_p = jnp.pad(x_ress_cl, ((0, 0), (0, 0), (0, Vp - V), (0, 0)))
    res_rows = res_p.reshape(NM, rows_v, Cout)
    y_rows = tap_conv(x_rows, p['outnets_w'], p['outnets_scale'],
                      p['outnets_shift'], res_rows, stride=1, rows=rows_v)
    xs3_cl = y_rows.reshape(NM, T, Vp, Cout)[:, :, :V, :]

    # ff_net 1x1 + same residual + LeakyReLU.
    xs4 = fused_matmul(xs3_cl.reshape(R, Cout), p['ff_w'], p['ff_scale'],
                       p['ff_shift'], residual=x_ress, act=True)
    xs4_cl = xs4.reshape(NM, T, V, Cout)

    # --- Inter-Frame Feature Aggregation ---
    if 'rest_w' in p:
        x_rest = fused_matmul(xs4, p['rest_w'], p['rest_scale'],
                              p['rest_shift'], act=False)
    else:
        x_rest = xs4
    x_rest_rows = x_rest.reshape(NM, T * V, Cout)

    # out_nett: (kt, 1) conv along T — exact row-shift (stride = V), in-kernel.
    padt = (kt - 1) // 2
    xpt = jnp.pad(xs4_cl, ((0, 0), (padt, padt), (0, 0), (0, 0)))
    xt_rows = xpt.reshape(NM, (T + 2 * padt) * V, Cout)
    xt = tap_conv(xt_rows, p['outnett_w'], p['outnett_scale'],
                  p['outnett_shift'], x_rest_rows, stride=V, rows=T * V)
    return xt.reshape(NM, T, V, Cout)


def sttformer_forward(x, params, len_parts, out_channels, num_heads):
    N, M, T, V, C = x.shape
    T2, V2 = T // len_parts, V * len_parts
    # torch: permute(0,1,4,2,3).view(NM,C,T,V).view(NM,C,T2,V2)
    # channels-last equivalent (spatial flat index preserved) -> pure reshape:
    x_cl = x.reshape(N * M, T2, V2, C)
    R = N * M * T2 * V2

    c0 = params['input_w'].shape[1]
    h = fused_matmul(x_cl.reshape(R, C), params['input_w'],
                     params['input_scale'], params['input_shift'], act=True)
    x_cl = h.reshape(N * M, T2, V2, c0)

    for blk in params['blocks']:
        x_cl = sta_block(x_cl, blk, num_heads)

    # Back to NCHW for the torch-style raw .view reinterpretation.
    x_nchw = x_cl.transpose(0, 3, 1, 2).astype(jnp.float32)
    out = x_nchw.reshape(N, M, -1, out_channels)
    # drop_out / drop_out2d with p=0 -> identity
    return out


# ----------------------------------------------------------------------------
if __name__ == "__main__":
    key = jax.random.PRNGKey(0)
    # Small shapes consistent with the module's forward:
    N, M, T, V, C = 2, 1, 8, 4, 3
    len_parts = 2
    num_heads = 2
    kernel_size = (3, 3)
    config = [[16, 16, 8], [16, 32, 8]]
    t_blk = T // len_parts          # 4
    v_blk = V * len_parts           # 8
    out_channels = config[-1][1]    # 32

    kp, kx = jax.random.split(key)
    params = make_params(kp, C, config, num_heads, kernel_size, t_blk, v_blk)
    x = jax.random.normal(kx, (N, M, T, V, C), jnp.float32)

    fwd = jax.jit(functools.partial(sttformer_forward, len_parts=len_parts,
                                    out_channels=out_channels,
                                    num_heads=num_heads))
    out = fwd(x, params)
    out = jax.block_until_ready(out)
    assert out.shape == (N, M, t_blk * v_blk, out_channels), out.shape
    assert jnp.all(jnp.isfinite(out))
    print("KERNEL_OK")
</pallas_src>

<mosaic_0001>
module attributes {stable_mosaic.version = 11 : i64} {
  func.func @_mm_kernel(%arg0: i32, %arg1: memref<64x3xf32, #tpu.memory_space<vmem>>, %arg2: memref<3x16xf32, #tpu.memory_space<vmem>>, %arg3: memref<1x16xf32, #tpu.memory_space<vmem>>, %arg4: memref<1x16xf32, #tpu.memory_space<vmem>>, %arg5: memref<64x16xbf16, #tpu.memory_space<vmem>>) attributes {dimension_semantics = [#tpu.dimension_semantics<parallel>], iteration_bounds = array<i64: 1>, scalar_prefetch = 0 : i64, scratch_operands = 0 : i64, tpu.core_type = #tpu.core_type<tc>, window_params = [{transform_indices = @transform_0, window_bounds = array<i64: 64, 3>}, {pipeline_mode = #tpu.pipeline_mode<synchronous>, transform_indices = @transform_1, window_bounds = array<i64: 3, 16>}, {pipeline_mode = #tpu.pipeline_mode<synchronous>, transform_indices = @transform_2, window_bounds = array<i64: 1, 16>}, {pipeline_mode = #tpu.pipeline_mode<synchronous>, transform_indices = @transform_3, window_bounds = array<i64: 1, 16>}, {transform_indices = @transform_4, window_bounds = array<i64: 64, 16>}]} {
    %c0 = arith.constant 0 : index
    %c0_0 = arith.constant 0 : index
    %0 = vector.load %arg1[%c0, %c0_0] : memref<64x3xf32, #tpu.memory_space<vmem>>, vector<64x3xf32>
    %c0_1 = arith.constant 0 : index
    %c0_2 = arith.constant 0 : index
    %1 = vector.load %arg2[%c0_1, %c0_2] : memref<3x16xf32, #tpu.memory_space<vmem>>, vector<3x16xf32>
    %cst = arith.constant dense<0.000000e+00> : vector<64x16xf32>
    %2 = tpu.matmul %0, %1, %cst {dimension_numbers = #tpu.dot_dimension_numbers<[1], [0], [0], [1], [0, 0, 1, 1], [], []>} : vector<64x3xf32>, vector<3x16xf32>, vector<64x16xf32> -> vector<64x16xf32>
    %c0_3 = arith.constant 0 : index
    %c0_4 = arith.constant 0 : index
    %3 = vector.load %arg3[%c0_3, %c0_4] : memref<1x16xf32, #tpu.memory_space<vmem>>, vector<1x16xf32>
    %4 = vector.broadcast %3 : vector<1x16xf32> to vector<64x16xf32>
    %5 = arith.mulf %2, %4 : vector<64x16xf32>
    %c0_5 = arith.constant 0 : index
    %c0_6 = arith.constant 0 : index
    %6 = vector.load %arg4[%c0_5, %c0_6] : memref<1x16xf32, #tpu.memory_space<vmem>>, vector<1x16xf32>
    %7 = vector.broadcast %6 : vector<1x16xf32> to vector<64x16xf32>
    %8 = arith.addf %5, %7 : vector<64x16xf32>
    %cst_7 = arith.constant 0.000000e+00 : f32
    %9 = vector.broadcast %cst_7 : f32 to vector<64x16xf32>
    %10 = arith.cmpf oge, %8, %9 : vector<64x16xf32>
    %cst_8 = arith.constant 1.000000e-01 : f32
    %11 = vector.broadcast %cst_8 : f32 to vector<64x16xf32>
    %12 = arith.mulf %11, %8 : vector<64x16xf32>
    %13 = arith.select %10, %8, %12 : vector<64x16xi1>, vector<64x16xf32>
    %14 = arith.truncf %13 : vector<64x16xf32> to vector<64x16xbf16>
    %c0_9 = arith.constant 0 : index
    %c0_10 = arith.constant 0 : index
    %15 = vector.load %arg5[%c0_9, %c0_10] : memref<64x16xbf16, #tpu.memory_space<vmem>>, vector<64x16xbf16>
    tpu.vector_store %arg5[%c0_9, %c0_10], %14 {strides = array<i32>} : memref<64x16xbf16, #tpu.memory_space<vmem>>, vector<64x16xbf16>,
    return
  }
  func.func @transform_0(%arg0: i32) -> (i32, i32) {
    %c0_i32 = arith.constant 0 : i32
    %c0_i32_0 = arith.constant 0 : i32
    return %arg0, %c0_i32 : i32, i32
  }
  func.func @transform_1(%arg0: i32) -> (i32, i32) {
    %c0_i32 = arith.constant 0 : i32
    %c0_i32_0 = arith.constant 0 : i32
    %c0_i32_1 = arith.constant 0 : i32
    return %c0_i32, %c0_i32_0 : i32, i32
  }
  func.func @transform_2(%arg0: i32) -> (i32, i32) {
    %c0_i32 = arith.constant 0 : i32
    %c0_i32_0 = arith.constant 0 : i32
    %c0_i32_1 = arith.constant 0 : i32
    return %c0_i32, %c0_i32_0 : i32, i32
  }
  func.func @transform_3(%arg0: i32) -> (i32, i32) {
    %c0_i32 = arith.constant 0 : i32
    %c0_i32_0 = arith.constant 0 : i32
    %c0_i32_1 = arith.constant 0 : i32
    return %c0_i32, %c0_i32_0 : i32, i32
  }
  func.func @transform_4(%arg0: i32) -> (i32, i32) {
    %c0_i32 = arith.constant 0 : i32
    %c0_i32_0 = arith.constant 0 : i32
    return %arg0, %c0_i32 : i32, i32
  }
}

module attributes {stable_mosaic.version = 11 : i64} {
  func.func @_mm_kernel(%arg0: i32, %arg1: memref<64x16xbf16, #tpu.memory_space<vmem>>, %arg2: memref<16x32xbf16, #tpu.memory_space<vmem>>, %arg3: memref<1x32xf32, #tpu.memory_space<vmem>>, %arg4: memref<1x32xf32, #tpu.memory_space<vmem>>, %arg5: memref<64x32xbf16, #tpu.memory_space<vmem>>) attributes {dimension_semantics = [#tpu.dimension_semantics<parallel>], iteration_bounds = array<i64: 1>, scalar_prefetch = 0 : i64, scratch_operands = 0 : i64, tpu.core_type = #tpu.core_type<tc>, window_params = [{transform_indices = @transform_0, window_bounds = array<i64: 64, 16>}, {pipeline_mode = #tpu.pipeline_mode<synchronous>, transform_indices = @transform_1, window_bounds = array<i64: 16, 32>}, {pipeline_mode = #tpu.pipeline_mode<synchronous>, transform_indices = @transform_2, window_bounds = array<i64: 1, 32>}, {pipeline_mode = #tpu.pipeline_mode<synchronous>, transform_indices = @transform_3, window_bounds = array<i64: 1, 32>}, {transform_indices = @transform_4, window_bounds = array<i64: 64, 32>}]} {
    %c0 = arith.constant 0 : index
    %c0_0 = arith.constant 0 : index
    %0 = vector.load %arg1[%c0, %c0_0] : memref<64x16xbf16, #tpu.memory_space<vmem>>, vector<64x16xbf16>
    %c0_1 = arith.constant 0 : index
    %c0_2 = arith.constant 0 : index
    %1 = vector.load %arg2[%c0_1, %c0_2] : memref<16x32xbf16, #tpu.memory_space<vmem>>, vector<16x32xbf16>
    %cst = arith.constant dense<0.000000e+00> : vector<64x32xf32>
    %2 = tpu.matmul %0, %1, %cst {dimension_numbers = #tpu.dot_dimension_numbers<[1], [0], [0], [1], [0, 0, 1, 1], [], []>} : vector<64x16xbf16>, vector<16x32xbf16>, vector<64x32xf32> -> vector<64x32xf32>
    %c0_3 = arith.constant 0 : index
    %c0_4 = arith.constant 0 : index
    %3 = vector.load %arg3[%c0_3, %c0_4] : memref<1x32xf32, #tpu.memory_space<vmem>>, vector<1x32xf32>
    %4 = vector.broadcast %3 : vector<1x32xf32> to vector<64x32xf32>
    %5 = arith.mulf %2, %4 : vector<64x32xf32>
    %c0_5 = arith.constant 0 : index
    %c0_6 = arith.constant 0 : index
    %6 = vector.load %arg4[%c0_5, %c0_6] : memref<1x32xf32, #tpu.memory_space<vmem>>, vector<1x32xf32>
    %7 = vector.broadcast %6 : vector<1x32xf32> to vector<64x32xf32>
    %8 = arith.addf %5, %7 : vector<64x32xf32>
    %9 = arith.truncf %8 : vector<64x32xf32> to vector<64x32xbf16>
    %c0_7 = arith.constant 0 : index
    %c0_8 = arith.constant 0 : index
    %10 = vector.load %arg5[%c0_7, %c0_8] : memref<64x32xbf16, #tpu.memory_space<vmem>>, vector<64x32xbf16>
    tpu.vector_store %arg5[%c0_7, %c0_8], %9 {strides = array<i32>} : memref<64x32xbf16, #tpu.memory_space<vmem>>, vector<64x32xbf16>,
    return
  }
  func.func @transform_0(%arg0: i32) -> (i32, i32) {
    %c0_i32 = arith.constant 0 : i32
    %c0_i32_0 = arith.constant 0 : i32
    return %arg0, %c0_i32 : i32, i32
  }
  func.func @transform_1(%arg0: i32) -> (i32, i32) {
    %c0_i32 = arith.constant 0 : i32
    %c0_i32_0 = arith.constant 0 : i32
    %c0_i32_1 = arith.constant 0 : i32
    return %c0_i32, %c0_i32_0 : i32, i32
  }
  func.func @transform_2(%arg0: i32) -> (i32, i32) {
    %c0_i32 = arith.constant 0 : i32
    %c0_i32_0 = arith.constant 0 : i32
    %c0_i32_1 = arith.constant 0 : i32
    return %c0_i32, %c0_i32_0 : i32, i32
  }
  func.func @transform_3(%arg0: i32) -> (i32, i32) {
    %c0_i32 = arith.constant 0 : i32
    %c0_i32_0 = arith.constant 0 : i32
    %c0_i32_1 = arith.constant 0 : i32
    return %c0_i32, %c0_i32_0 : i32, i32
  }
  func.func @transform_4(%arg0: i32) -> (i32, i32) {
    %c0_i32 = arith.constant 0 : i32
    %c0_i32_0 = arith.constant 0 : i32
    return %arg0, %c0_i32 : i32, i32
  }
}

module attributes {stable_mosaic.version = 11 : i64} {
  func.func @_sta_attention_kernel(%arg0: i32, %arg1: memref<1x2x8x32xbf16, #tpu.memory_space<vmem>>, %arg2: memref<1x2x8x32xbf16, #tpu.memory_space<vmem>>, %arg3: memref<2x1x1xf32, #tpu.memory_space<vmem>>, %arg4: memref<2x8x8xf32, #tpu.memory_space<vmem>>, %arg5: memref<1x4x8x16xbf16, #tpu.memory_space<vmem>>, %arg6: memref<1x4x8x32xbf16, #tpu.memory_space<vmem>>) attributes {dimension_semantics = [#tpu.dimension_semantics<parallel>], iteration_bounds = array<i64: 2>, scalar_prefetch = 0 : i64, scratch_operands = 0 : i64, tpu.core_type = #tpu.core_type<tc>, window_params = [{transform_indices = @transform_0, window_bounds = array<i64: 1, 2, 8, 32>}, {transform_indices = @transform_1, window_bounds = array<i64: 1, 2, 8, 32>}, {pipeline_mode = #tpu.pipeline_mode<synchronous>, transform_indices = @transform_2, window_bounds = array<i64: 2, 1, 1>}, {pipeline_mode = #tpu.pipeline_mode<synchronous>, transform_indices = @transform_3, window_bounds = array<i64: 2, 8, 8>}, {transform_indices = @transform_4, window_bounds = array<i64: 1, 4, 8, 16>}, {transform_indices = @transform_5, window_bounds = array<i64: 1, 4, 8, 32>}]} {
    %c0 = arith.constant 0 : index
    %c0_0 = arith.constant 0 : index
    %c0_1 = arith.constant 0 : index
    %c0_2 = arith.constant 0 : index
    %0 = vector.load %arg1[%c0, %c0_0, %c0_1, %c0_2] : memref<1x2x8x32xbf16, #tpu.memory_space<vmem>>, vector<1x2x8x32xbf16>
    %1 = vector.shape_cast %0 : vector<1x2x8x32xbf16> to vector<2x8x32xbf16>
    %c0_3 = arith.constant 0 : index
    %c0_4 = arith.constant 0 : index
    %c0_5 = arith.constant 0 : index
    %c0_6 = arith.constant 0 : index
    %2 = vector.load %arg2[%c0_3, %c0_4, %c0_5, %c0_6] : memref<1x2x8x32xbf16, #tpu.memory_space<vmem>>, vector<1x2x8x32xbf16>
    %3 = vector.shape_cast %2 : vector<1x2x8x32xbf16> to vector<2x8x32xbf16>
    %cst = arith.constant dense<0.000000e+00> : vector<2x8x8xf32>
    %4 = tpu.matmul %3, %1, %cst {dimension_numbers = #tpu.dot_dimension_numbers<[2], [2], [1], [1], [0, 0, 0, 1, 1, 1], [0], [0]>} : vector<2x8x32xbf16>, vector<2x8x32xbf16>, vector<2x8x8xf32> -> vector<2x8x8xf32>
    %cst_7 = arith.constant 3.125000e-02 : f32
    %5 = vector.broadcast %cst_7 : f32 to vector<2x8x8xf32>
    %6 = arith.mulf %4, %5 : vector<2x8x8xf32>
    %7 = math.tanh %6 : vector<2x8x8xf32>
    %c0_8 = arith.constant 0 : index
    %c0_9 = arith.constant 0 : index
    %c0_10 = arith.constant 0 : index
    %8 = vector.load %arg3[%c0_8, %c0_9, %c0_10] : memref<2x1x1xf32, #tpu.memory_space<vmem>>, vector<2x1x1xf32>
    %9 = vector.broadcast %8 : vector<2x1x1xf32> to vector<2x8x8xf32>
    %10 = arith.mulf %7, %9 : vector<2x8x8xf32>
    %c0_11 = arith.constant 0 : index
    %c0_12 = arith.constant 0 : index
    %c0_13 = arith.constant 0 : index
    %11 = vector.load %arg4[%c0_11, %c0_12, %c0_13] : memref<2x8x8xf32, #tpu.memory_space<vmem>>, vector<2x8x8xf32>
    %12 = arith.addf %10, %11 : vector<2x8x8xf32>
    %13 = arith.truncf %12 : vector<2x8x8xf32> to vector<2x8x8xbf16>
    %c0_14 = arith.constant 0 : index
    %c0_15 = arith.constant 0 : index
    %c0_16 = arith.constant 0 : index
    %c0_17 = arith.constant 0 : index
    %14 = vector.load %arg5[%c0_14, %c0_15, %c0_16, %c0_17] : memref<1x4x8x16xbf16, #tpu.memory_space<vmem>>, vector<1x4x8x16xbf16>
    %15 = vector.shape_cast %14 : vector<1x4x8x16xbf16> to vector<4x8x16xbf16>
    %16 = vector.extract_strided_slice %13 {offsets = [0, 0, 0], sizes = [1, 8, 8], strides = [1, 1, 1]} : vector<2x8x8xbf16> to vector<1x8x8xbf16>
    %17 = vector.shape_cast %16 : vector<1x8x8xbf16> to vector<8x8xbf16>
    %18 = vector.shape_cast %17 : vector<8x8xbf16> to vector<1x8x8xbf16>
    %19 = vector.shape_cast %18 : vector<1x8x8xbf16> to vector<1x8x8xbf16>
    %20 = vector.broadcast %19 : vector<1x8x8xbf16> to vector<4x8x8xbf16>
    %cst_18 = arith.constant dense<0.000000e+00> : vector<4x8x16xf32>
    %21 = tpu.matmul %20, %15, %cst_18 {dimension_numbers = #tpu.dot_dimension_numbers<[2], [1], [1], [2], [0, 0, 0, 1, 1, 2], [0], [0]>} : vector<4x8x8xbf16>, vector<4x8x16xbf16>, vector<4x8x16xf32> -> vector<4x8x16xf32>
    %22 = arith.truncf %21 : vector<4x8x16xf32> to vector<4x8x16xbf16>
    %23 = vector.extract_strided_slice %13 {offsets = [1, 0, 0], sizes = [1, 8, 8], strides = [1, 1, 1]} : vector<2x8x8xbf16> to vector<1x8x8xbf16>
    %24 = vector.shape_cast %23 : vector<1x8x8xbf16> to vector<8x8xbf16>
    %25 = vector.shape_cast %24 : vector<8x8xbf16> to vector<1x8x8xbf16>
    %26 = vector.shape_cast %25 : vector<1x8x8xbf16> to vector<1x8x8xbf16>
    %27 = vector.broadcast %26 : vector<1x8x8xbf16> to vector<4x8x8xbf16>
    %cst_19 = arith.constant dense<0.000000e+00> : vector<4x8x16xf32>
    %28 = tpu.matmul %27, %15, %cst_19 {dimension_numbers = #tpu.dot_dimension_numbers<[2], [1], [1], [2], [0, 0, 0, 1, 1, 2], [0], [0]>} : vector<4x8x8xbf16>, vector<4x8x16xbf16>, vector<4x8x16xf32> -> vector<4x8x16xf32>
    %29 = arith.truncf %28 : vector<4x8x16xf32> to vector<4x8x16xbf16>
    %30 = tpu.concatenate %22, %29 in 2 : vector<4x8x16xbf16>, vector<4x8x16xbf16> -> vector<4x8x32xbf16>
    %c0_20 = arith.constant 0 : index
    %c0_21 = arith.constant 0 : index
    %c0_22 = arith.constant 0 : index
    %c0_23 = arith.constant 0 : index
    %31 = vector.load %arg6[%c0_20, %c0_21, %c0_22, %c0_23] : memref<1x4x8x32xbf16, #tpu.memory_space<vmem>>, vector<1x4x8x32xbf16>
    %32 = vector.shape_cast %31 : vector<1x4x8x32xbf16> to vector<4x8x32xbf16>
    %33 = vector.shape_cast %30 : vector<4x8x32xbf16> to vector<1x4x8x32xbf16>
    tpu.vector_store %arg6[%c0_20, %c0_21, %c0_22, %c0_23], %33 {strides = array<i32>} : memref<1x4x8x32xbf16, #tpu.memory_space<vmem>>, vector<1x4x8x32xbf16>,
    return
  }
  func.func @transform_0(%arg0: i32) -> (i32, i32, i32, i32) {
    %c0_i32 = arith.constant 0 : i32
    %c0_i32_0 = arith.constant 0 : i32
    %c0_i32_1 = arith.constant 0 : i32
    %c0_i32_2 = arith.constant 0 : i32
    return %arg0, %c0_i32, %c0_i32_0, %c0_i32_1 : i32, i32, i32, i32
  }
  func.func @transform_1(%arg0: i32) -> (i32, i32, i32, i32) {
    %c0_i32 = arith.constant 0 : i32
    %c0_i32_0 = arith.constant 0 : i32
    %c0_i32_1 = arith.constant 0 : i32
    %c0_i32_2 = arith.constant 0 : i32
    return %arg0, %c0_i32, %c0_i32_0, %c0_i32_1 : i32, i32, i32, i32
  }
  func.func @transform_2(%arg0: i32) -> (i32, i32, i32) {
    %c0_i32 = arith.constant 0 : i32
    %c0_i32_0 = arith.constant 0 : i32
    %c0_i32_1 = arith.constant 0 : i32
    %c0_i32_2 = arith.constant 0 : i32
    return %c0_i32, %c0_i32_0, %c0_i32_1 : i32, i32, i32
  }
  func.func @transform_3(%arg0: i32) -> (i32, i32, i32) {
    %c0_i32 = arith.constant 0 : i32
    %c0_i32_0 = arith.constant 0 : i32
    %c0_i32_1 = arith.constant 0 : i32
    %c0_i32_2 = arith.constant 0 : i32
    return %c0_i32, %c0_i32_0, %c0_i32_1 : i32, i32, i32
  }
  func.func @transform_4(%arg0: i32) -> (i32, i32, i32, i32) {
    %c0_i32 = arith.constant 0 : i32
    %c0_i32_0 = arith.constant 0 : i32
    %c0_i32_1 = arith.constant 0 : i32
    %c0_i32_2 = arith.constant 0 : i32
    return %arg0, %c0_i32, %c0_i32_0, %c0_i32_1 : i32, i32, i32, i32
  }
  func.func @transform_5(%arg0: i32) -> (i32, i32, i32, i32) {
    %c0_i32 = arith.constant 0 : i32
    %c0_i32_0 = arith.constant 0 : i32
    %c0_i32_1 = arith.constant 0 : i32
    %c0_i32_2 = arith.constant 0 : i32
    return %arg0, %c0_i32, %c0_i32_0, %c0_i32_1 : i32, i32, i32, i32
  }
}

module attributes {stable_mosaic.version = 11 : i64} {
  func.func @_tap_conv_kernel(%arg0: i32, %arg1: memref<1x50x32xbf16, #tpu.memory_space<vmem>>, %arg2: memref<3x32x16xbf16, #tpu.memory_space<vmem>>, %arg3: memref<1x16xf32, #tpu.memory_space<vmem>>, %arg4: memref<1x16xf32, #tpu.memory_space<vmem>>, %arg5: memref<1x40x16xbf16, #tpu.memory_space<vmem>>, %arg6: memref<1x40x16xbf16, #tpu.memory_space<vmem>>) attributes {dimension_semantics = [#tpu.dimension_semantics<parallel>], iteration_bounds = array<i64: 2>, scalar_prefetch = 0 : i64, scratch_operands = 0 : i64, tpu.core_type = #tpu.core_type<tc>, window_params = [{transform_indices = @transform_0, window_bounds = array<i64: 1, 50, 32>}, {pipeline_mode = #tpu.pipeline_mode<synchronous>, transform_indices = @transform_1, window_bounds = array<i64: 3, 32, 16>}, {pipeline_mode = #tpu.pipeline_mode<synchronous>, transform_indices = @transform_2, window_bounds = array<i64: 1, 16>}, {pipeline_mode = #tpu.pipeline_mode<synchronous>, transform_indices = @transform_3, window_bounds = array<i64: 1, 16>}, {transform_indices = @transform_4, window_bounds = array<i64: 1, 40, 16>}, {transform_indices = @transform_5, window_bounds = array<i64: 1, 40, 16>}]} {
    %c0 = arith.constant 0 : index
    %c0_0 = arith.constant 0 : index
    %c0_1 = arith.constant 0 : index
    %0 = vector.load %arg1[%c0, %c0_0, %c0_1] : memref<1x50x32xbf16, #tpu.memory_space<vmem>>, vector<1x40x32xbf16>
    %1 = vector.shape_cast %0 : vector<1x40x32xbf16> to vector<40x32xbf16>
    %c0_2 = arith.constant 0 : index
    %c0_3 = arith.constant 0 : index
    %c0_4 = arith.constant 0 : index
    %2 = vector.load %arg2[%c0_2, %c0_3, %c0_4] : memref<3x32x16xbf16, #tpu.memory_space<vmem>>, vector<1x32x16xbf16>
    %3 = vector.shape_cast %2 : vector<1x32x16xbf16> to vector<32x16xbf16>
    %cst = arith.constant dense<0.000000e+00> : vector<40x16xf32>
    %4 = tpu.matmul %1, %3, %cst {dimension_numbers = #tpu.dot_dimension_numbers<[1], [0], [0], [1], [0, 0, 1, 1], [], []>} : vector<40x32xbf16>, vector<32x16xbf16>, vector<40x16xf32> -> vector<40x16xf32>
    %c0_5 = arith.constant 0 : index
    %c1 = arith.constant 1 : index
    %c0_6 = arith.constant 0 : index
    %5 = vector.load %arg1[%c0_5, %c1, %c0_6] : memref<1x50x32xbf16, #tpu.memory_space<vmem>>, vector<1x40x32xbf16>
    %6 = vector.shape_cast %5 : vector<1x40x32xbf16> to vector<40x32xbf16>
    %c1_7 = arith.constant 1 : index
    %c0_8 = arith.constant 0 : index
    %c0_9 = arith.constant 0 : index
    %7 = vector.load %arg2[%c1_7, %c0_8, %c0_9] : memref<3x32x16xbf16, #tpu.memory_space<vmem>>, vector<1x32x16xbf16>
    %8 = vector.shape_cast %7 : vector<1x32x16xbf16> to vector<32x16xbf16>
    %cst_10 = arith.constant dense<0.000000e+00> : vector<40x16xf32>
    %9 = tpu.matmul %6, %8, %cst_10 {dimension_numbers = #tpu.dot_dimension_numbers<[1], [0], [0], [1], [0, 0, 1, 1], [], []>} : vector<40x32xbf16>, vector<32x16xbf16>, vector<40x16xf32> -> vector<40x16xf32>
    %10 = arith.addf %4, %9 : vector<40x16xf32>
    %c0_11 = arith.constant 0 : index
    %c2 = arith.constant 2 : index
    %c0_12 = arith.constant 0 : index
    %11 = vector.load %arg1[%c0_11, %c2, %c0_12] : memref<1x50x32xbf16, #tpu.memory_space<vmem>>, vector<1x40x32xbf16>
    %12 = vector.shape_cast %11 : vector<1x40x32xbf16> to vector<40x32xbf16>
    %c2_13 = arith.constant 2 : index
    %c0_14 = arith.constant 0 : index
    %c0_15 = arith.constant 0 : index
    %13 = vector.load %arg2[%c2_13, %c0_14, %c0_15] : memref<3x32x16xbf16, #tpu.memory_space<vmem>>, vector<1x32x16xbf16>
    %14 = vector.shape_cast %13 : vector<1x32x16xbf16> to vector<32x16xbf16>
    %cst_16 = arith.constant dense<0.000000e+00> : vector<40x16xf32>
    %15 = tpu.matmul %12, %14, %cst_16 {dimension_numbers = #tpu.dot_dimension_numbers<[1], [0], [0], [1], [0, 0, 1, 1], [], []>} : vector<40x32xbf16>, vector<32x16xbf16>, vector<40x16xf32> -> vector<40x16xf32>
    %16 = arith.addf %10, %15 : vector<40x16xf32>
    %c0_17 = arith.constant 0 : index
    %c0_18 = arith.constant 0 : index
    %17 = vector.load %arg3[%c0_17, %c0_18] : memref<1x16xf32, #tpu.memory_space<vmem>>, vector<1x16xf32>
    %18 = vector.broadcast %17 : vector<1x16xf32> to vector<40x16xf32>
    %19 = arith.mulf %16, %18 : vector<40x16xf32>
    %c0_19 = arith.constant 0 : index
    %c0_20 = arith.constant 0 : index
    %20 = vector.load %arg4[%c0_19, %c0_20] : memref<1x16xf32, #tpu.memory_space<vmem>>, vector<1x16xf32>
    %21 = vector.broadcast %20 : vector<1x16xf32> to vector<40x16xf32>
    %22 = arith.addf %19, %21 : vector<40x16xf32>
    %c0_21 = arith.constant 0 : index
    %c0_22 = arith.constant 0 : index
    %c0_23 = arith.constant 0 : index
    %23 = vector.load %arg5[%c0_21, %c0_22, %c0_23] : memref<1x40x16xbf16, #tpu.memory_space<vmem>>, vector<1x40x16xbf16>
    %24 = vector.shape_cast %23 : vector<1x40x16xbf16> to vector<40x16xbf16>
    %25 = arith.extf %24 : vector<40x16xbf16> to vector<40x16xf32>
    %26 = arith.addf %22, %25 : vector<40x16xf32>
    %cst_24 = arith.constant 0.000000e+00 : f32
    %27 = vector.broadcast %cst_24 : f32 to vector<40x16xf32>
    %28 = arith.cmpf oge, %26, %27 : vector<40x16xf32>
    %cst_25 = arith.constant 1.000000e-01 : f32
    %29 = vector.broadcast %cst_25 : f32 to vector<40x16xf32>
    %30 = arith.mulf %29, %26 : vector<40x16xf32>
    %31 = arith.select %28, %26, %30 : vector<40x16xi1>, vector<40x16xf32>
    %32 = arith.truncf %31 : vector<40x16xf32> to vector<40x16xbf16>
    %c0_26 = arith.constant 0 : index
    %c0_27 = arith.constant 0 : index
    %c0_28 = arith.constant 0 : index
    %33 = vector.load %arg6[%c0_26, %c0_27, %c0_28] : memref<1x40x16xbf16, #tpu.memory_space<vmem>>, vector<1x40x16xbf16>
    %34 = vector.shape_cast %33 : vector<1x40x16xbf16> to vector<40x16xbf16>
    %35 = vector.shape_cast %32 : vector<40x16xbf16> to vector<1x40x16xbf16>
    tpu.vector_store %arg6[%c0_26, %c0_27, %c0_28], %35 {strides = array<i32>} : memref<1x40x16xbf16, #tpu.memory_space<vmem>>, vector<1x40x16xbf16>,
    return
  }
  func.func @transform_0(%arg0: i32) -> (i32, i32, i32) {
    %c0_i32 = arith.constant 0 : i32
    %c0_i32_0 = arith.constant 0 : i32
    %c0_i32_1 = arith.constant 0 : i32
    return %arg0, %c0_i32, %c0_i32_0 : i32, i32, i32
  }
  func.func @transform_1(%arg0: i32) -> (i32, i32, i32) {
    %c0_i32 = arith.constant 0 : i32
    %c0_i32_0 = arith.constant 0 : i32
    %c0_i32_1 = arith.constant 0 : i32
    %c0_i32_2 = arith.constant 0 : i32
    return %c0_i32, %c0_i32_0, %c0_i32_1 : i32, i32, i32
  }
  func.func @transform_2(%arg0: i32) -> (i32, i32) {
    %c0_i32 = arith.constant 0 : i32
    %c0_i32_0 = arith.constant 0 : i32
    %c0_i32_1 = arith.constant 0 : i32
    return %c0_i32, %c0_i32_0 : i32, i32
  }
  func.func @transform_3(%arg0: i32) -> (i32, i32) {
    %c0_i32 = arith.constant 0 : i32
    %c0_i32_0 = arith.constant 0 : i32
    %c0_i32_1 = arith.constant 0 : i32
    return %c0_i32, %c0_i32_0 : i32, i32
  }
  func.func @transform_4(%arg0: i32) -> (i32, i32, i32) {
    %c0_i32 = arith.constant 0 : i32
    %c0_i32_0 = arith.constant 0 : i32
    %c0_i32_1 = arith.constant 0 : i32
    return %arg0, %c0_i32, %c0_i32_0 : i32, i32, i32
  }
  func.func @transform_5(%arg0: i32) -> (i32, i32, i32) {
    %c0_i32 = arith.constant 0 : i32
    %c0_i32_0 = arith.constant 0 : i32
    %c0_i32_1 = arith.constant 0 : i32
    return %arg0, %c0_i32, %c0_i32_0 : i32, i32, i32
  }
}

module attributes {stable_mosaic.version = 11 : i64} {
  func.func @_mm_kernel(%arg0: i32, %arg1: memref<64x16xbf16, #tpu.memory_space<vmem>>, %arg2: memref<16x16xbf16, #tpu.memory_space<vmem>>, %arg3: memref<1x16xf32, #tpu.memory_space<vmem>>, %arg4: memref<1x16xf32, #tpu.memory_space<vmem>>, %arg5: memref<64x16xbf16, #tpu.memory_space<vmem>>, %arg6: memref<64x16xbf16, #tpu.memory_space<vmem>>) attributes {dimension_semantics = [#tpu.dimension_semantics<parallel>], iteration_bounds = array<i64: 1>, scalar_prefetch = 0 : i64, scratch_operands = 0 : i64, tpu.core_type = #tpu.core_type<tc>, window_params = [{transform_indices = @transform_0, window_bounds = array<i64: 64, 16>}, {pipeline_mode = #tpu.pipeline_mode<synchronous>, transform_indices = @transform_1, window_bounds = array<i64: 16, 16>}, {pipeline_mode = #tpu.pipeline_mode<synchronous>, transform_indices = @transform_2, window_bounds = array<i64: 1, 16>}, {pipeline_mode = #tpu.pipeline_mode<synchronous>, transform_indices = @transform_3, window_bounds = array<i64: 1, 16>}, {transform_indices = @transform_4, window_bounds = array<i64: 64, 16>}, {transform_indices = @transform_5, window_bounds = array<i64: 64, 16>}]} {
    %c0 = arith.constant 0 : index
    %c0_0 = arith.constant 0 : index
    %0 = vector.load %arg1[%c0, %c0_0] : memref<64x16xbf16, #tpu.memory_space<vmem>>, vector<64x16xbf16>
    %c0_1 = arith.constant 0 : index
    %c0_2 = arith.constant 0 : index
    %1 = vector.load %arg2[%c0_1, %c0_2] : memref<16x16xbf16, #tpu.memory_space<vmem>>, vector<16x16xbf16>
    %cst = arith.constant dense<0.000000e+00> : vector<64x16xf32>
    %2 = tpu.matmul %0, %1, %cst {dimension_numbers = #tpu.dot_dimension_numbers<[1], [0], [0], [1], [0, 0, 1, 1], [], []>} : vector<64x16xbf16>, vector<16x16xbf16>, vector<64x16xf32> -> vector<64x16xf32>
    %c0_3 = arith.constant 0 : index
    %c0_4 = arith.constant 0 : index
    %3 = vector.load %arg3[%c0_3, %c0_4] : memref<1x16xf32, #tpu.memory_space<vmem>>, vector<1x16xf32>
    %4 = vector.broadcast %3 : vector<1x16xf32> to vector<64x16xf32>
    %5 = arith.mulf %2, %4 : vector<64x16xf32>
    %c0_5 = arith.constant 0 : index
    %c0_6 = arith.constant 0 : index
    %6 = vector.load %arg4[%c0_5, %c0_6] : memref<1x16xf32, #tpu.memory_space<vmem>>, vector<1x16xf32>
    %7 = vector.broadcast %6 : vector<1x16xf32> to vector<64x16xf32>
    %8 = arith.addf %5, %7 : vector<64x16xf32>
    %c0_7 = arith.constant 0 : index
    %c0_8 = arith.constant 0 : index
    %9 = vector.load %arg5[%c0_7, %c0_8] : memref<64x16xbf16, #tpu.memory_space<vmem>>, vector<64x16xbf16>
    %10 = arith.extf %9 : vector<64x16xbf16> to vector<64x16xf32>
    %11 = arith.addf %8, %10 : vector<64x16xf32>
    %cst_9 = arith.constant 0.000000e+00 : f32
    %12 = vector.broadcast %cst_9 : f32 to vector<64x16xf32>
    %13 = arith.cmpf oge, %11, %12 : vector<64x16xf32>
    %cst_10 = arith.constant 1.000000e-01 : f32
    %14 = vector.broadcast %cst_10 : f32 to vector<64x16xf32>
    %15 = arith.mulf %14, %11 : vector<64x16xf32>
    %16 = arith.select %13, %11, %15 : vector<64x16xi1>, vector<64x16xf32>
    %17 = arith.truncf %16 : vector<64x16xf32> to vector<64x16xbf16>
    %c0_11 = arith.constant 0 : index
    %c0_12 = arith.constant 0 : index
    %18 = vector.load %arg6[%c0_11, %c0_12] : memref<64x16xbf16, #tpu.memory_space<vmem>>, vector<64x16xbf16>
    tpu.vector_store %arg6[%c0_11, %c0_12], %17 {strides = array<i32>} : memref<64x16xbf16, #tpu.memory_space<vmem>>, vector<64x16xbf16>,
    return
  }
  func.func @transform_0(%arg0: i32) -> (i32, i32) {
    %c0_i32 = arith.constant 0 : i32
    %c0_i32_0 = arith.constant 0 : i32
    return %arg0, %c0_i32 : i32, i32
  }
  func.func @transform_1(%arg0: i32) -> (i32, i32) {
    %c0_i32 = arith.constant 0 : i32
    %c0_i32_0 = arith.constant 0 : i32
    %c0_i32_1 = arith.constant 0 : i32
    return %c0_i32, %c0_i32_0 : i32, i32
  }
  func.func @transform_2(%arg0: i32) -> (i32, i32) {
    %c0_i32 = arith.constant 0 : i32
    %c0_i32_0 = arith.constant 0 : i32
    %c0_i32_1 = arith.constant 0 : i32
    return %c0_i32, %c0_i32_0 : i32, i32
  }
  func.func @transform_3(%arg0: i32) -> (i32, i32) {
    %c0_i32 = arith.constant 0 : i32
    %c0_i32_0 = arith.constant 0 : i32
    %c0_i32_1 = arith.constant 0 : i32
    return %c0_i32, %c0_i32_0 : i32, i32
  }
  func.func @transform_4(%arg0: i32) -> (i32, i32) {
    %c0_i32 = arith.constant 0 : i32
    %c0_i32_0 = arith.constant 0 : i32
    return %arg0, %c0_i32 : i32, i32
  }
  func.func @transform_5(%arg0: i32) -> (i32, i32) {
    %c0_i32 = arith.constant 0 : i32
    %c0_i32_0 = arith.constant 0 : i32
    return %arg0, %c0_i32 : i32, i32
  }
}

module attributes {stable_mosaic.version = 11 : i64} {
  func.func @_tap_conv_kernel(%arg0: i32, %arg1: memref<1x48x16xbf16, #tpu.memory_space<vmem>>, %arg2: memref<3x16x16xbf16, #tpu.memory_space<vmem>>, %arg3: memref<1x16xf32, #tpu.memory_space<vmem>>, %arg4: memref<1x16xf32, #tpu.memory_space<vmem>>, %arg5: memref<1x32x16xbf16, #tpu.memory_space<vmem>>, %arg6: memref<1x32x16xbf16, #tpu.memory_space<vmem>>) attributes {dimension_semantics = [#tpu.dimension_semantics<parallel>], iteration_bounds = array<i64: 2>, scalar_prefetch = 0 : i64, scratch_operands = 0 : i64, tpu.core_type = #tpu.core_type<tc>, window_params = [{transform_indices = @transform_0, window_bounds = array<i64: 1, 48, 16>}, {pipeline_mode = #tpu.pipeline_mode<synchronous>, transform_indices = @transform_1, window_bounds = array<i64: 3, 16, 16>}, {pipeline_mode = #tpu.pipeline_mode<synchronous>, transform_indices = @transform_2, window_bounds = array<i64: 1, 16>}, {pipeline_mode = #tpu.pipeline_mode<synchronous>, transform_indices = @transform_3, window_bounds = array<i64: 1, 16>}, {transform_indices = @transform_4, window_bounds = array<i64: 1, 32, 16>}, {transform_indices = @transform_5, window_bounds = array<i64: 1, 32, 16>}]} {
    %c0 = arith.constant 0 : index
    %c0_0 = arith.constant 0 : index
    %c0_1 = arith.constant 0 : index
    %0 = vector.load %arg1[%c0, %c0_0, %c0_1] : memref<1x48x16xbf16, #tpu.memory_space<vmem>>, vector<1x32x16xbf16>
    %1 = vector.shape_cast %0 : vector<1x32x16xbf16> to vector<32x16xbf16>
    %c0_2 = arith.constant 0 : index
    %c0_3 = arith.constant 0 : index
    %c0_4 = arith.constant 0 : index
    %2 = vector.load %arg2[%c0_2, %c0_3, %c0_4] : memref<3x16x16xbf16, #tpu.memory_space<vmem>>, vector<1x16x16xbf16>
    %3 = vector.shape_cast %2 : vector<1x16x16xbf16> to vector<16x16xbf16>
    %cst = arith.constant dense<0.000000e+00> : vector<32x16xf32>
    %4 = tpu.matmul %1, %3, %cst {dimension_numbers = #tpu.dot_dimension_numbers<[1], [0], [0], [1], [0, 0, 1, 1], [], []>} : vector<32x16xbf16>, vector<16x16xbf16>, vector<32x16xf32> -> vector<32x16xf32>
    %c0_5 = arith.constant 0 : index
    %c8 = arith.constant 8 : index
    %c0_6 = arith.constant 0 : index
    %5 = vector.load %arg1[%c0_5, %c8, %c0_6] : memref<1x48x16xbf16, #tpu.memory_space<vmem>>, vector<1x32x16xbf16>
    %6 = vector.shape_cast %5 : vector<1x32x16xbf16> to vector<32x16xbf16>
    %c1 = arith.constant 1 : index
    %c0_7 = arith.constant 0 : index
    %c0_8 = arith.constant 0 : index
    %7 = vector.load %arg2[%c1, %c0_7, %c0_8] : memref<3x16x16xbf16, #tpu.memory_space<vmem>>, vector<1x16x16xbf16>
    %8 = vector.shape_cast %7 : vector<1x16x16xbf16> to vector<16x16xbf16>
    %cst_9 = arith.constant dense<0.000000e+00> : vector<32x16xf32>
    %9 = tpu.matmul %6, %8, %cst_9 {dimension_numbers = #tpu.dot_dimension_numbers<[1], [0], [0], [1], [0, 0, 1, 1], [], []>} : vector<32x16xbf16>, vector<16x16xbf16>, vector<32x16xf32> -> vector<32x16xf32>
    %10 = arith.addf %4, %9 : vector<32x16xf32>
    %c0_10 = arith.constant 0 : index
    %c16 = arith.constant 16 : index
    %c0_11 = arith.constant 0 : index
    %11 = vector.load %arg1[%c0_10, %c16, %c0_11] : memref<1x48x16xbf16, #tpu.memory_space<vmem>>, vector<1x32x16xbf16>
    %12 = vector.shape_cast %11 : vector<1x32x16xbf16> to vector<32x16xbf16>
    %c2 = arith.constant 2 : index
    %c0_12 = arith.constant 0 : index
    %c0_13 = arith.constant 0 : index
    %13 = vector.load %arg2[%c2, %c0_12, %c0_13] : memref<3x16x16xbf16, #tpu.memory_space<vmem>>, vector<1x16x16xbf16>
    %14 = vector.shape_cast %13 : vector<1x16x16xbf16> to vector<16x16xbf16>
    %cst_14 = arith.constant dense<0.000000e+00> : vector<32x16xf32>
    %15 = tpu.matmul %12, %14, %cst_14 {dimension_numbers = #tpu.dot_dimension_numbers<[1], [0], [0], [1], [0, 0, 1, 1], [], []>} : vector<32x16xbf16>, vector<16x16xbf16>, vector<32x16xf32> -> vector<32x16xf32>
    %16 = arith.addf %10, %15 : vector<32x16xf32>
    %c0_15 = arith.constant 0 : index
    %c0_16 = arith.constant 0 : index
    %17 = vector.load %arg3[%c0_15, %c0_16] : memref<1x16xf32, #tpu.memory_space<vmem>>, vector<1x16xf32>
    %18 = vector.broadcast %17 : vector<1x16xf32> to vector<32x16xf32>
    %19 = arith.mulf %16, %18 : vector<32x16xf32>
    %c0_17 = arith.constant 0 : index
    %c0_18 = arith.constant 0 : index
    %20 = vector.load %arg4[%c0_17, %c0_18] : memref<1x16xf32, #tpu.memory_space<vmem>>, vector<1x16xf32>
    %21 = vector.broadcast %20 : vector<1x16xf32> to vector<32x16xf32>
    %22 = arith.addf %19, %21 : vector<32x16xf32>
    %c0_19 = arith.constant 0 : index
    %c0_20 = arith.constant 0 : index
    %c0_21 = arith.constant 0 : index
    %23 = vector.load %arg5[%c0_19, %c0_20, %c0_21] : memref<1x32x16xbf16, #tpu.memory_space<vmem>>, vector<1x32x16xbf16>
    %24 = vector.shape_cast %23 : vector<1x32x16xbf16> to vector<32x16xbf16>
    %25 = arith.extf %24 : vector<32x16xbf16> to vector<32x16xf32>
    %26 = arith.addf %22, %25 : vector<32x16xf32>
    %cst_22 = arith.constant 0.000000e+00 : f32
    %27 = vector.broadcast %cst_22 : f32 to vector<32x16xf32>
    %28 = arith.cmpf oge, %26, %27 : vector<32x16xf32>
    %cst_23 = arith.constant 1.000000e-01 : f32
    %29 = vector.broadcast %cst_23 : f32 to vector<32x16xf32>
    %30 = arith.mulf %29, %26 : vector<32x16xf32>
    %31 = arith.select %28, %26, %30 : vector<32x16xi1>, vector<32x16xf32>
    %32 = arith.truncf %31 : vector<32x16xf32> to vector<32x16xbf16>
    %c0_24 = arith.constant 0 : index
    %c0_25 = arith.constant 0 : index
    %c0_26 = arith.constant 0 : index
    %33 = vector.load %arg6[%c0_24, %c0_25, %c0_26] : memref<1x32x16xbf16, #tpu.memory_space<vmem>>, vector<1x32x16xbf16>
    %34 = vector.shape_cast %33 : vector<1x32x16xbf16> to vector<32x16xbf16>
    %35 = vector.shape_cast %32 : vector<32x16xbf16> to vector<1x32x16xbf16>
    tpu.vector_store %arg6[%c0_24, %c0_25, %c0_26], %35 {strides = array<i32>} : memref<1x32x16xbf16, #tpu.memory_space<vmem>>, vector<1x32x16xbf16>,
    return
  }
  func.func @transform_0(%arg0: i32) -> (i32, i32, i32) {
    %c0_i32 = arith.constant 0 : i32
    %c0_i32_0 = arith.constant 0 : i32
    %c0_i32_1 = arith.constant 0 : i32
    return %arg0, %c0_i32, %c0_i32_0 : i32, i32, i32
  }
  func.func @transform_1(%arg0: i32) -> (i32, i32, i32) {
    %c0_i32 = arith.constant 0 : i32
    %c0_i32_0 = arith.constant 0 : i32
    %c0_i32_1 = arith.constant 0 : i32
    %c0_i32_2 = arith.constant 0 : i32
    return %c0_i32, %c0_i32_0, %c0_i32_1 : i32, i32, i32
  }
  func.func @transform_2(%arg0: i32) -> (i32, i32) {
    %c0_i32 = arith.constant 0 : i32
    %c0_i32_0 = arith.constant 0 : i32
    %c0_i32_1 = arith.constant 0 : i32
    return %c0_i32, %c0_i32_0 : i32, i32
  }
  func.func @transform_3(%arg0: i32) -> (i32, i32) {
    %c0_i32 = arith.constant 0 : i32
    %c0_i32_0 = arith.constant 0 : i32
    %c0_i32_1 = arith.constant 0 : i32
    return %c0_i32, %c0_i32_0 : i32, i32
  }
  func.func @transform_4(%arg0: i32) -> (i32, i32, i32) {
    %c0_i32 = arith.constant 0 : i32
    %c0_i32_0 = arith.constant 0 : i32
    %c0_i32_1 = arith.constant 0 : i32
    return %arg0, %c0_i32, %c0_i32_0 : i32, i32, i32
  }
  func.func @transform_5(%arg0: i32) -> (i32, i32, i32) {
    %c0_i32 = arith.constant 0 : i32
    %c0_i32_0 = arith.constant 0 : i32
    %c0_i32_1 = arith.constant 0 : i32
    return %arg0, %c0_i32, %c0_i32_0 : i32, i32, i32
  }
}

module attributes {stable_mosaic.version = 11 : i64} {
  func.func @_tap_conv_kernel(%arg0: i32, %arg1: memref<1x50x32xbf16, #tpu.memory_space<vmem>>, %arg2: memref<3x32x32xbf16, #tpu.memory_space<vmem>>, %arg3: memref<1x32xf32, #tpu.memory_space<vmem>>, %arg4: memref<1x32xf32, #tpu.memory_space<vmem>>, %arg5: memref<1x40x32xbf16, #tpu.memory_space<vmem>>, %arg6: memref<1x40x32xbf16, #tpu.memory_space<vmem>>) attributes {dimension_semantics = [#tpu.dimension_semantics<parallel>], iteration_bounds = array<i64: 2>, scalar_prefetch = 0 : i64, scratch_operands = 0 : i64, tpu.core_type = #tpu.core_type<tc>, window_params = [{transform_indices = @transform_0, window_bounds = array<i64: 1, 50, 32>}, {pipeline_mode = #tpu.pipeline_mode<synchronous>, transform_indices = @transform_1, window_bounds = array<i64: 3, 32, 32>}, {pipeline_mode = #tpu.pipeline_mode<synchronous>, transform_indices = @transform_2, window_bounds = array<i64: 1, 32>}, {pipeline_mode = #tpu.pipeline_mode<synchronous>, transform_indices = @transform_3, window_bounds = array<i64: 1, 32>}, {transform_indices = @transform_4, window_bounds = array<i64: 1, 40, 32>}, {transform_indices = @transform_5, window_bounds = array<i64: 1, 40, 32>}]} {
    %c0 = arith.constant 0 : index
    %c0_0 = arith.constant 0 : index
    %c0_1 = arith.constant 0 : index
    %0 = vector.load %arg1[%c0, %c0_0, %c0_1] : memref<1x50x32xbf16, #tpu.memory_space<vmem>>, vector<1x40x32xbf16>
    %1 = vector.shape_cast %0 : vector<1x40x32xbf16> to vector<40x32xbf16>
    %c0_2 = arith.constant 0 : index
    %c0_3 = arith.constant 0 : index
    %c0_4 = arith.constant 0 : index
    %2 = vector.load %arg2[%c0_2, %c0_3, %c0_4] : memref<3x32x32xbf16, #tpu.memory_space<vmem>>, vector<1x32x32xbf16>
    %3 = vector.shape_cast %2 : vector<1x32x32xbf16> to vector<32x32xbf16>
    %cst = arith.constant dense<0.000000e+00> : vector<40x32xf32>
    %4 = tpu.matmul %1, %3, %cst {dimension_numbers = #tpu.dot_dimension_numbers<[1], [0], [0], [1], [0, 0, 1, 1], [], []>} : vector<40x32xbf16>, vector<32x32xbf16>, vector<40x32xf32> -> vector<40x32xf32>
    %c0_5 = arith.constant 0 : index
    %c1 = arith.constant 1 : index
    %c0_6 = arith.constant 0 : index
    %5 = vector.load %arg1[%c0_5, %c1, %c0_6] : memref<1x50x32xbf16, #tpu.memory_space<vmem>>, vector<1x40x32xbf16>
    %6 = vector.shape_cast %5 : vector<1x40x32xbf16> to vector<40x32xbf16>
    %c1_7 = arith.constant 1 : index
    %c0_8 = arith.constant 0 : index
    %c0_9 = arith.constant 0 : index
    %7 = vector.load %arg2[%c1_7, %c0_8, %c0_9] : memref<3x32x32xbf16, #tpu.memory_space<vmem>>, vector<1x32x32xbf16>
    %8 = vector.shape_cast %7 : vector<1x32x32xbf16> to vector<32x32xbf16>
    %cst_10 = arith.constant dense<0.000000e+00> : vector<40x32xf32>
    %9 = tpu.matmul %6, %8, %cst_10 {dimension_numbers = #tpu.dot_dimension_numbers<[1], [0], [0], [1], [0, 0, 1, 1], [], []>} : vector<40x32xbf16>, vector<32x32xbf16>, vector<40x32xf32> -> vector<40x32xf32>
    %10 = arith.addf %4, %9 : vector<40x32xf32>
    %c0_11 = arith.constant 0 : index
    %c2 = arith.constant 2 : index
    %c0_12 = arith.constant 0 : index
    %11 = vector.load %arg1[%c0_11, %c2, %c0_12] : memref<1x50x32xbf16, #tpu.memory_space<vmem>>, vector<1x40x32xbf16>
    %12 = vector.shape_cast %11 : vector<1x40x32xbf16> to vector<40x32xbf16>
    %c2_13 = arith.constant 2 : index
    %c0_14 = arith.constant 0 : index
    %c0_15 = arith.constant 0 : index
    %13 = vector.load %arg2[%c2_13, %c0_14, %c0_15] : memref<3x32x32xbf16, #tpu.memory_space<vmem>>, vector<1x32x32xbf16>
    %14 = vector.shape_cast %13 : vector<1x32x32xbf16> to vector<32x32xbf16>
    %cst_16 = arith.constant dense<0.000000e+00> : vector<40x32xf32>
    %15 = tpu.matmul %12, %14, %cst_16 {dimension_numbers = #tpu.dot_dimension_numbers<[1], [0], [0], [1], [0, 0, 1, 1], [], []>} : vector<40x32xbf16>, vector<32x32xbf16>, vector<40x32xf32> -> vector<40x32xf32>
    %16 = arith.addf %10, %15 : vector<40x32xf32>
    %c0_17 = arith.constant 0 : index
    %c0_18 = arith.constant 0 : index
    %17 = vector.load %arg3[%c0_17, %c0_18] : memref<1x32xf32, #tpu.memory_space<vmem>>, vector<1x32xf32>
    %18 = vector.broadcast %17 : vector<1x32xf32> to vector<40x32xf32>
    %19 = arith.mulf %16, %18 : vector<40x32xf32>
    %c0_19 = arith.constant 0 : index
    %c0_20 = arith.constant 0 : index
    %20 = vector.load %arg4[%c0_19, %c0_20] : memref<1x32xf32, #tpu.memory_space<vmem>>, vector<1x32xf32>
    %21 = vector.broadcast %20 : vector<1x32xf32> to vector<40x32xf32>
    %22 = arith.addf %19, %21 : vector<40x32xf32>
    %c0_21 = arith.constant 0 : index
    %c0_22 = arith.constant 0 : index
    %c0_23 = arith.constant 0 : index
    %23 = vector.load %arg5[%c0_21, %c0_22, %c0_23] : memref<1x40x32xbf16, #tpu.memory_space<vmem>>, vector<1x40x32xbf16>
    %24 = vector.shape_cast %23 : vector<1x40x32xbf16> to vector<40x32xbf16>
    %25 = arith.extf %24 : vector<40x32xbf16> to vector<40x32xf32>
    %26 = arith.addf %22, %25 : vector<40x32xf32>
    %cst_24 = arith.constant 0.000000e+00 : f32
    %27 = vector.broadcast %cst_24 : f32 to vector<40x32xf32>
    %28 = arith.cmpf oge, %26, %27 : vector<40x32xf32>
    %cst_25 = arith.constant 1.000000e-01 : f32
    %29 = vector.broadcast %cst_25 : f32 to vector<40x32xf32>
    %30 = arith.mulf %29, %26 : vector<40x32xf32>
    %31 = arith.select %28, %26, %30 : vector<40x32xi1>, vector<40x32xf32>
    %32 = arith.truncf %31 : vector<40x32xf32> to vector<40x32xbf16>
    %c0_26 = arith.constant 0 : index
    %c0_27 = arith.constant 0 : index
    %c0_28 = arith.constant 0 : index
    %33 = vector.load %arg6[%c0_26, %c0_27, %c0_28] : memref<1x40x32xbf16, #tpu.memory_space<vmem>>, vector<1x40x32xbf16>
    %34 = vector.shape_cast %33 : vector<1x40x32xbf16> to vector<40x32xbf16>
    %35 = vector.shape_cast %32 : vector<40x32xbf16> to vector<1x40x32xbf16>
    tpu.vector_store %arg6[%c0_26, %c0_27, %c0_28], %35 {strides = array<i32>} : memref<1x40x32xbf16, #tpu.memory_space<vmem>>, vector<1x40x32xbf16>,
    return
  }
  func.func @transform_0(%arg0: i32) -> (i32, i32, i32) {
    %c0_i32 = arith.constant 0 : i32
    %c0_i32_0 = arith.constant 0 : i32
    %c0_i32_1 = arith.constant 0 : i32
    return %arg0, %c0_i32, %c0_i32_0 : i32, i32, i32
  }
  func.func @transform_1(%arg0: i32) -> (i32, i32, i32) {
    %c0_i32 = arith.constant 0 : i32
    %c0_i32_0 = arith.constant 0 : i32
    %c0_i32_1 = arith.constant 0 : i32
    %c0_i32_2 = arith.constant 0 : i32
    return %c0_i32, %c0_i32_0, %c0_i32_1 : i32, i32, i32
  }
  func.func @transform_2(%arg0: i32) -> (i32, i32) {
    %c0_i32 = arith.constant 0 : i32
    %c0_i32_0 = arith.constant 0 : i32
    %c0_i32_1 = arith.constant 0 : i32
    return %c0_i32, %c0_i32_0 : i32, i32
  }
  func.func @transform_3(%arg0: i32) -> (i32, i32) {
    %c0_i32 = arith.constant 0 : i32
    %c0_i32_0 = arith.constant 0 : i32
    %c0_i32_1 = arith.constant 0 : i32
    return %c0_i32, %c0_i32_0 : i32, i32
  }
  func.func @transform_4(%arg0: i32) -> (i32, i32, i32) {
    %c0_i32 = arith.constant 0 : i32
    %c0_i32_0 = arith.constant 0 : i32
    %c0_i32_1 = arith.constant 0 : i32
    return %arg0, %c0_i32, %c0_i32_0 : i32, i32, i32
  }
  func.func @transform_5(%arg0: i32) -> (i32, i32, i32) {
    %c0_i32 = arith.constant 0 : i32
    %c0_i32_0 = arith.constant 0 : i32
    %c0_i32_1 = arith.constant 0 : i32
    return %arg0, %c0_i32, %c0_i32_0 : i32, i32, i32
  }
}

module attributes {stable_mosaic.version = 11 : i64} {
  func.func @_mm_kernel(%arg0: i32, %arg1: memref<64x32xbf16, #tpu.memory_space<vmem>>, %arg2: memref<32x32xbf16, #tpu.memory_space<vmem>>, %arg3: memref<1x32xf32, #tpu.memory_space<vmem>>, %arg4: memref<1x32xf32, #tpu.memory_space<vmem>>, %arg5: memref<64x32xbf16, #tpu.memory_space<vmem>>, %arg6: memref<64x32xbf16, #tpu.memory_space<vmem>>) attributes {dimension_semantics = [#tpu.dimension_semantics<parallel>], iteration_bounds = array<i64: 1>, scalar_prefetch = 0 : i64, scratch_operands = 0 : i64, tpu.core_type = #tpu.core_type<tc>, window_params = [{transform_indices = @transform_0, window_bounds = array<i64: 64, 32>}, {pipeline_mode = #tpu.pipeline_mode<synchronous>, transform_indices = @transform_1, window_bounds = array<i64: 32, 32>}, {pipeline_mode = #tpu.pipeline_mode<synchronous>, transform_indices = @transform_2, window_bounds = array<i64: 1, 32>}, {pipeline_mode = #tpu.pipeline_mode<synchronous>, transform_indices = @transform_3, window_bounds = array<i64: 1, 32>}, {transform_indices = @transform_4, window_bounds = array<i64: 64, 32>}, {transform_indices = @transform_5, window_bounds = array<i64: 64, 32>}]} {
    %c0 = arith.constant 0 : index
    %c0_0 = arith.constant 0 : index
    %0 = vector.load %arg1[%c0, %c0_0] : memref<64x32xbf16, #tpu.memory_space<vmem>>, vector<64x32xbf16>
    %c0_1 = arith.constant 0 : index
    %c0_2 = arith.constant 0 : index
    %1 = vector.load %arg2[%c0_1, %c0_2] : memref<32x32xbf16, #tpu.memory_space<vmem>>, vector<32x32xbf16>
    %cst = arith.constant dense<0.000000e+00> : vector<64x32xf32>
    %2 = tpu.matmul %0, %1, %cst {dimension_numbers = #tpu.dot_dimension_numbers<[1], [0], [0], [1], [0, 0, 1, 1], [], []>} : vector<64x32xbf16>, vector<32x32xbf16>, vector<64x32xf32> -> vector<64x32xf32>
    %c0_3 = arith.constant 0 : index
    %c0_4 = arith.constant 0 : index
    %3 = vector.load %arg3[%c0_3, %c0_4] : memref<1x32xf32, #tpu.memory_space<vmem>>, vector<1x32xf32>
    %4 = vector.broadcast %3 : vector<1x32xf32> to vector<64x32xf32>
    %5 = arith.mulf %2, %4 : vector<64x32xf32>
    %c0_5 = arith.constant 0 : index
    %c0_6 = arith.constant 0 : index
    %6 = vector.load %arg4[%c0_5, %c0_6] : memref<1x32xf32, #tpu.memory_space<vmem>>, vector<1x32xf32>
    %7 = vector.broadcast %6 : vector<1x32xf32> to vector<64x32xf32>
    %8 = arith.addf %5, %7 : vector<64x32xf32>
    %c0_7 = arith.constant 0 : index
    %c0_8 = arith.constant 0 : index
    %9 = vector.load %arg5[%c0_7, %c0_8] : memref<64x32xbf16, #tpu.memory_space<vmem>>, vector<64x32xbf16>
    %10 = arith.extf %9 : vector<64x32xbf16> to vector<64x32xf32>
    %11 = arith.addf %8, %10 : vector<64x32xf32>
    %cst_9 = arith.constant 0.000000e+00 : f32
    %12 = vector.broadcast %cst_9 : f32 to vector<64x32xf32>
    %13 = arith.cmpf oge, %11, %12 : vector<64x32xf32>
    %cst_10 = arith.constant 1.000000e-01 : f32
    %14 = vector.broadcast %cst_10 : f32 to vector<64x32xf32>
    %15 = arith.mulf %14, %11 : vector<64x32xf32>
    %16 = arith.select %13, %11, %15 : vector<64x32xi1>, vector<64x32xf32>
    %17 = arith.truncf %16 : vector<64x32xf32> to vector<64x32xbf16>
    %c0_11 = arith.constant 0 : index
    %c0_12 = arith.constant 0 : index
    %18 = vector.load %arg6[%c0_11, %c0_12] : memref<64x32xbf16, #tpu.memory_space<vmem>>, vector<64x32xbf16>
    tpu.vector_store %arg6[%c0_11, %c0_12], %17 {strides = array<i32>} : memref<64x32xbf16, #tpu.memory_space<vmem>>, vector<64x32xbf16>,
    return
  }
  func.func @transform_0(%arg0: i32) -> (i32, i32) {
    %c0_i32 = arith.constant 0 : i32
    %c0_i32_0 = arith.constant 0 : i32
    return %arg0, %c0_i32 : i32, i32
  }
  func.func @transform_1(%arg0: i32) -> (i32, i32) {
    %c0_i32 = arith.constant 0 : i32
    %c0_i32_0 = arith.constant 0 : i32
    %c0_i32_1 = arith.constant 0 : i32
    return %c0_i32, %c0_i32_0 : i32, i32
  }
  func.func @transform_2(%arg0: i32) -> (i32, i32) {
    %c0_i32 = arith.constant 0 : i32
    %c0_i32_0 = arith.constant 0 : i32
    %c0_i32_1 = arith.constant 0 : i32
    return %c0_i32, %c0_i32_0 : i32, i32
  }
  func.func @transform_3(%arg0: i32) -> (i32, i32) {
    %c0_i32 = arith.constant 0 : i32
    %c0_i32_0 = arith.constant 0 : i32
    %c0_i32_1 = arith.constant 0 : i32
    return %c0_i32, %c0_i32_0 : i32, i32
  }
  func.func @transform_4(%arg0: i32) -> (i32, i32) {
    %c0_i32 = arith.constant 0 : i32
    %c0_i32_0 = arith.constant 0 : i32
    return %arg0, %c0_i32 : i32, i32
  }
  func.func @transform_5(%arg0: i32) -> (i32, i32) {
    %c0_i32 = arith.constant 0 : i32
    %c0_i32_0 = arith.constant 0 : i32
    return %arg0, %c0_i32 : i32, i32
  }
}

module attributes {stable_mosaic.version = 11 : i64} {
  func.func @_tap_conv_kernel(%arg0: i32, %arg1: memref<1x48x32xbf16, #tpu.memory_space<vmem>>, %arg2: memref<3x32x32xbf16, #tpu.memory_space<vmem>>, %arg3: memref<1x32xf32, #tpu.memory_space<vmem>>, %arg4: memref<1x32xf32, #tpu.memory_space<vmem>>, %arg5: memref<1x32x32xbf16, #tpu.memory_space<vmem>>, %arg6: memref<1x32x32xbf16, #tpu.memory_space<vmem>>) attributes {dimension_semantics = [#tpu.dimension_semantics<parallel>], iteration_bounds = array<i64: 2>, scalar_prefetch = 0 : i64, scratch_operands = 0 : i64, tpu.core_type = #tpu.core_type<tc>, window_params = [{transform_indices = @transform_0, window_bounds = array<i64: 1, 48, 32>}, {pipeline_mode = #tpu.pipeline_mode<synchronous>, transform_indices = @transform_1, window_bounds = array<i64: 3, 32, 32>}, {pipeline_mode = #tpu.pipeline_mode<synchronous>, transform_indices = @transform_2, window_bounds = array<i64: 1, 32>}, {pipeline_mode = #tpu.pipeline_mode<synchronous>, transform_indices = @transform_3, window_bounds = array<i64: 1, 32>}, {transform_indices = @transform_4, window_bounds = array<i64: 1, 32, 32>}, {transform_indices = @transform_5, window_bounds = array<i64: 1, 32, 32>}]} {
    %c0 = arith.constant 0 : index
    %c0_0 = arith.constant 0 : index
    %c0_1 = arith.constant 0 : index
    %0 = vector.load %arg1[%c0, %c0_0, %c0_1] : memref<1x48x32xbf16, #tpu.memory_space<vmem>>, vector<1x32x32xbf16>
    %1 = vector.shape_cast %0 : vector<1x32x32xbf16> to vector<32x32xbf16>
    %c0_2 = arith.constant 0 : index
    %c0_3 = arith.constant 0 : index
    %c0_4 = arith.constant 0 : index
    %2 = vector.load %arg2[%c0_2, %c0_3, %c0_4] : memref<3x32x32xbf16, #tpu.memory_space<vmem>>, vector<1x32x32xbf16>
    %3 = vector.shape_cast %2 : vector<1x32x32xbf16> to vector<32x32xbf16>
    %cst = arith.constant dense<0.000000e+00> : vector<32x32xf32>
    %4 = tpu.matmul %1, %3, %cst {dimension_numbers = #tpu.dot_dimension_numbers<[1], [0], [0], [1], [0, 0, 1, 1], [], []>} : vector<32x32xbf16>, vector<32x32xbf16>, vector<32x32xf32> -> vector<32x32xf32>
    %c0_5 = arith.constant 0 : index
    %c8 = arith.constant 8 : index
    %c0_6 = arith.constant 0 : index
    %5 = vector.load %arg1[%c0_5, %c8, %c0_6] : memref<1x48x32xbf16, #tpu.memory_space<vmem>>, vector<1x32x32xbf16>
    %6 = vector.shape_cast %5 : vector<1x32x32xbf16> to vector<32x32xbf16>
    %c1 = arith.constant 1 : index
    %c0_7 = arith.constant 0 : index
    %c0_8 = arith.constant 0 : index
    %7 = vector.load %arg2[%c1, %c0_7, %c0_8] : memref<3x32x32xbf16, #tpu.memory_space<vmem>>, vector<1x32x32xbf16>
    %8 = vector.shape_cast %7 : vector<1x32x32xbf16> to vector<32x32xbf16>
    %cst_9 = arith.constant dense<0.000000e+00> : vector<32x32xf32>
    %9 = tpu.matmul %6, %8, %cst_9 {dimension_numbers = #tpu.dot_dimension_numbers<[1], [0], [0], [1], [0, 0, 1, 1], [], []>} : vector<32x32xbf16>, vector<32x32xbf16>, vector<32x32xf32> -> vector<32x32xf32>
    %10 = arith.addf %4, %9 : vector<32x32xf32>
    %c0_10 = arith.constant 0 : index
    %c16 = arith.constant 16 : index
    %c0_11 = arith.constant 0 : index
    %11 = vector.load %arg1[%c0_10, %c16, %c0_11] : memref<1x48x32xbf16, #tpu.memory_space<vmem>>, vector<1x32x32xbf16>
    %12 = vector.shape_cast %11 : vector<1x32x32xbf16> to vector<32x32xbf16>
    %c2 = arith.constant 2 : index
    %c0_12 = arith.constant 0 : index
    %c0_13 = arith.constant 0 : index
    %13 = vector.load %arg2[%c2, %c0_12, %c0_13] : memref<3x32x32xbf16, #tpu.memory_space<vmem>>, vector<1x32x32xbf16>
    %14 = vector.shape_cast %13 : vector<1x32x32xbf16> to vector<32x32xbf16>
    %cst_14 = arith.constant dense<0.000000e+00> : vector<32x32xf32>
    %15 = tpu.matmul %12, %14, %cst_14 {dimension_numbers = #tpu.dot_dimension_numbers<[1], [0], [0], [1], [0, 0, 1, 1], [], []>} : vector<32x32xbf16>, vector<32x32xbf16>, vector<32x32xf32> -> vector<32x32xf32>
    %16 = arith.addf %10, %15 : vector<32x32xf32>
    %c0_15 = arith.constant 0 : index
    %c0_16 = arith.constant 0 : index
    %17 = vector.load %arg3[%c0_15, %c0_16] : memref<1x32xf32, #tpu.memory_space<vmem>>, vector<1x32xf32>
    %18 = vector.broadcast %17 : vector<1x32xf32> to vector<32x32xf32>
    %19 = arith.mulf %16, %18 : vector<32x32xf32>
    %c0_17 = arith.constant 0 : index
    %c0_18 = arith.constant 0 : index
    %20 = vector.load %arg4[%c0_17, %c0_18] : memref<1x32xf32, #tpu.memory_space<vmem>>, vector<1x32xf32>
    %21 = vector.broadcast %20 : vector<1x32xf32> to vector<32x32xf32>
    %22 = arith.addf %19, %21 : vector<32x32xf32>
    %c0_19 = arith.constant 0 : index
    %c0_20 = arith.constant 0 : index
    %c0_21 = arith.constant 0 : index
    %23 = vector.load %arg5[%c0_19, %c0_20, %c0_21] : memref<1x32x32xbf16, #tpu.memory_space<vmem>>, vector<1x32x32xbf16>
    %24 = vector.shape_cast %23 : vector<1x32x32xbf16> to vector<32x32xbf16>
    %25 = arith.extf %24 : vector<32x32xbf16> to vector<32x32xf32>
    %26 = arith.addf %22, %25 : vector<32x32xf32>
    %cst_22 = arith.constant 0.000000e+00 : f32
    %27 = vector.broadcast %cst_22 : f32 to vector<32x32xf32>
    %28 = arith.cmpf oge, %26, %27 : vector<32x32xf32>
    %cst_23 = arith.constant 1.000000e-01 : f32
    %29 = vector.broadcast %cst_23 : f32 to vector<32x32xf32>
    %30 = arith.mulf %29, %26 : vector<32x32xf32>
    %31 = arith.select %28, %26, %30 : vector<32x32xi1>, vector<32x32xf32>
    %32 = arith.truncf %31 : vector<32x32xf32> to vector<32x32xbf16>
    %c0_24 = arith.constant 0 : index
    %c0_25 = arith.constant 0 : index
    %c0_26 = arith.constant 0 : index
    %33 = vector.load %arg6[%c0_24, %c0_25, %c0_26] : memref<1x32x32xbf16, #tpu.memory_space<vmem>>, vector<1x32x32xbf16>
    %34 = vector.shape_cast %33 : vector<1x32x32xbf16> to vector<32x32xbf16>
    %35 = vector.shape_cast %32 : vector<32x32xbf16> to vector<1x32x32xbf16>
    tpu.vector_store %arg6[%c0_24, %c0_25, %c0_26], %35 {strides = array<i32>} : memref<1x32x32xbf16, #tpu.memory_space<vmem>>, vector<1x32x32xbf16>,
    return
  }
  func.func @transform_0(%arg0: i32) -> (i32, i32, i32) {
    %c0_i32 = arith.constant 0 : i32
    %c0_i32_0 = arith.constant 0 : i32
    %c0_i32_1 = arith.constant 0 : i32
    return %arg0, %c0_i32, %c0_i32_0 : i32, i32, i32
  }
  func.func @transform_1(%arg0: i32) -> (i32, i32, i32) {
    %c0_i32 = arith.constant 0 : i32
    %c0_i32_0 = arith.constant 0 : i32
    %c0_i32_1 = arith.constant 0 : i32
    %c0_i32_2 = arith.constant 0 : i32
    return %c0_i32, %c0_i32_0, %c0_i32_1 : i32, i32, i32
  }
  func.func @transform_2(%arg0: i32) -> (i32, i32) {
    %c0_i32 = arith.constant 0 : i32
    %c0_i32_0 = arith.constant 0 : i32
    %c0_i32_1 = arith.constant 0 : i32
    return %c0_i32, %c0_i32_0 : i32, i32
  }
  func.func @transform_3(%arg0: i32) -> (i32, i32) {
    %c0_i32 = arith.constant 0 : i32
    %c0_i32_0 = arith.constant 0 : i32
    %c0_i32_1 = arith.constant 0 : i32
    return %c0_i32, %c0_i32_0 : i32, i32
  }
  func.func @transform_4(%arg0: i32) -> (i32, i32, i32) {
    %c0_i32 = arith.constant 0 : i32
    %c0_i32_0 = arith.constant 0 : i32
    %c0_i32_1 = arith.constant 0 : i32
    return %arg0, %c0_i32, %c0_i32_0 : i32, i32, i32
  }
  func.func @transform_5(%arg0: i32) -> (i32, i32, i32) {
    %c0_i32 = arith.constant 0 : i32
    %c0_i32_0 = arith.constant 0 : i32
    %c0_i32_1 = arith.constant 0 : i32
    return %arg0, %c0_i32, %c0_i32_0 : i32, i32, i32
  }
}

module attributes {stable_mosaic.version = 11 : i64} {
  func.func @_mm_kernel(%arg0: i32, %arg1: memref<64x32xbf16, #tpu.memory_space<vmem>>, %arg2: memref<32x32xbf16, #tpu.memory_space<vmem>>, %arg3: memref<1x32xf32, #tpu.memory_space<vmem>>, %arg4: memref<1x32xf32, #tpu.memory_space<vmem>>, %arg5: memref<64x32xbf16, #tpu.memory_space<vmem>>) attributes {dimension_semantics = [#tpu.dimension_semantics<parallel>], iteration_bounds = array<i64: 1>, scalar_prefetch = 0 : i64, scratch_operands = 0 : i64, tpu.core_type = #tpu.core_type<tc>, window_params = [{transform_indices = @transform_0, window_bounds = array<i64: 64, 32>}, {pipeline_mode = #tpu.pipeline_mode<synchronous>, transform_indices = @transform_1, window_bounds = array<i64: 32, 32>}, {pipeline_mode = #tpu.pipeline_mode<synchronous>, transform_indices = @transform_2, window_bounds = array<i64: 1, 32>}, {pipeline_mode = #tpu.pipeline_mode<synchronous>, transform_indices = @transform_3, window_bounds = array<i64: 1, 32>}, {transform_indices = @transform_4, window_bounds = array<i64: 64, 32>}]} {
    %c0 = arith.constant 0 : index
    %c0_0 = arith.constant 0 : index
    %0 = vector.load %arg1[%c0, %c0_0] : memref<64x32xbf16, #tpu.memory_space<vmem>>, vector<64x32xbf16>
    %c0_1 = arith.constant 0 : index
    %c0_2 = arith.constant 0 : index
    %1 = vector.load %arg2[%c0_1, %c0_2] : memref<32x32xbf16, #tpu.memory_space<vmem>>, vector<32x32xbf16>
    %cst = arith.constant dense<0.000000e+00> : vector<64x32xf32>
    %2 = tpu.matmul %0, %1, %cst {dimension_numbers = #tpu.dot_dimension_numbers<[1], [0], [0], [1], [0, 0, 1, 1], [], []>} : vector<64x32xbf16>, vector<32x32xbf16>, vector<64x32xf32> -> vector<64x32xf32>
    %c0_3 = arith.constant 0 : index
    %c0_4 = arith.constant 0 : index
    %3 = vector.load %arg3[%c0_3, %c0_4] : memref<1x32xf32, #tpu.memory_space<vmem>>, vector<1x32xf32>
    %4 = vector.broadcast %3 : vector<1x32xf32> to vector<64x32xf32>
    %5 = arith.mulf %2, %4 : vector<64x32xf32>
    %c0_5 = arith.constant 0 : index
    %c0_6 = arith.constant 0 : index
    %6 = vector.load %arg4[%c0_5, %c0_6] : memref<1x32xf32, #tpu.memory_space<vmem>>, vector<1x32xf32>
    %7 = vector.broadcast %6 : vector<1x32xf32> to vector<64x32xf32>
    %8 = arith.addf %5, %7 : vector<64x32xf32>
    %9 = arith.truncf %8 : vector<64x32xf32> to vector<64x32xbf16>
    %c0_7 = arith.constant 0 : index
    %c0_8 = arith.constant 0 : index
    %10 = vector.load %arg5[%c0_7, %c0_8] : memref<64x32xbf16, #tpu.memory_space<vmem>>, vector<64x32xbf16>
    tpu.vector_store %arg5[%c0_7, %c0_8], %9 {strides = array<i32>} : memref<64x32xbf16, #tpu.memory_space<vmem>>, vector<64x32xbf16>,
    return
  }
  func.func @transform_0(%arg0: i32) -> (i32, i32) {
    %c0_i32 = arith.constant 0 : i32
    %c0_i32_0 = arith.constant 0 : i32
    return %arg0, %c0_i32 : i32, i32
  }
  func.func @transform_1(%arg0: i32) -> (i32, i32) {
    %c0_i32 = arith.constant 0 : i32
    %c0_i32_0 = arith.constant 0 : i32
    %c0_i32_1 = arith.constant 0 : i32
    return %c0_i32, %c0_i32_0 : i32, i32
  }
  func.func @transform_2(%arg0: i32) -> (i32, i32) {
    %c0_i32 = arith.constant 0 : i32
    %c0_i32_0 = arith.constant 0 : i32
    %c0_i32_1 = arith.constant 0 : i32
    return %c0_i32, %c0_i32_0 : i32, i32
  }
  func.func @transform_3(%arg0: i32) -> (i32, i32) {
    %c0_i32 = arith.constant 0 : i32
    %c0_i32_0 = arith.constant 0 : i32
    %c0_i32_1 = arith.constant 0 : i32
    return %c0_i32, %c0_i32_0 : i32, i32
  }
  func.func @transform_4(%arg0: i32) -> (i32, i32) {
    %c0_i32 = arith.constant 0 : i32
    %c0_i32_0 = arith.constant 0 : i32
    return %arg0, %c0_i32 : i32, i32
  }
}

</mosaic_0001>

<llo_original>
// kernel: sttformer_forward.13
$region0: #{sttformer_forward.13}
  #allocation0 [shape = 'u32[]', space=smem, size = 0x4, offset = 0x4, fixed_abs, tag = 'smem constant byte address 0x4 - core index']
  #allocation1 [shape = 'u32[72,128]{1,0:T(1,128)}', space=vmem, size = 0x9000, scoped, tag = 'internal scratch']
  %s0 = inlined_call_operand.vmem [shape: f32[64,3], index: 0, kind: input, shape index: {}]
  %s1 = inlined_call_operand.vmem [shape: f32[3,16], index: 1, kind: input, shape index: {}]
  %s2 = inlined_call_operand.vmem [shape: f32[1,16], index: 2, kind: input, shape index: {}]
  %s3 = inlined_call_operand.vmem [shape: f32[1,16], index: 3, kind: input, shape index: {}]
  %s4 = inlined_call_operand.vmem [shape: bf16[64,16], index: 4, kind: output, shape index: {}]
  %s5 = sld [smem:[#allocation0]]
  $region26: #{sttformer_forward.13} parent=0
    _
  %s7 = ssub.s32 1, %s5
  %s8 = scalar_select 0, %s7, %s5
  // Predicated region
  $region2: #{sttformer_forward.13} parent=0 // pred_check
    _
  $region3: #{sttformer_forward.13} parent=0 // pred_check_branch
    %10 = sbr.rel (0) target = $region5
  $region4: #{sttformer_forward.13} parent=0 // pred_region
    _
  $region5: #{sttformer_forward.13} parent=0 // pred_fallthru
    _
  // Predicated region
  $region6: #{sttformer_forward.13} parent=0 // pred_check
    _
  $region7: #{sttformer_forward.13} parent=0 // pred_check_branch
    %12 = sbr.rel (0) target = $region9
  $region8: #{sttformer_forward.13} parent=0 // pred_region
    _
  $region9: #{sttformer_forward.13} parent=0 // pred_fallthru
    _
  // Predicated region
  $region10: #{sttformer_forward.13} parent=0 // pred_check
    _
  $region11: #{sttformer_forward.13} parent=0 // pred_check_branch
    %14 = sbr.rel (0) target = $region13
  $region12: #{sttformer_forward.13} parent=0 // pred_region
    _
  $region13: #{sttformer_forward.13} parent=0 // pred_fallthru
    _
  // Predicated region
  $region14: #{sttformer_forward.13} parent=0 // pred_check
    _
  $region15: #{sttformer_forward.13} parent=0 // pred_check_branch
    %16 = sbr.rel (0) target = $region17
  $region16: #{sttformer_forward.13} parent=0 // pred_region
    _
  $region17: #{sttformer_forward.13} parent=0 // pred_fallthru
    _
  %v17 = vld [vmem:[%s0] sm:$0xff]
  %v18 = vld [vmem:[%s0 + $0x8] sm:$0xff]
  %v19 = vld [vmem:[%s0 + $0x10] sm:$0xff]
  %v20 = vld [vmem:[%s0 + $0x18] sm:$0xff]
  %v21 = vld [vmem:[%s0 + $0x20] sm:$0xff]
  %v22 = vld [vmem:[%s0 + $0x28] sm:$0xff]
  %v23 = vld [vmem:[%s0 + $0x30] sm:$0xff]
  %v24 = vld [vmem:[%s0 + $0x38] sm:$0xff]
  %v25 = vld [vmem:[%s1] sm:$0x7]
  %vm26 = vcmask 23552
  %v28 = vsel %vm26, %v17, 0
  %v31 = vsel %vm26, %v18, 0
  %v34 = vsel %vm26, %v19, 0
  %v37 = vsel %vm26, %v20, 0
  %v40 = vsel %vm26, %v21, 0
  %v43 = vsel %vm26, %v22, 0
  %v46 = vsel %vm26, %v23, 0
  %v49 = vsel %vm26, %v24, 0
  %vm51 = vcmask 1042432
  %v53 = vsel %vm51, %v25, 0
  %55 = vmatpush.msra.mxu0 0.0
  %56 = vmatpush.msra.mxu0 0.0
  %57 = vmatpush.msra.mxu0 0.0
  %58 = vmatpush.msra.mxu0 0.0
  %59 = vmatpush.msra.mxu0 0.0
  %60 = vmatpush.msra.mxu0 0.0
  %61 = vmatpush.msra.mxu0 0.0
  %62 = vmatpush.msra.mxu0 0.0
  %63 = vmatpush.msra.mxu0 0.0
  %64 = vmatpush.msra.mxu0 0.0
  %65 = vmatpush.msra.mxu0 0.0
  %66 = vmatpush.msra.mxu0 0.0
  %67 = vmatpush.msra.mxu0 0.0
  %68 = vmatpush.msra.mxu0 0.0
  %69 = vmatpush.msra.mxu0 0.0
  %70 = vmatpush.msra.mxu0 %v53
  %71 = vmatmul.f32.gmra.mxu0 %v28
  %v72 = vpop.f32.mrf.mxu0
  %v73 = vadd.f32 0.0, %v72
  %74 = vmatmul.f32.gmra.mxu0 %v31
  %v75 = vpop.f32.mrf.mxu0
  %v76 = vadd.f32 0.0, %v75
  %77 = vmatmul.f32.gmra.mxu0 %v34
  %v78 = vpop.f32.mrf.mxu0
  %v79 = vadd.f32 0.0, %v78
  %80 = vmatmul.f32.gmra.mxu0 %v37
  %v81 = vpop.f32.mrf.mxu0
  %v82 = vadd.f32 0.0, %v81
  %83 = vmatmul.f32.gmra.mxu0 %v40
  %v84 = vpop.f32.mrf.mxu0
  %v85 = vadd.f32 0.0, %v84
  %86 = vmatmul.f32.gmra.mxu0 %v43
  %v87 = vpop.f32.mrf.mxu0
  %v88 = vadd.f32 0.0, %v87
  %89 = vmatmul.f32.gmra.mxu0 %v46
  %v90 = vpop.f32.mrf.mxu0
  %v91 = vadd.f32 0.0, %v90
  %92 = vmatmul.f32.gmra.mxu0 %v49
  %v93 = vpop.f32.mrf.mxu0
  %v94 = vadd.f32 0.0, %v93
  %95 = vdwg.mxu0
  %v96 = vld [vmem:[%s2] sm:$0x1]
  %v98 = vperm.slane %v96, 0
  %v100 = vmul.f32 %v73, %v98
  %v101 = vmul.f32 %v76, %v98
  %v102 = vmul.f32 %v79, %v98
  %v103 = vmul.f32 %v82, %v98
  %v104 = vmul.f32 %v85, %v98
  %v105 = vmul.f32 %v88, %v98
  %v106 = vmul.f32 %v91, %v98
  %v107 = vmul.f32 %v94, %v98
  %v108 = vld [vmem:[%s3] sm:$0x1]
  %v110 = vperm.slane %v108, 0
  %v112 = vadd.f32 %v100, %v110
  %v113 = vadd.f32 %v101, %v110
  %v114 = vadd.f32 %v102, %v110
  %v115 = vadd.f32 %v103, %v110
  %v116 = vadd.f32 %v104, %v110
  %v117 = vadd.f32 %v105, %v110
  %v118 = vadd.f32 %v106, %v110
  %v119 = vadd.f32 %v107, %v110
  %vm120 = vcmp.ge.f32.partialorder %v112, 0.0
  %vm121 = vcmp.ge.f32.partialorder %v113, 0.0
  %vm122 = vcmp.ge.f32.partialorder %v114, 0.0
  %vm123 = vcmp.ge.f32.partialorder %v115, 0.0
  %vm124 = vcmp.ge.f32.partialorder %v116, 0.0
  %vm125 = vcmp.ge.f32.partialorder %v117, 0.0
  %vm126 = vcmp.ge.f32.partialorder %v118, 0.0
  %vm127 = vcmp.ge.f32.partialorder %v119, 0.0
  %v128 = vmul.f32 %v112, 0.1
  %v129 = vmul.f32 %v113, 0.1
  %v130 = vmul.f32 %v114, 0.1
  %v131 = vmul.f32 %v115, 0.1
  %v132 = vmul.f32 %v116, 0.1
  %v133 = vmul.f32 %v117, 0.1
  %v134 = vmul.f32 %v118, 0.1
  %v135 = vmul.f32 %v119, 0.1
  %v136 = vsel %vm120, %v112, %v128
  %v137 = vsel %vm121, %v113, %v129
  %v138 = vsel %vm122, %v114, %v130
  %v139 = vsel %vm123, %v115, %v131
  %v140 = vsel %vm124, %v116, %v132
  %v141 = vsel %vm125, %v117, %v133
  %v142 = vsel %vm126, %v118, %v134
  %v143 = vsel %vm127, %v119, %v135
  %v144 = vpack.c.bf16 %v136, %v136
  %v145 = vpack.c.bf16 %v137, %v137
  %v146 = vpack.c.bf16 %v138, %v138
  %v147 = vpack.c.bf16 %v139, %v139
  %v148 = vpack.c.bf16 %v140, %v140
  %v149 = vpack.c.bf16 %v141, %v141
  %v150 = vpack.c.bf16 %v142, %v142
  %v151 = vpack.c.bf16 %v143, %v143
  %vm152 = vcmask 125952
  %153 = vst.msk [vmem:[%s4] sm:$0xf] %vm152, %v144
  %154 = vst.msk [vmem:[%s4 + $0x4] sm:$0xf] %vm152, %v145
  %155 = vst.msk [vmem:[%s4 + $0x8] sm:$0xf] %vm152, %v146
  %156 = vst.msk [vmem:[%s4 + $0xc] sm:$0xf] %vm152, %v147
  %157 = vst.msk [vmem:[%s4 + $0x10] sm:$0xf] %vm152, %v148
  %158 = vst.msk [vmem:[%s4 + $0x14] sm:$0xf] %vm152, %v149
  %159 = vst.msk [vmem:[%s4 + $0x18] sm:$0xf] %vm152, %v150
  %160 = vst.msk [vmem:[%s4 + $0x1c] sm:$0xf] %vm152, %v151
  // Predicated region
  $region18: #{sttformer_forward.13} parent=0 // pred_check
    _
  $region19: #{sttformer_forward.13} parent=0 // pred_check_branch
    %162 = sbr.rel (0) target = $region21
  $region20: #{sttformer_forward.13} parent=0 // pred_region
    _
  $region21: #{sttformer_forward.13} parent=0 // pred_fallthru
    _
  // Predicated region
  $region22: #{sttformer_forward.13} parent=0 // pred_check
    _
  $region23: #{sttformer_forward.13} parent=0 // pred_check_branch
    %164 = sbr.rel (0) target = $region25
  $region24: #{sttformer_forward.13} parent=0 // pred_region
    _
  $region25: #{sttformer_forward.13} parent=0 // pred_fallthru
    _

// kernel: sttformer_forward.14
$region0: #{sttformer_forward.14}
  #allocation0 [shape = 'u32[]', space=smem, size = 0x4, offset = 0x4, fixed_abs, tag = 'smem constant byte address 0x4 - core index']
  #allocation1 [shape = 'u32[72,128]{1,0:T(1,128)}', space=vmem, size = 0x9000, scoped, tag = 'internal scratch']
  %s0 = inlined_call_operand.vmem [shape: bf16[64,16], index: 0, kind: input, shape index: {}]
  %s1 = inlined_call_operand.vmem [shape: bf16[16,32], index: 1, kind: input, shape index: {}]
  %s2 = inlined_call_operand.vmem [shape: f32[1,32], index: 2, kind: input, shape index: {}]
  %s3 = inlined_call_operand.vmem [shape: f32[1,32], index: 3, kind: input, shape index: {}]
  %s4 = inlined_call_operand.vmem [shape: bf16[64,32], index: 4, kind: output, shape index: {}]
  %s5 = sld [smem:[#allocation0]]
  $region26: #{sttformer_forward.14} parent=0
    _
  %s7 = ssub.s32 1, %s5
  %s8 = scalar_select 0, %s7, %s5
  // Predicated region
  $region2: #{sttformer_forward.14} parent=0 // pred_check
    _
  $region3: #{sttformer_forward.14} parent=0 // pred_check_branch
    %10 = sbr.rel (0) target = $region5
  $region4: #{sttformer_forward.14} parent=0 // pred_region
    _
  $region5: #{sttformer_forward.14} parent=0 // pred_fallthru
    _
  // Predicated region
  $region6: #{sttformer_forward.14} parent=0 // pred_check
    _
  $region7: #{sttformer_forward.14} parent=0 // pred_check_branch
    %12 = sbr.rel (0) target = $region9
  $region8: #{sttformer_forward.14} parent=0 // pred_region
    _
  $region9: #{sttformer_forward.14} parent=0 // pred_fallthru
    _
  // Predicated region
  $region10: #{sttformer_forward.14} parent=0 // pred_check
    _
  $region11: #{sttformer_forward.14} parent=0 // pred_check_branch
    %14 = sbr.rel (0) target = $region13
  $region12: #{sttformer_forward.14} parent=0 // pred_region
    _
  $region13: #{sttformer_forward.14} parent=0 // pred_fallthru
    _
  // Predicated region
  $region14: #{sttformer_forward.14} parent=0 // pred_check
    _
  $region15: #{sttformer_forward.14} parent=0 // pred_check_branch
    %16 = sbr.rel (0) target = $region17
  $region16: #{sttformer_forward.14} parent=0 // pred_region
    _
  $region17: #{sttformer_forward.14} parent=0 // pred_fallthru
    _
  %v18 = vld [vmem:[%s0] sm:$0xf]
  %v19 = vld [vmem:[%s0 + $0x4] sm:$0xf]
  %v20 = vld [vmem:[%s0 + $0x8] sm:$0xf]
  %v21 = vld [vmem:[%s0 + $0xc] sm:$0xf]
  %v22 = vld [vmem:[%s0 + $0x10] sm:$0xf]
  %v23 = vld [vmem:[%s0 + $0x14] sm:$0xf]
  %v24 = vld [vmem:[%s0 + $0x18] sm:$0xf]
  %v25 = vld [vmem:[%s0 + $0x1c] sm:$0xf]
  %v26 = vld [vmem:[%s1] sm:$0xf]
  %v27 = vld [vmem:[%s1 + $0x4] sm:$0xf]
  %v36 = vunpack.c.l.b16 %v18
  %v37 = vunpack.c.l.b16 %v19
  %v38 = vunpack.c.l.b16 %v20
  %v39 = vunpack.c.l.b16 %v21
  %v40 = vunpack.c.l.b16 %v22
  %v41 = vunpack.c.l.b16 %v23
  %v42 = vunpack.c.l.b16 %v24
  %v43 = vunpack.c.l.b16 %v25
  %v44 = vpack.c.b16 %v37, %v36
  %v45 = vpack.c.b16 %v39, %v38
  %v46 = vpack.c.b16 %v41, %v40
  %v47 = vpack.c.b16 %v43, %v42
  %v50 = vunpack.c.l.b16 %v26
  %v51 = vunpack.c.l.b16 %v27
  %v52 = vpack.c.b16 %v51, %v50
  %vm54 = vcmask 130048
  %v56 = vsel %vm54, %v44, 0
  %v59 = vsel %vm54, %v45, 0
  %v62 = vsel %vm54, %v46, 0
  %v65 = vsel %vm54, %v47, 0
  %67 = vmatpush.bf16.msra.mxu0 0
  %68 = vmatpush.bf16.msra.mxu0 0
  %69 = vmatpush.bf16.msra.mxu0 0
  %70 = vmatpush.bf16.msra.mxu0 0
  %71 = vmatpush.bf16.msra.mxu0 0
  %72 = vmatpush.bf16.msra.mxu0 0
  %73 = vmatpush.bf16.msra.mxu0 0
  %74 = vmatpush.bf16.msra.mxu0 %v52
  %75 = vmatmul.bf16.gmra.mxu0 %v56
  %v76 = vpop.f32.mrf.mxu0
  %v77 = vadd.f32 0.0, %v76
  %v78 = vpop.f32.mrf.mxu0
  %v79 = vadd.f32 0.0, %v78
  %80 = vmatmul.bf16.gmra.mxu0 %v59
  %v81 = vpop.f32.mrf.mxu0
  %v82 = vadd.f32 0.0, %v81
  %v83 = vpop.f32.mrf.mxu0
  %v84 = vadd.f32 0.0, %v83
  %85 = vmatmul.bf16.gmra.mxu0 %v62
  %v86 = vpop.f32.mrf.mxu0
  %v87 = vadd.f32 0.0, %v86
  %v88 = vpop.f32.mrf.mxu0
  %v89 = vadd.f32 0.0, %v88
  %90 = vmatmul.bf16.gmra.mxu0 %v65
  %v91 = vpop.f32.mrf.mxu0
  %v92 = vadd.f32 0.0, %v91
  %v93 = vpop.f32.mrf.mxu0
  %v94 = vadd.f32 0.0, %v93
  %95 = vdwg.mxu0
  %v96 = vld [vmem:[%s2] sm:$0x1]
  %v98 = vperm.slane %v96, 0
  %v100 = vmul.f32 %v77, %v98
  %v101 = vmul.f32 %v79, %v98
  %v102 = vmul.f32 %v82, %v98
  %v103 = vmul.f32 %v84, %v98
  %v104 = vmul.f32 %v87, %v98
  %v105 = vmul.f32 %v89, %v98
  %v106 = vmul.f32 %v92, %v98
  %v107 = vmul.f32 %v94, %v98
  %v108 = vld [vmem:[%s3] sm:$0x1]
  %v110 = vperm.slane %v108, 0
  %v112 = vadd.f32 %v100, %v110
  %v113 = vadd.f32 %v101, %v110
  %v114 = vadd.f32 %v102, %v110
  %v115 = vadd.f32 %v103, %v110
  %v116 = vadd.f32 %v104, %v110
  %v117 = vadd.f32 %v105, %v110
  %v118 = vadd.f32 %v106, %v110
  %v119 = vadd.f32 %v107, %v110
  %v120 = vpack.c.bf16 %v112, %v112
  %v121 = vpack.c.bf16 %v113, %v113
  %v122 = vpack.c.bf16 %v114, %v114
  %v123 = vpack.c.bf16 %v115, %v115
  %v124 = vpack.c.bf16 %v116, %v116
  %v125 = vpack.c.bf16 %v117, %v117
  %v126 = vpack.c.bf16 %v118, %v118
  %v127 = vpack.c.bf16 %v119, %v119
  %vm128 = vcmask 257024
  %129 = vst.msk [vmem:[%s4] sm:$0xf] %vm128, %v120
  %130 = vst.msk [vmem:[%s4 + $0x4] sm:$0xf] %vm128, %v121
  %131 = vst.msk [vmem:[%s4 + $0x8] sm:$0xf] %vm128, %v122
  %132 = vst.msk [vmem:[%s4 + $0xc] sm:$0xf] %vm128, %v123
  %133 = vst.msk [vmem:[%s4 + $0x10] sm:$0xf] %vm128, %v124
  %134 = vst.msk [vmem:[%s4 + $0x14] sm:$0xf] %vm128, %v125
  %135 = vst.msk [vmem:[%s4 + $0x18] sm:$0xf] %vm128, %v126
  %136 = vst.msk [vmem:[%s4 + $0x1c] sm:$0xf] %vm128, %v127
  // Predicated region
  $region18: #{sttformer_forward.14} parent=0 // pred_check
    _
  $region19: #{sttformer_forward.14} parent=0 // pred_check_branch
    %138 = sbr.rel (0) target = $region21
  $region20: #{sttformer_forward.14} parent=0 // pred_region
    _
  $region21: #{sttformer_forward.14} parent=0 // pred_fallthru
    _
  // Predicated region
  $region22: #{sttformer_forward.14} parent=0 // pred_check
    _
  $region23: #{sttformer_forward.14} parent=0 // pred_check_branch
    %140 = sbr.rel (0) target = $region25
  $region24: #{sttformer_forward.14} parent=0 // pred_region
    _
  $region25: #{sttformer_forward.14} parent=0 // pred_fallthru
    _

// kernel: sttformer_forward.15
$region0: #{sttformer_forward.15}
  #allocation0 [shape = 'u32[]', space=smem, size = 0x4, offset = 0x4, fixed_abs, tag = 'smem constant byte address 0x4 - core index']
  #allocation1 [shape = 'u32[72,128]{1,0:T(1,128)}', space=vmem, size = 0x9000, scoped, tag = 'internal scratch']
  %s0 = inlined_call_operand.vmem [shape: bf16[2,2,8,32], index: 0, kind: input, shape index: {}]
  %s1 = inlined_call_operand.vmem [shape: bf16[2,2,8,32], index: 1, kind: input, shape index: {}]
  %s2 = inlined_call_operand.vmem [shape: f32[2,1,1], index: 2, kind: input, shape index: {}]
  %s3 = inlined_call_operand.vmem [shape: f32[2,8,8], index: 3, kind: input, shape index: {}]
  %s4 = inlined_call_operand.vmem [shape: bf16[2,4,8,16], index: 4, kind: input, shape index: {}]
  %s5 = inlined_call_operand.vmem [shape: bf16[2,4,8,32], index: 5, kind: output, shape index: {}]
  %s6 = sld [smem:[#allocation0]]
  $region53: #{sttformer_forward.15} parent=0
    _
  %s8 = ssub.s32 1, %s6
  %s9 = scalar_select 0, %s8, %s6
  loop: start=0, step=1, limit=4
  $region2: #{sttformer_forward.15} parent=0 // loop_pre_header
    _
  $region3: #{sttformer_forward.15} parent=0 // loop_header
    %s11 = sphi 0, %s15
    %p12 = scmp.ge.s32.totalorder %s11, 4
    %s21 = sphi 0, %s23
    %s24 = sphi 0, %s21
    %s25 = sphi 0, %s24
    %s41 = sphi 0, %s25
    %s47 = sphi 0, %s49
    %s50 = sphi 0, %s47
    %s51 = sphi 0, %s50
    %s67 = sphi 0, %s51
    %s71 = sphi 0, %s71
    %s73 = sphi 0, %s71
    %s74 = sphi 0, %s73
    %s88 = sphi 0, %s74
    %s92 = sphi 0, %s92
    %s94 = sphi 0, %s92
    %s95 = sphi 0, %s94
    %s109 = sphi 0, %s95
    %s115 = sphi 0, %s117
    %s118 = sphi 0, %s115
    %s119 = sphi 0, %s118
    %s135 = sphi 0, %s119
    %s141 = sphi 0, %s143
    %s144 = sphi 0, %s141
    %s145 = sphi 0, %s144
    %s161 = sphi 0, %s145
  $region4: #{sttformer_forward.15} parent=0 // loop_header_branch
    %14 = sbr.rel (%p12) target = $region8
  $region5: #{sttformer_forward.15} parent=0 // loop_body
    %s16 = ssub.s32 %s11, 1
    %s17 = ssub.s32 %s11, 2
    %s18 = sadd.s32 %s11, 1
    %s19 = ssub.s32 %s11, %s18
    %p20 = scmp.eq.s32.totalorder %s19, 0
    %s22 = sadd.s32 %s21, 1
    %s23 = scalar_select %p20, %s21, %s22
    %p26 = pneg %p20
    %p27 = scmp.eq.s32.totalorder %s11, 1
    %p28 = por %p26, %p27
    %p29 = scmp.ne.s32.totalorder %s21, %s24
    %p30 = scmp.eq.s32.totalorder %s11, 0
    %p31 = por %p29, %p30
    %p32 = scmp.ne.s32.totalorder %s21, %s24
    %p33 = scmp.eq.s32.totalorder %s16, 1
    %p34 = por %p32, %p33
    %p35 = scmp.ne.s32.totalorder %s24, %s25
    %p36 = scmp.eq.s32.totalorder %s16, 0
    %p37 = por %p35, %p36
    %p38 = scmp.ne.s32.totalorder %s24, %s25
    %p39 = scmp.eq.s32.totalorder %s17, 1
    %p40 = por %p38, %p39
    %p42 = scmp.ne.s32.totalorder %s25, %s41
    %p43 = scmp.eq.s32.totalorder %s17, 0
    %p44 = por %p42, %p43
    %s45 = ssub.s32 %s11, %s18
    %p46 = scmp.eq.s32.totalorder %s45, 0
    %s48 = sadd.s32 %s47, 1
    %s49 = scalar_select %p46, %s47, %s48
    %p52 = pneg %p46
    %p53 = scmp.eq.s32.totalorder %s11, 1
    %p54 = por %p52, %p53
    %p55 = scmp.ne.s32.totalorder %s47, %s50
    %p56 = scmp.eq.s32.totalorder %s11, 0
    %p57 = por %p55, %p56
    %p58 = scmp.ne.s32.totalorder %s47, %s50
    %p59 = scmp.eq.s32.totalorder %s16, 1
    %p60 = por %p58, %p59
    %p61 = scmp.ne.s32.totalorder %s50, %s51
    %p62 = scmp.eq.s32.totalorder %s16, 0
    %p63 = por %p61, %p62
    %p64 = scmp.ne.s32.totalorder %s50, %s51
    %p65 = scmp.eq.s32.totalorder %s17, 1
    %p66 = por %p64, %p65
    %p68 = scmp.ne.s32.totalorder %s51, %s67
    %p69 = scmp.eq.s32.totalorder %s17, 0
    %p70 = por %p68, %p69
    %s72 = sadd.s32 %s71, 1
    %p75 = scmp.eq.s32.totalorder %s11, 1
    %p76 = scmp.ne.s32.totalorder %s71, %s73
    %p77 = scmp.eq.s32.totalorder %s11, 0
    %p78 = por %p76, %p77
    %p79 = scmp.ne.s32.totalorder %s71, %s73
    %p80 = scmp.eq.s32.totalorder %s16, 1
    %p81 = por %p79, %p80
    %p82 = scmp.ne.s32.totalorder %s73, %s74
    %p83 = scmp.eq.s32.totalorder %s16, 0
    %p84 = por %p82, %p83
    %p85 = scmp.ne.s32.totalorder %s73, %s74
    %p86 = scmp.eq.s32.totalorder %s17, 1
    %p87 = por %p85, %p86
    %p89 = scmp.ne.s32.totalorder %s74, %s88
    %p90 = scmp.eq.s32.totalorder %s17, 0
    %p91 = por %p89, %p90
    %s93 = sadd.s32 %s92, 1
    %p96 = scmp.eq.s32.totalorder %s11, 1
    %p97 = scmp.ne.s32.totalorder %s92, %s94
    %p98 = scmp.eq.s32.totalorder %s11, 0
    %p99 = por %p97, %p98
    %p100 = scmp.ne.s32.totalorder %s92, %s94
    %p101 = scmp.eq.s32.totalorder %s16, 1
    %p102 = por %p100, %p101
    %p103 = scmp.ne.s32.totalorder %s94, %s95
    %p104 = scmp.eq.s32.totalorder %s16, 0
    %p105 = por %p103, %p104
    %p106 = scmp.ne.s32.totalorder %s94, %s95
    %p107 = scmp.eq.s32.totalorder %s17, 1
    %p108 = por %p106, %p107
    %p110 = scmp.ne.s32.totalorder %s95, %s109
    %p111 = scmp.eq.s32.totalorder %s17, 0
    %p112 = por %p110, %p111
    %s113 = ssub.s32 %s11, %s18
    %p114 = scmp.eq.s32.totalorder %s113, 0
    %s116 = sadd.s32 %s115, 1
    %s117 = scalar_select %p114, %s115, %s116
    %p120 = pneg %p114
    %p121 = scmp.eq.s32.totalorder %s11, 1
    %p122 = por %p120, %p121
    %p123 = scmp.ne.s32.totalorder %s115, %s118
    %p124 = scmp.eq.s32.totalorder %s11, 0
    %p125 = por %p123, %p124
    %p126 = scmp.ne.s32.totalorder %s115, %s118
    %p127 = scmp.eq.s32.totalorder %s16, 1
    %p128 = por %p126, %p127
    %p129 = scmp.ne.s32.totalorder %s118, %s119
    %p130 = scmp.eq.s32.totalorder %s16, 0
    %p131 = por %p129, %p130
    %p132 = scmp.ne.s32.totalorder %s118, %s119
    %p133 = scmp.eq.s32.totalorder %s17, 1
    %p134 = por %p132, %p133
    %p136 = scmp.ne.s32.totalorder %s119, %s135
    %p137 = scmp.eq.s32.totalorder %s17, 0
    %p138 = por %p136, %p137
    %s139 = ssub.s32 %s11, %s18
    %p140 = scmp.eq.s32.totalorder %s139, 0
    %s142 = sadd.s32 %s141, 1
    %s143 = scalar_select %p140, %s141, %s142
    %p146 = pneg %p140
    %p147 = scmp.eq.s32.totalorder %s11, 1
    %p148 = por %p146, %p147
    %p149 = scmp.ne.s32.totalorder %s141, %s144
    %p150 = scmp.eq.s32.totalorder %s11, 0
    %p151 = por %p149, %p150
    %p152 = scmp.ne.s32.totalorder %s141, %s144
    %p153 = scmp.eq.s32.totalorder %s16, 1
    %p154 = por %p152, %p153
    %p155 = scmp.ne.s32.totalorder %s144, %s145
    %p156 = scmp.eq.s32.totalorder %s16, 0
    %p157 = por %p155, %p156
    %p158 = scmp.ne.s32.totalorder %s144, %s145
    %p159 = scmp.eq.s32.totalorder %s17, 1
    %p160 = por %p158, %p159
    %p162 = scmp.ne.s32.totalorder %s145, %s161
    %p163 = scmp.eq.s32.totalorder %s17, 0
    %p164 = por %p162, %p163
    %p165 = scmp.le.s32.totalorder 1, %s11
    %p166 = scmp.lt.s32.totalorder %s11, 3
    %p167 = pnand %p165, %p166
    %p168 = pneg %p167
    // Predicated region
    $region9: #{sttformer_forward.15} parent=5 // pred_check
      _
    $region10: #{sttformer_forward.15} parent=5 // pred_check_branch
      %170 = sbr.rel (%p167) target = $region12
    $region11: #{sttformer_forward.15} parent=5 // pred_region
      %s171 = ssub.s32 %s11, 1
      // Predicated region
      $region13: #{sttformer_forward.15} parent=11 // pred_check
        %p172 = pneg %p84
      $region14: #{sttformer_forward.15} parent=11 // pred_check_branch
        %174 = sbr.rel (%p172) target = $region16
      $region15: #{sttformer_forward.15} parent=11 // pred_region
        _
      $region16: #{sttformer_forward.15} parent=11 // pred_fallthru
        _
      // Predicated region
      $region17: #{sttformer_forward.15} parent=11 // pred_check
        %p175 = pneg %p105
      $region18: #{sttformer_forward.15} parent=11 // pred_check_branch
        %177 = sbr.rel (%p175) target = $region20
      $region19: #{sttformer_forward.15} parent=11 // pred_region
        _
      $region20: #{sttformer_forward.15} parent=11 // pred_fallthru
        _
    $region12: #{sttformer_forward.15} parent=5 // pred_fallthru
      _
    %p178 = scmp.lt.s32.totalorder %s11, 2
    // Predicated region
    $region21: #{sttformer_forward.15} parent=5 // pred_check
      %p179 = pneg %p178
    $region22: #{sttformer_forward.15} parent=5 // pred_check_branch
      %181 = sbr.rel (%p179) target = $region24
    $region23: #{sttformer_forward.15} parent=5 // pred_region
      // Predicated region
      $region25: #{sttformer_forward.15} parent=23 // pred_check
        %p182 = pneg %p31
      $region26: #{sttformer_forward.15} parent=23 // pred_check_branch
        %184 = sbr.rel (%p182) target = $region28
      $region27: #{sttformer_forward.15} parent=23 // pred_region
        %p185 = scmp.lt.s32.totalorder %s11, 1
        %s186 = scalar_select %p185, %s11, 1
        %s187 = smul.addr %s186, 2
        %s188 = smul.addr %s187, 4
        %s189 = scalar_lea.vmem %s0, %s188
      $region28: #{sttformer_forward.15} parent=23 // pred_fallthru
        _
      // Predicated region
      $region29: #{sttformer_forward.15} parent=23 // pred_check
        %p190 = pneg %p57
      $region30: #{sttformer_forward.15} parent=23 // pred_check_branch
        %192 = sbr.rel (%p190) target = $region32
      $region31: #{sttformer_forward.15} parent=23 // pred_region
        %p193 = scmp.lt.s32.totalorder %s11, 1
        %s194 = scalar_select %p193, %s11, 1
        %s195 = smul.addr %s194, 2
        %s196 = smul.addr %s195, 4
        %s197 = scalar_lea.vmem %s1, %s196
      $region32: #{sttformer_forward.15} parent=23 // pred_fallthru
        _
      // Predicated region
      $region33: #{sttformer_forward.15} parent=23 // pred_check
        %p198 = pneg %p125
      $region34: #{sttformer_forward.15} parent=23 // pred_check_branch
        %200 = sbr.rel (%p198) target = $region36
      $region35: #{sttformer_forward.15} parent=23 // pred_region
        %p201 = scmp.lt.s32.totalorder %s11, 1
        %s202 = scalar_select %p201, %s11, 1
        %s203 = smul.addr %s202, 4
        %s204 = smul.addr %s203, 4
        %s205 = scalar_lea.vmem %s4, %s204
      $region36: #{sttformer_forward.15} parent=23 // pred_fallthru
        _
    $region24: #{sttformer_forward.15} parent=5 // pred_fallthru
      _
    %p206 = scmp.le.s32.totalorder 1, %s11
    %p207 = scmp.lt.s32.totalorder %s11, 3
    %p208 = pnand %p206, %p207
    %p209 = pneg %p208
    // Predicated region
    $region37: #{sttformer_forward.15} parent=5 // pred_check
      _
    $region38: #{sttformer_forward.15} parent=5 // pred_check_branch
      %211 = sbr.rel (%p208) target = $region40
    $region39: #{sttformer_forward.15} parent=5 // pred_region
      %s212 = ssub.s32 %s11, 1
      %p213 = scmp.lt.s32.totalorder %s16, 1
      %s214 = scalar_select %p213, %s16, 1
      %s215 = smul.addr %s214, 2
      %s216 = smul.addr %s215, 4
      %s217 = scalar_lea.vmem %s0, %s216
      %p218 = pneg %p37
      %p219 = pneg %p34
      %p220 = scmp.lt.s32.totalorder %s16, 1
      %s221 = scalar_select %p220, %s16, 1
      %s222 = smul.addr %s221, 2
      %s223 = smul.addr %s222, 4
      %s224 = scalar_lea.vmem %s1, %s223
      %p225 = pneg %p63
      %p226 = pneg %p60
      %p227 = pneg %p84
      %p228 = pneg %p81
      %p229 = pneg %p105
      %p230 = pneg %p102
      %p231 = scmp.lt.s32.totalorder %s16, 1
      %s232 = scalar_select %p231, %s16, 1
      %s233 = smul.addr %s232, 4
      %s234 = smul.addr %s233, 4
      %s235 = scalar_lea.vmem %s4, %s234
      %p236 = pneg %p131
      %p237 = pneg %p128
      %p238 = pneg %p157
      %p239 = pneg %p154
      %p240 = scmp.lt.s32.totalorder %s16, 1
      %s241 = scalar_select %p240, %s16, 1
      %s242 = smul.addr %s241, 4
      %s243 = smul.addr %s242, 4
      %s244 = scalar_lea.vmem %s5, %s243
      %p245 = scmp.lt.s32.totalorder %s16, 1
      %s246 = scalar_select %p245, %s16, 1
      %s247 = smul.addr %s246, 2
      %s248 = smul.addr %s247, 4
      %s249 = scalar_lea.vmem %s0, %s248
      %p250 = scmp.lt.s32.totalorder %s16, 1
      %s251 = scalar_select %p250, %s16, 1
      %s252 = smul.addr %s251, 2
      %s253 = smul.addr %s252, 4
      %s254 = scalar_lea.vmem %s1, %s253
      %p255 = scmp.lt.s32.totalorder %s16, 1
      %s256 = scalar_select %p255, %s16, 1
      %s257 = smul.addr %s256, 4
      %s258 = smul.addr %s257, 4
      %s259 = scalar_lea.vmem %s4, %s258
      %p260 = scmp.lt.s32.totalorder %s16, 1
      %s261 = scalar_select %p260, %s16, 1
      %s262 = smul.addr %s261, 4
      %s263 = smul.addr %s262, 4
      %s264 = scalar_lea.vmem %s5, %s263
      %v266 = vld [vmem:[%s249] sm:$0xf]
      %v267 = vld [vmem:[%s249 + $0x4] sm:$0xf]
      %v268 = vld [vmem:[%s254] sm:$0xf]
      %v269 = vld [vmem:[%s254 + $0x4] sm:$0xf]
      %vm270 = vcmask 261120
      %v272 = vsel %vm270, %v268, 0
      %v275 = vsel %vm270, %v266, 0
      %277 = vmatpush.bf16.xpose.msra.mxu0 0
      %278 = vmatpush.bf16.xpose.msra.mxu0 0
      %279 = vmatpush.bf16.xpose.msra.mxu0 0
      %280 = vmatpush.bf16.xpose.msra.mxu0 0
      %281 = vmatpush.bf16.xpose.msra.mxu0 0
      %282 = vmatpush.bf16.xpose.msra.mxu0 0
      %283 = vmatpush.bf16.xpose.msra.mxu0 0
      %284 = vmatpush.bf16.xpose.msra.mxu0 %v275
      %285 = vmatmul.bf16.gmra.mxu0 %v272
      %v286 = vpop.f32.mrf.mxu0
      %v287 = vadd.f32 0.0, %v286
      %v288 = vpop.f32.mrf.mxu0
      %289 = vdwg.mxu0
      %v291 = vsel %vm270, %v269, 0
      %v294 = vsel %vm270, %v267, 0
      %296 = vmatpush.bf16.xpose.msra.mxu0 0
      %297 = vmatpush.bf16.xpose.msra.mxu0 0
      %298 = vmatpush.bf16.xpose.msra.mxu0 0
      %299 = vmatpush.bf16.xpose.msra.mxu0 0
      %300 = vmatpush.bf16.xpose.msra.mxu0 0
      %301 = vmatpush.bf16.xpose.msra.mxu0 0
      %302 = vmatpush.bf16.xpose.msra.mxu0 0
      %303 = vmatpush.bf16.xpose.msra.mxu0 %v294
      %304 = vmatmul.bf16.gmra.mxu0 %v291
      %v305 = vpop.f32.mrf.mxu0
      %v306 = vadd.f32 0.0, %v305
      %v307 = vpop.f32.mrf.mxu0
      %308 = vdwg.mxu0
      %v309 = vmul.f32 %v287, 0.03125
      %v310 = vmul.f32 %v306, 0.03125
      %v311 = vtanh.pop %v309
      %v312 = vtanh.pop %v310
      %v313 = vld [vmem:[%s2] sm:$0x1]
      %v314 = vld [vmem:[%s2 + $0x1] sm:$0x1]
      %v317 = vperm.slane %v313, 0
      %v318 = vperm.slane %v314, 0
      %319 = vset.pattern.permute.xlu0 0
      %320 = vperm.xlu0 %319, %v317
      %v321 = vpop.permute.xlu0 %320
      %323 = vset.pattern.permute.xlu0 0
      %324 = vperm.xlu0 %323, %v318
      %v325 = vpop.permute.xlu0 %324
      %v327 = vmul.f32 %v311, %v321
      %v328 = vmul.f32 %v312, %v325
      %v329 = vld [vmem:[%s3] sm:$0xff]
      %v330 = vld [vmem:[%s3 + $0x8] sm:$0xff]
      %v331 = vadd.f32 %v327, %v329
      %v332 = vadd.f32 %v328, %v330
      %v333 = vpack.c.bf16 %v331, %v331
      %v334 = vpack.c.bf16 %v332, %v332
      %v335 = vld [vmem:[%s259] sm:$0xf]
      %v336 = vld [vmem:[%s259 + $0x4] sm:$0xf]
      %v337 = vld [vmem:[%s259 + $0x8] sm:$0xf]
      %v338 = vld [vmem:[%s259 + $0xc] sm:$0xf]
      %vm339 = vcmask 64512
      %v341 = vsel %vm339, %v333, 0
      %vm343 = vcmask 1043456
      %v345 = vsel %vm343, %v335, 0
      %347 = vmatpush.bf16.msra.mxu0 0
      %348 = vmatpush.bf16.msra.mxu0 0
      %349 = vmatpush.bf16.msra.mxu0 0
      %350 = vmatpush.bf16.msra.mxu0 0
      %351 = vmatpush.bf16.msra.mxu0 0
      %352 = vmatpush.bf16.msra.mxu0 0
      %353 = vmatpush.bf16.msra.mxu0 0
      %354 = vmatpush.bf16.msra.mxu0 %v345
      %355 = vmatmul.bf16.gmra.mxu0 %v341
      %v356 = vpop.f32.mrf.mxu0
      %v357 = vadd.f32 0.0, %v356
      %v358 = vpop.f32.mrf.mxu0
      %359 = vdwg.mxu0
      %v361 = vsel %vm343, %v336, 0
      %363 = vmatpush.bf16.msra.mxu0 0
      %364 = vmatpush.bf16.msra.mxu0 0
      %365 = vmatpush.bf16.msra.mxu0 0
      %366 = vmatpush.bf16.msra.mxu0 0
      %367 = vmatpush.bf16.msra.mxu0 0
      %368 = vmatpush.bf16.msra.mxu0 0
      %369 = vmatpush.bf16.msra.mxu0 0
      %370 = vmatpush.bf16.msra.mxu0 %v361
      %371 = vmatmul.bf16.gmra.mxu0 %v341
      %v372 = vpop.f32.mrf.mxu0
      %v373 = vadd.f32 0.0, %v372
      %v374 = vpop.f32.mrf.mxu0
      %375 = vdwg.mxu0
      %v377 = vsel %vm343, %v337, 0
      %379 = vmatpush.bf16.msra.mxu0 0
      %380 = vmatpush.bf16.msra.mxu0 0
      %381 = vmatpush.bf16.msra.mxu0 0
      %382 = vmatpush.bf16.msra.mxu0 0
      %383 = vmatpush.bf16.msra.mxu0 0
      %384 = vmatpush.bf16.msra.mxu0 0
      %385 = vmatpush.bf16.msra.mxu0 0
      %386 = vmatpush.bf16.msra.mxu0 %v377
      %387 = vmatmul.bf16.gmra.mxu0 %v341
      %v388 = vpop.f32.mrf.mxu0
      %v389 = vadd.f32 0.0, %v388
      %v390 = vpop.f32.mrf.mxu0
      %391 = vdwg.mxu0
      %v393 = vsel %vm343, %v338, 0
      %395 = vmatpush.bf16.msra.mxu0 0
      %396 = vmatpush.bf16.msra.mxu0 0
      %397 = vmatpush.bf16.msra.mxu0 0
      %398 = vmatpush.bf16.msra.mxu0 0
      %399 = vmatpush.bf16.msra.mxu0 0
      %400 = vmatpush.bf16.msra.mxu0 0
      %401 = vmatpush.bf16.msra.mxu0 0
      %402 = vmatpush.bf16.msra.mxu0 %v393
      %403 = vmatmul.bf16.gmra.mxu0 %v341
      %v404 = vpop.f32.mrf.mxu0
      %v405 = vadd.f32 0.0, %v404
      %v406 = vpop.f32.mrf.mxu0
      %407 = vdwg.mxu0
      %v408 = vpack.c.bf16 %v357, %v357
      %v409 = vpack.c.bf16 %v373, %v373
      %v410 = vpack.c.bf16 %v389, %v389
      %v411 = vpack.c.bf16 %v405, %v405
      %v413 = vsel %vm339, %v334, 0
      %415 = vmatpush.bf16.msra.mxu0 0
      %416 = vmatpush.bf16.msra.mxu0 0
      %417 = vmatpush.bf16.msra.mxu0 0
      %418 = vmatpush.bf16.msra.mxu0 0
      %419 = vmatpush.bf16.msra.mxu0 0
      %420 = vmatpush.bf16.msra.mxu0 0
      %421 = vmatpush.bf16.msra.mxu0 0
      %422 = vmatpush.bf16.msra.mxu0 %v345
      %423 = vmatmul.bf16.gmra.mxu0 %v413
      %v424 = vpop.f32.mrf.mxu0
      %v425 = vadd.f32 0.0, %v424
      %v426 = vpop.f32.mrf.mxu0
      %427 = vdwg.mxu0
      %428 = vmatpush.bf16.msra.mxu0 0
      %429 = vmatpush.bf16.msra.mxu0 0
      %430 = vmatpush.bf16.msra.mxu0 0
      %431 = vmatpush.bf16.msra.mxu0 0
      %432 = vmatpush.bf16.msra.mxu0 0
      %433 = vmatpush.bf16.msra.mxu0 0
      %434 = vmatpush.bf16.msra.mxu0 0
      %435 = vmatpush.bf16.msra.mxu0 %v361
      %436 = vmatmul.bf16.gmra.mxu0 %v413
      %v437 = vpop.f32.mrf.mxu0
      %v438 = vadd.f32 0.0, %v437
      %v439 = vpop.f32.mrf.mxu0
      %440 = vdwg.mxu0
      %441 = vmatpush.bf16.msra.mxu0 0
      %442 = vmatpush.bf16.msra.mxu0 0
      %443 = vmatpush.bf16.msra.mxu0 0
      %444 = vmatpush.bf16.msra.mxu0 0
      %445 = vmatpush.bf16.msra.mxu0 0
      %446 = vmatpush.bf16.msra.mxu0 0
      %447 = vmatpush.bf16.msra.mxu0 0
      %448 = vmatpush.bf16.msra.mxu0 %v377
      %449 = vmatmul.bf16.gmra.mxu0 %v413
      %v450 = vpop.f32.mrf.mxu0
      %v451 = vadd.f32 0.0, %v450
      %v452 = vpop.f32.mrf.mxu0
      %453 = vdwg.mxu0
      %454 = vmatpush.bf16.msra.mxu0 0
      %455 = vmatpush.bf16.msra.mxu0 0
      %456 = vmatpush.bf16.msra.mxu0 0
      %457 = vmatpush.bf16.msra.mxu0 0
      %458 = vmatpush.bf16.msra.mxu0 0
      %459 = vmatpush.bf16.msra.mxu0 0
      %460 = vmatpush.bf16.msra.mxu0 0
      %461 = vmatpush.bf16.msra.mxu0 %v393
      %462 = vmatmul.bf16.gmra.mxu0 %v413
      %v463 = vpop.f32.mrf.mxu0
      %v464 = vadd.f32 0.0, %v463
      %v465 = vpop.f32.mrf.mxu0
      %466 = vdwg.mxu0
      %v467 = vpack.c.bf16 %v425, %v425
      %v468 = vpack.c.bf16 %v438, %v438
      %v469 = vpack.c.bf16 %v451, %v451
      %v470 = vpack.c.bf16 %v464, %v464
      %v475 = vunpack.c.l.b16 %v467
      %v476 = vunpack.c.l.b16 %v468
      %v477 = vunpack.c.l.b16 %v469
      %v478 = vunpack.c.l.b16 %v470
      %v479 = vpack.c.b16 %v475, %v475
      %v480 = vpack.c.b16 %v476, %v476
      %v481 = vpack.c.b16 %v477, %v477
      %v482 = vpack.c.b16 %v478, %v478
      %483 = vrot.lane.b32.xlu0 %v479, 16
      %v484 = vpop.permute.xlu0 %483
      %485 = vrot.lane.b32.xlu0 %v480, 16
      %v486 = vpop.permute.xlu0 %485
      %487 = vrot.lane.b32.xlu0 %v481, 16
      %v488 = vpop.permute.xlu0 %487
      %489 = vrot.lane.b32.xlu0 %v482, 16
      %v490 = vpop.permute.xlu0 %489
      %vm491 = vcmask 130048
      %v494 = vsel %vm491, %v408, %v484
      %v498 = vsel %vm491, %v409, %v486
      %v502 = vsel %vm491, %v410, %v488
      %v506 = vsel %vm491, %v411, %v490
      %vm508 = vcmask 257024
      %509 = vst.msk [vmem:[%s264] sm:$0xf] %vm508, %v494
      %510 = vst.msk [vmem:[%s264 + $0x4] sm:$0xf] %vm508, %v498
      %511 = vst.msk [vmem:[%s264 + $0x8] sm:$0xf] %vm508, %v502
      %512 = vst.msk [vmem:[%s264 + $0xc] sm:$0xf] %vm508, %v506
      %p513 = scmp.lt.s32.totalorder %s16, 1
      %s514 = scalar_select %p513, %s16, 1
      %s515 = smul.addr %s514, 4
      %s516 = smul.addr %s515, 4
      %s517 = scalar_lea.vmem %s5, %s516
      // Predicated region
      $region41: #{sttformer_forward.15} parent=39 // pred_check
        %p518 = pneg %p154
      $region42: #{sttformer_forward.15} parent=39 // pred_check_branch
        %520 = sbr.rel (%p518) target = $region44
      $region43: #{sttformer_forward.15} parent=39 // pred_region
        _
      $region44: #{sttformer_forward.15} parent=39 // pred_fallthru
        _
    $region40: #{sttformer_forward.15} parent=5 // pred_fallthru
      _
    %p521 = scmp.le.s32.totalorder 2, %s11
    // Predicated region
    $region45: #{sttformer_forward.15} parent=5 // pred_check
      %p522 = pneg %p521
    $region46: #{sttformer_forward.15} parent=5 // pred_check_branch
      %524 = sbr.rel (%p522) target = $region48
    $region47: #{sttformer_forward.15} parent=5 // pred_region
      %s525 = ssub.s32 %s11, 2
      // Predicated region
      $region49: #{sttformer_forward.15} parent=47 // pred_check
        %p526 = pneg %p160
      $region50: #{sttformer_forward.15} parent=47 // pred_check_branch
        %528 = sbr.rel (%p526) target = $region52
      $region51: #{sttformer_forward.15} parent=47 // pred_region
        %p529 = scmp.lt.s32.totalorder %s17, 1
        %s530 = scalar_select %p529, %s17, 1
        %s531 = smul.addr %s530, 4
        %s532 = smul.addr %s531, 4
        %s533 = scalar_lea.vmem %s5, %s532
      $region52: #{sttformer_forward.15} parent=47 // pred_fallthru
        _
    $region48: #{sttformer_forward.15} parent=5 // pred_fallthru
      _
  $region6: #{sttformer_forward.15} parent=0 // loop_footer
    %s15 = sadd.s32 1, %s11
  $region7: #{sttformer_forward.15} parent=0 // loop_footer_branch
    %10 = sbr.rel target = $region3
  $region8: #{sttformer_forward.15} parent=0 // loop_exit
    _

// kernel: sttformer_forward.16
$region0: #{sttformer_forward.16}
  #allocation0 [shape = 'u32[]', space=smem, size = 0x4, offset = 0x4, fixed_abs, tag = 'smem constant byte address 0x4 - core index']
  #allocation1 [shape = 'u32[72,128]{1,0:T(1,128)}', space=vmem, size = 0x9000, scoped, tag = 'internal scratch']
  %s0 = inlined_call_operand.vmem [shape: bf16[2,50,32], index: 0, kind: input, shape index: {}]
  %s1 = inlined_call_operand.vmem [shape: bf16[3,32,16], index: 1, kind: input, shape index: {}]
  %s2 = inlined_call_operand.vmem [shape: f32[1,16], index: 2, kind: input, shape index: {}]
  %s3 = inlined_call_operand.vmem [shape: f32[1,16], index: 3, kind: input, shape index: {}]
  %s4 = inlined_call_operand.vmem [shape: bf16[2,40,16], index: 4, kind: input, shape index: {}]
  %s5 = inlined_call_operand.vmem [shape: bf16[2,40,16], index: 5, kind: output, shape index: {}]
  %s6 = sld [smem:[#allocation0]]
  $region53: #{sttformer_forward.16} parent=0
    _
  %s8 = ssub.s32 1, %s6
  %s9 = scalar_select 0, %s8, %s6
  loop: start=0, step=1, limit=4
  $region2: #{sttformer_forward.16} parent=0 // loop_pre_header
    _
  $region3: #{sttformer_forward.16} parent=0 // loop_header
    %s11 = sphi 0, %s15
    %p12 = scmp.ge.s32.totalorder %s11, 4
    %s21 = sphi 0, %s23
    %s24 = sphi 0, %s21
    %s25 = sphi 0, %s24
    %s41 = sphi 0, %s25
    %s45 = sphi 0, %s45
    %s47 = sphi 0, %s45
    %s48 = sphi 0, %s47
    %s62 = sphi 0, %s48
    %s66 = sphi 0, %s66
    %s68 = sphi 0, %s66
    %s69 = sphi 0, %s68
    %s83 = sphi 0, %s69
    %s87 = sphi 0, %s87
    %s89 = sphi 0, %s87
    %s90 = sphi 0, %s89
    %s104 = sphi 0, %s90
    %s110 = sphi 0, %s112
    %s113 = sphi 0, %s110
    %s114 = sphi 0, %s113
    %s130 = sphi 0, %s114
    %s136 = sphi 0, %s138
    %s139 = sphi 0, %s136
    %s140 = sphi 0, %s139
    %s156 = sphi 0, %s140
  $region4: #{sttformer_forward.16} parent=0 // loop_header_branch
    %14 = sbr.rel (%p12) target = $region8
  $region5: #{sttformer_forward.16} parent=0 // loop_body
    %s16 = ssub.s32 %s11, 1
    %s17 = ssub.s32 %s11, 2
    %s18 = sadd.s32 %s11, 1
    %s19 = ssub.s32 %s11, %s18
    %p20 = scmp.eq.s32.totalorder %s19, 0
    %s22 = sadd.s32 %s21, 1
    %s23 = scalar_select %p20, %s21, %s22
    %p26 = pneg %p20
    %p27 = scmp.eq.s32.totalorder %s11, 1
    %p28 = por %p26, %p27
    %p29 = scmp.ne.s32.totalorder %s21, %s24
    %p30 = scmp.eq.s32.totalorder %s11, 0
    %p31 = por %p29, %p30
    %p32 = scmp.ne.s32.totalorder %s21, %s24
    %p33 = scmp.eq.s32.totalorder %s16, 1
    %p34 = por %p32, %p33
    %p35 = scmp.ne.s32.totalorder %s24, %s25
    %p36 = scmp.eq.s32.totalorder %s16, 0
    %p37 = por %p35, %p36
    %p38 = scmp.ne.s32.totalorder %s24, %s25
    %p39 = scmp.eq.s32.totalorder %s17, 1
    %p40 = por %p38, %p39
    %p42 = scmp.ne.s32.totalorder %s25, %s41
    %p43 = scmp.eq.s32.totalorder %s17, 0
    %p44 = por %p42, %p43
    %s46 = sadd.s32 %s45, 1
    %p49 = scmp.eq.s32.totalorder %s11, 1
    %p50 = scmp.ne.s32.totalorder %s45, %s47
    %p51 = scmp.eq.s32.totalorder %s11, 0
    %p52 = por %p50, %p51
    %p53 = scmp.ne.s32.totalorder %s45, %s47
    %p54 = scmp.eq.s32.totalorder %s16, 1
    %p55 = por %p53, %p54
    %p56 = scmp.ne.s32.totalorder %s47, %s48
    %p57 = scmp.eq.s32.totalorder %s16, 0
    %p58 = por %p56, %p57
    %p59 = scmp.ne.s32.totalorder %s47, %s48
    %p60 = scmp.eq.s32.totalorder %s17, 1
    %p61 = por %p59, %p60
    %p63 = scmp.ne.s32.totalorder %s48, %s62
    %p64 = scmp.eq.s32.totalorder %s17, 0
    %p65 = por %p63, %p64
    %s67 = sadd.s32 %s66, 1
    %p70 = scmp.eq.s32.totalorder %s11, 1
    %p71 = scmp.ne.s32.totalorder %s66, %s68
    %p72 = scmp.eq.s32.totalorder %s11, 0
    %p73 = por %p71, %p72
    %p74 = scmp.ne.s32.totalorder %s66, %s68
    %p75 = scmp.eq.s32.totalorder %s16, 1
    %p76 = por %p74, %p75
    %p77 = scmp.ne.s32.totalorder %s68, %s69
    %p78 = scmp.eq.s32.totalorder %s16, 0
    %p79 = por %p77, %p78
    %p80 = scmp.ne.s32.totalorder %s68, %s69
    %p81 = scmp.eq.s32.totalorder %s17, 1
    %p82 = por %p80, %p81
    %p84 = scmp.ne.s32.totalorder %s69, %s83
    %p85 = scmp.eq.s32.totalorder %s17, 0
    %p86 = por %p84, %p85
    %s88 = sadd.s32 %s87, 1
    %p91 = scmp.eq.s32.totalorder %s11, 1
    %p92 = scmp.ne.s32.totalorder %s87, %s89
    %p93 = scmp.eq.s32.totalorder %s11, 0
    %p94 = por %p92, %p93
    %p95 = scmp.ne.s32.totalorder %s87, %s89
    %p96 = scmp.eq.s32.totalorder %s16, 1
    %p97 = por %p95, %p96
    %p98 = scmp.ne.s32.totalorder %s89, %s90
    %p99 = scmp.eq.s32.totalorder %s16, 0
    %p100 = por %p98, %p99
    %p101 = scmp.ne.s32.totalorder %s89, %s90
    %p102 = scmp.eq.s32.totalorder %s17, 1
    %p103 = por %p101, %p102
    %p105 = scmp.ne.s32.totalorder %s90, %s104
    %p106 = scmp.eq.s32.totalorder %s17, 0
    %p107 = por %p105, %p106
    %s108 = ssub.s32 %s11, %s18
    %p109 = scmp.eq.s32.totalorder %s108, 0
    %s111 = sadd.s32 %s110, 1
    %s112 = scalar_select %p109, %s110, %s111
    %p115 = pneg %p109
    %p116 = scmp.eq.s32.totalorder %s11, 1
    %p117 = por %p115, %p116
    %p118 = scmp.ne.s32.totalorder %s110, %s113
    %p119 = scmp.eq.s32.totalorder %s11, 0
    %p120 = por %p118, %p119
    %p121 = scmp.ne.s32.totalorder %s110, %s113
    %p122 = scmp.eq.s32.totalorder %s16, 1
    %p123 = por %p121, %p122
    %p124 = scmp.ne.s32.totalorder %s113, %s114
    %p125 = scmp.eq.s32.totalorder %s16, 0
    %p126 = por %p124, %p125
    %p127 = scmp.ne.s32.totalorder %s113, %s114
    %p128 = scmp.eq.s32.totalorder %s17, 1
    %p129 = por %p127, %p128
    %p131 = scmp.ne.s32.totalorder %s114, %s130
    %p132 = scmp.eq.s32.totalorder %s17, 0
    %p133 = por %p131, %p132
    %s134 = ssub.s32 %s11, %s18
    %p135 = scmp.eq.s32.totalorder %s134, 0
    %s137 = sadd.s32 %s136, 1
    %s138 = scalar_select %p135, %s136, %s137
    %p141 = pneg %p135
    %p142 = scmp.eq.s32.totalorder %s11, 1
    %p143 = por %p141, %p142
    %p144 = scmp.ne.s32.totalorder %s136, %s139
    %p145 = scmp.eq.s32.totalorder %s11, 0
    %p146 = por %p144, %p145
    %p147 = scmp.ne.s32.totalorder %s136, %s139
    %p148 = scmp.eq.s32.totalorder %s16, 1
    %p149 = por %p147, %p148
    %p150 = scmp.ne.s32.totalorder %s139, %s140
    %p151 = scmp.eq.s32.totalorder %s16, 0
    %p152 = por %p150, %p151
    %p153 = scmp.ne.s32.totalorder %s139, %s140
    %p154 = scmp.eq.s32.totalorder %s17, 1
    %p155 = por %p153, %p154
    %p157 = scmp.ne.s32.totalorder %s140, %s156
    %p158 = scmp.eq.s32.totalorder %s17, 0
    %p159 = por %p157, %p158
    %p160 = scmp.le.s32.totalorder 1, %s11
    %p161 = scmp.lt.s32.totalorder %s11, 3
    %p162 = pnand %p160, %p161
    %p163 = pneg %p162
    // Predicated region
    $region9: #{sttformer_forward.16} parent=5 // pred_check
      _
    $region10: #{sttformer_forward.16} parent=5 // pred_check_branch
      %165 = sbr.rel (%p162) target = $region12
    $region11: #{sttformer_forward.16} parent=5 // pred_region
      %s166 = ssub.s32 %s11, 1
      // Predicated region
      $region13: #{sttformer_forward.16} parent=11 // pred_check
        %p167 = pneg %p58
      $region14: #{sttformer_forward.16} parent=11 // pred_check_branch
        %169 = sbr.rel (%p167) target = $region16
      $region15: #{sttformer_forward.16} parent=11 // pred_region
        _
      $region16: #{sttformer_forward.16} parent=11 // pred_fallthru
        _
      // Predicated region
      $region17: #{sttformer_forward.16} parent=11 // pred_check
        %p170 = pneg %p79
      $region18: #{sttformer_forward.16} parent=11 // pred_check_branch
        %172 = sbr.rel (%p170) target = $region20
      $region19: #{sttformer_forward.16} parent=11 // pred_region
        _
      $region20: #{sttformer_forward.16} parent=11 // pred_fallthru
        _
      // Predicated region
      $region21: #{sttformer_forward.16} parent=11 // pred_check
        %p173 = pneg %p100
      $region22: #{sttformer_forward.16} parent=11 // pred_check_branch
        %175 = sbr.rel (%p173) target = $region24
      $region23: #{sttformer_forward.16} parent=11 // pred_region
        _
      $region24: #{sttformer_forward.16} parent=11 // pred_fallthru
        _
    $region12: #{sttformer_forward.16} parent=5 // pred_fallthru
      _
    %p176 = scmp.lt.s32.totalorder %s11, 2
    // Predicated region
    $region25: #{sttformer_forward.16} parent=5 // pred_check
      %p177 = pneg %p176
    $region26: #{sttformer_forward.16} parent=5 // pred_check_branch
      %179 = sbr.rel (%p177) target = $region28
    $region27: #{sttformer_forward.16} parent=5 // pred_region
      // Predicated region
      $region29: #{sttformer_forward.16} parent=27 // pred_check
        %p180 = pneg %p31
      $region30: #{sttformer_forward.16} parent=27 // pred_check_branch
        %182 = sbr.rel (%p180) target = $region32
      $region31: #{sttformer_forward.16} parent=27 // pred_region
        %p183 = scmp.lt.s32.totalorder %s11, 1
        %s184 = scalar_select %p183, %s11, 1
        %s185 = smul.addr %s184, 7
        %s186 = smul.addr %s185, 4
        %s187 = scalar_lea.vmem %s0, %s186
      $region32: #{sttformer_forward.16} parent=27 // pred_fallthru
        _
      // Predicated region
      $region33: #{sttformer_forward.16} parent=27 // pred_check
        %p188 = pneg %p120
      $region34: #{sttformer_forward.16} parent=27 // pred_check_branch
        %190 = sbr.rel (%p188) target = $region36
      $region35: #{sttformer_forward.16} parent=27 // pred_region
        %p191 = scmp.lt.s32.totalorder %s11, 1
        %s192 = scalar_select %p191, %s11, 1
        %s193 = smul.addr %s192, 5
        %s194 = smul.addr %s193, 4
        %s195 = scalar_lea.vmem %s4, %s194
      $region36: #{sttformer_forward.16} parent=27 // pred_fallthru
        _
    $region28: #{sttformer_forward.16} parent=5 // pred_fallthru
      _
    %p196 = scmp.le.s32.totalorder 1, %s11
    %p197 = scmp.lt.s32.totalorder %s11, 3
    %p198 = pnand %p196, %p197
    %p199 = pneg %p198
    // Predicated region
    $region37: #{sttformer_forward.16} parent=5 // pred_check
      _
    $region38: #{sttformer_forward.16} parent=5 // pred_check_branch
      %201 = sbr.rel (%p198) target = $region40
    $region39: #{sttformer_forward.16} parent=5 // pred_region
      %s202 = ssub.s32 %s11, 1
      %p203 = scmp.lt.s32.totalorder %s16, 1
      %s204 = scalar_select %p203, %s16, 1
      %s205 = smul.addr %s204, 7
      %s206 = smul.addr %s205, 4
      %s207 = scalar_lea.vmem %s0, %s206
      %p208 = pneg %p37
      %p209 = pneg %p34
      %p210 = pneg %p58
      %p211 = pneg %p55
      %p212 = pneg %p79
      %p213 = pneg %p76
      %p214 = pneg %p100
      %p215 = pneg %p97
      %p216 = scmp.lt.s32.totalorder %s16, 1
      %s217 = scalar_select %p216, %s16, 1
      %s218 = smul.addr %s217, 5
      %s219 = smul.addr %s218, 4
      %s220 = scalar_lea.vmem %s4, %s219
      %p221 = pneg %p126
      %p222 = pneg %p123
      %p223 = pneg %p152
      %p224 = pneg %p149
      %p225 = scmp.lt.s32.totalorder %s16, 1
      %s226 = scalar_select %p225, %s16, 1
      %s227 = smul.addr %s226, 5
      %s228 = smul.addr %s227, 4
      %s229 = scalar_lea.vmem %s5, %s228
      %p230 = scmp.lt.s32.totalorder %s16, 1
      %s231 = scalar_select %p230, %s16, 1
      %s232 = smul.addr %s231, 7
      %s233 = smul.addr %s232, 4
      %s234 = scalar_lea.vmem %s0, %s233
      %p235 = scmp.lt.s32.totalorder %s16, 1
      %s236 = scalar_select %p235, %s16, 1
      %s237 = smul.addr %s236, 5
      %s238 = smul.addr %s237, 4
      %s239 = scalar_lea.vmem %s4, %s238
      %p240 = scmp.lt.s32.totalorder %s16, 1
      %s241 = scalar_select %p240, %s16, 1
      %s242 = smul.addr %s241, 5
      %s243 = smul.addr %s242, 4
      %s244 = scalar_lea.vmem %s5, %s243
      %v246 = vld [vmem:[%s234] sm:$0xf]
      %v247 = vld [vmem:[%s234 + $0x4] sm:$0xf]
      %v248 = vld [vmem:[%s234 + $0x8] sm:$0xf]
      %v249 = vld [vmem:[%s234 + $0xc] sm:$0xf]
      %v250 = vld [vmem:[%s234 + $0x10] sm:$0xf]
      %v251 = vld [vmem:[%s1] sm:$0xf]
      %v252 = vld [vmem:[%s1 + $0x4] sm:$0xf]
      %v253 = vld [vmem:[%s1 + $0x8] sm:$0xf]
      %v254 = vld [vmem:[%s1 + $0xc] sm:$0xf]
      %v255 = vld [vmem:[%s234 + $0x14] sm:$0x1]
      %s256 = scalar_lea.vmem %s1, 16
      %v257 = vld [vmem:[%s256] sm:$0xf]
      %v258 = vld [vmem:[%s256 + $0x4] sm:$0xf]
      %v259 = vld [vmem:[%s256 + $0x8] sm:$0xf]
      %v260 = vld [vmem:[%s256 + $0xc] sm:$0xf]
      %v267 = vunpack.c.l.b16 %v246
      %v268 = vunpack.c.l.b16 %v247
      %v269 = vunpack.c.l.b16 %v248
      %v270 = vunpack.c.l.b16 %v249
      %v271 = vunpack.c.l.b16 %v250
      %v272 = vunpack.c.l.b16 %v255
      %v273 = vpack.c.b16 %v268, %v267
      %v274 = vpack.c.b16 %v270, %v269
      %v275 = vpack.c.b16 %v272, %v271
      %vm276 = vsmask.f32 7424
      %v278 = vshrl.u32 %v273, 16
      %v280 = vshll.u32 %v273, 16
      %v282 = vrot.slane %v280, 1
      %v283 = vor.u32 %v278, %v282
      %v285 = vshll.u32 %v274, 16
      %v287 = vrot.slane %v285, 1
      %v288 = vsel %vm276, %v283, %v287
      %v289 = vshrl.u32 %v274, 16
      %v291 = vor.u32 %v289, %v287
      %v293 = vshll.u32 %v275, 16
      %v295 = vrot.slane %v293, 1
      %v296 = vsel %vm276, %v291, %v295
      %v297 = vshrl.u32 %v275, 16
      %v299 = vor.u32 %v297, %v295
      %v304 = vunpack.c.l.b16 %v257
      %v305 = vunpack.c.l.b16 %v258
      %v306 = vunpack.c.l.b16 %v259
      %v307 = vunpack.c.l.b16 %v260
      %v308 = vpack.c.b16 %v305, %v304
      %v309 = vpack.c.b16 %v307, %v306
      %vm312 = vcmask 261120
      %v314 = vsel %vm312, %v288, 0
      %v317 = vsel %vm312, %v296, 0
      %v320 = vsel %vm312, %v299, 0
      %322 = vmatpush.bf16.msra.mxu0 0
      %323 = vmatpush.bf16.msra.mxu0 0
      %324 = vmatpush.bf16.msra.mxu0 0
      %325 = vmatpush.bf16.msra.mxu0 0
      %326 = vmatpush.bf16.msra.mxu0 0
      %327 = vmatpush.bf16.msra.mxu0 0
      %328 = vmatpush.bf16.msra.mxu0 %v309
      %329 = vmatpush.bf16.msra.mxu0 %v308
      %330 = vmatmul.bf16.gmra.mxu0 %v314
      %v331 = vpop.f32.mrf.mxu0
      %v332 = vadd.f32 0.0, %v331
      %v333 = vpop.f32.mrf.mxu0
      %v334 = vadd.f32 0.0, %v333
      %335 = vmatmul.bf16.gmra.mxu0 %v317
      %v336 = vpop.f32.mrf.mxu0
      %v337 = vadd.f32 0.0, %v336
      %v338 = vpop.f32.mrf.mxu0
      %v339 = vadd.f32 0.0, %v338
      %340 = vmatmul.bf16.gmra.mxu0 %v320
      %v341 = vpop.f32.mrf.mxu0
      %v342 = vadd.f32 0.0, %v341
      %v343 = vpop.f32.mrf.mxu0
      %344 = vdwg.mxu0
      %v345 = vpack.c.b16 %v271, %v271
      %v350 = vunpack.c.l.b16 %v251
      %v351 = vunpack.c.l.b16 %v252
      %v352 = vunpack.c.l.b16 %v253
      %v353 = vunpack.c.l.b16 %v254
      %v354 = vpack.c.b16 %v351, %v350
      %v355 = vpack.c.b16 %v353, %v352
      %v358 = vsel %vm312, %v273, 0
      %v360 = vsel %vm312, %v274, 0
      %v363 = vsel %vm312, %v345, 0
      %365 = vmatpush.bf16.msra.mxu0 0
      %366 = vmatpush.bf16.msra.mxu0 0
      %367 = vmatpush.bf16.msra.mxu0 0
      %368 = vmatpush.bf16.msra.mxu0 0
      %369 = vmatpush.bf16.msra.mxu0 0
      %370 = vmatpush.bf16.msra.mxu0 0
      %371 = vmatpush.bf16.msra.mxu0 %v355
      %372 = vmatpush.bf16.msra.mxu0 %v354
      %373 = vmatmul.bf16.gmra.mxu0 %v358
      %v374 = vpop.f32.mrf.mxu0
      %v375 = vadd.f32 %v332, %v374
      %v376 = vpop.f32.mrf.mxu0
      %v377 = vadd.f32 %v334, %v376
      %378 = vmatmul.bf16.gmra.mxu0 %v360
      %v379 = vpop.f32.mrf.mxu0
      %v380 = vadd.f32 %v337, %v379
      %v381 = vpop.f32.mrf.mxu0
      %v382 = vadd.f32 %v339, %v381
      %383 = vmatmul.bf16.gmra.mxu0 %v363
      %v384 = vpop.f32.mrf.mxu0
      %v385 = vadd.f32 %v342, %v384
      %v386 = vpop.f32.mrf.mxu0
      %387 = vdwg.mxu0
      %v388 = vld [vmem:[%s234] sm:$0xe]
      %s389 = scalar_lea.vmem %s1, 32
      %v390 = vld [vmem:[%s389] sm:$0xf]
      %v391 = vld [vmem:[%s389 + $0x4] sm:$0xf]
      %v392 = vld [vmem:[%s389 + $0x8] sm:$0xf]
      %v393 = vld [vmem:[%s389 + $0xc] sm:$0xf]
      %v395 = vunpack.c.l.b16 %v388
      %v396 = vpack.c.b16 %v268, %v395
      %vm397 = vcmask 1046528
      %v398 = vrot.slane %v396, 1
      %v399 = vrot.slane %v274, 1
      %v400 = vsel %vm397, %v398, %v399
      %v401 = vrot.slane %v275, 1
      %v402 = vsel %vm397, %v399, %v401
      %v407 = vunpack.c.l.b16 %v390
      %v408 = vunpack.c.l.b16 %v391
      %v409 = vunpack.c.l.b16 %v392
      %v410 = vunpack.c.l.b16 %v393
      %v411 = vpack.c.b16 %v408, %v407
      %v412 = vpack.c.b16 %v410, %v409
      %v416 = vsel %vm312, %v400, 0
      %v419 = vsel %vm312, %v402, 0
      %v422 = vsel %vm312, %v401, 0
      %424 = vmatpush.bf16.msra.mxu0 0
      %425 = vmatpush.bf16.msra.mxu0 0
      %426 = vmatpush.bf16.msra.mxu0 0
      %427 = vmatpush.bf16.msra.mxu0 0
      %428 = vmatpush.bf16.msra.mxu0 0
      %429 = vmatpush.bf16.msra.mxu0 0
      %430 = vmatpush.bf16.msra.mxu0 %v412
      %431 = vmatpush.bf16.msra.mxu0 %v411
      %432 = vmatmul.bf16.gmra.mxu0 %v416
      %v433 = vpop.f32.mrf.mxu0
      %v434 = vadd.f32 0.0, %v433
      %v435 = vpop.f32.mrf.mxu0
      %v436 = vadd.f32 0.0, %v435
      %437 = vmatmul.bf16.gmra.mxu0 %v419
      %v438 = vpop.f32.mrf.mxu0
      %v439 = vadd.f32 0.0, %v438
      %v440 = vpop.f32.mrf.mxu0
      %v441 = vadd.f32 0.0, %v440
      %442 = vmatmul.bf16.gmra.mxu0 %v422
      %v443 = vpop.f32.mrf.mxu0
      %v444 = vadd.f32 0.0, %v443
      %v445 = vpop.f32.mrf.mxu0
      %446 = vdwg.mxu0
      %v447 = vadd.f32 %v375, %v434
      %v448 = vadd.f32 %v377, %v436
      %v449 = vadd.f32 %v380, %v439
      %v450 = vadd.f32 %v382, %v441
      %v451 = vadd.f32 %v385, %v444
      %v452 = vld [vmem:[%s2] sm:$0x1]
      %v454 = vperm.slane %v452, 0
      %v456 = vmul.f32 %v447, %v454
      %v457 = vmul.f32 %v448, %v454
      %v458 = vmul.f32 %v449, %v454
      %v459 = vmul.f32 %v450, %v454
      %v460 = vmul.f32 %v451, %v454
      %v461 = vld [vmem:[%s3] sm:$0x1]
      %v463 = vperm.slane %v461, 0
      %v465 = vadd.f32 %v456, %v463
      %v466 = vadd.f32 %v457, %v463
      %v467 = vadd.f32 %v458, %v463
      %v468 = vadd.f32 %v459, %v463
      %v469 = vadd.f32 %v460, %v463
      %v470 = vld [vmem:[%s239] sm:$0xf]
      %v471 = vld [vmem:[%s239 + $0x4] sm:$0xf]
      %v472 = vld [vmem:[%s239 + $0x8] sm:$0xf]
      %v473 = vld [vmem:[%s239 + $0xc] sm:$0xf]
      %v474 = vld [vmem:[%s239 + $0x10] sm:$0xf]
      %v475 = vunpack.c.l.bf16 %v470
      %v476 = vunpack.c.l.bf16 %v471
      %v477 = vunpack.c.l.bf16 %v472
      %v478 = vunpack.c.l.bf16 %v473
      %v479 = vunpack.c.l.bf16 %v474
      %v480 = vadd.f32 %v465, %v475
      %v481 = vadd.f32 %v466, %v476
      %v482 = vadd.f32 %v467, %v477
      %v483 = vadd.f32 %v468, %v478
      %v484 = vadd.f32 %v469, %v479
      %vm485 = vcmp.ge.f32.partialorder %v480, 0.0
      %vm486 = vcmp.ge.f32.partialorder %v481, 0.0
      %vm487 = vcmp.ge.f32.partialorder %v482, 0.0
      %vm488 = vcmp.ge.f32.partialorder %v483, 0.0
      %vm489 = vcmp.ge.f32.partialorder %v484, 0.0
      %v490 = vmul.f32 %v480, 0.1
      %v491 = vmul.f32 %v481, 0.1
      %v492 = vmul.f32 %v482, 0.1
      %v493 = vmul.f32 %v483, 0.1
      %v494 = vmul.f32 %v484, 0.1
      %v495 = vsel %vm485, %v480, %v490
      %v496 = vsel %vm486, %v481, %v491
      %v497 = vsel %vm487, %v482, %v492
      %v498 = vsel %vm488, %v483, %v493
      %v499 = vsel %vm489, %v484, %v494
      %v500 = vpack.c.bf16 %v495, %v495
      %v501 = vpack.c.bf16 %v496, %v496
      %v502 = vpack.c.bf16 %v497, %v497
      %v503 = vpack.c.bf16 %v498, %v498
      %v504 = vpack.c.bf16 %v499, %v499
      %vm505 = vcmask 125952
      %506 = vst.msk [vmem:[%s244] sm:$0xf] %vm505, %v500
      %507 = vst.msk [vmem:[%s244 + $0x4] sm:$0xf] %vm505, %v501
      %508 = vst.msk [vmem:[%s244 + $0x8] sm:$0xf] %vm505, %v502
      %509 = vst.msk [vmem:[%s244 + $0xc] sm:$0xf] %vm505, %v503
      %510 = vst.msk [vmem:[%s244 + $0x10] sm:$0xf] %vm505, %v504
      %p511 = scmp.lt.s32.totalorder %s16, 1
      %s512 = scalar_select %p511, %s16, 1
      %s513 = smul.addr %s512, 5
      %s514 = smul.addr %s513, 4
      %s515 = scalar_lea.vmem %s5, %s514
      // Predicated region
      $region41: #{sttformer_forward.16} parent=39 // pred_check
        %p516 = pneg %p149
      $region42: #{sttformer_forward.16} parent=39 // pred_check_branch
        %518 = sbr.rel (%p516) target = $region44
      $region43: #{sttformer_forward.16} parent=39 // pred_region
        _
      $region44: #{sttformer_forward.16} parent=39 // pred_fallthru
        _
    $region40: #{sttformer_forward.16} parent=5 // pred_fallthru
      _
    %p519 = scmp.le.s32.totalorder 2, %s11
    // Predicated region
    $region45: #{sttformer_forward.16} parent=5 // pred_check
      %p520 = pneg %p519
    $region46: #{sttformer_forward.16} parent=5 // pred_check_branch
      %522 = sbr.rel (%p520) target = $region48
    $region47: #{sttformer_forward.16} parent=5 // pred_region
      %s523 = ssub.s32 %s11, 2
      // Predicated region
      $region49: #{sttformer_forward.16} parent=47 // pred_check
        %p524 = pneg %p155
      $region50: #{sttformer_forward.16} parent=47 // pred_check_branch
        %526 = sbr.rel (%p524) target = $region52
      $region51: #{sttformer_forward.16} parent=47 // pred_region
        %p527 = scmp.lt.s32.totalorder %s17, 1
        %s528 = scalar_select %p527, %s17, 1
        %s529 = smul.addr %s528, 5
        %s530 = smul.addr %s529, 4
        %s531 = scalar_lea.vmem %s5, %s530
      $region52: #{sttformer_forward.16} parent=47 // pred_fallthru
        _
    $region48: #{sttformer_forward.16} parent=5 // pred_fallthru
      _
  $region6: #{sttformer_forward.16} parent=0 // loop_footer
    %s15 = sadd.s32 1, %s11
  $region7: #{sttformer_forward.16} parent=0 // loop_footer_branch
    %10 = sbr.rel target = $region3
  $region8: #{sttformer_forward.16} parent=0 // loop_exit
    _

// kernel: sttformer_forward.17
$region0: #{sttformer_forward.17}
  #allocation0 [shape = 'u32[]', space=smem, size = 0x4, offset = 0x4, fixed_abs, tag = 'smem constant byte address 0x4 - core index']
  #allocation1 [shape = 'u32[72,128]{1,0:T(1,128)}', space=vmem, size = 0x9000, scoped, tag = 'internal scratch']
  %s0 = inlined_call_operand.vmem [shape: bf16[64,16], index: 0, kind: input, shape index: {}]
  %s1 = inlined_call_operand.vmem [shape: bf16[16,16], index: 1, kind: input, shape index: {}]
  %s2 = inlined_call_operand.vmem [shape: f32[1,16], index: 2, kind: input, shape index: {}]
  %s3 = inlined_call_operand.vmem [shape: f32[1,16], index: 3, kind: input, shape index: {}]
  %s4 = inlined_call_operand.vmem [shape: bf16[64,16], index: 4, kind: input, shape index: {}]
  %s5 = inlined_call_operand.vmem [shape: bf16[64,16], index: 5, kind: output, shape index: {}]
  %s6 = sld [smem:[#allocation0]]
  $region30: #{sttformer_forward.17} parent=0
    _
  %s8 = ssub.s32 1, %s6
  %s9 = scalar_select 0, %s8, %s6
  // Predicated region
  $region2: #{sttformer_forward.17} parent=0 // pred_check
    _
  $region3: #{sttformer_forward.17} parent=0 // pred_check_branch
    %11 = sbr.rel (0) target = $region5
  $region4: #{sttformer_forward.17} parent=0 // pred_region
    _
  $region5: #{sttformer_forward.17} parent=0 // pred_fallthru
    _
  // Predicated region
  $region6: #{sttformer_forward.17} parent=0 // pred_check
    _
  $region7: #{sttformer_forward.17} parent=0 // pred_check_branch
    %13 = sbr.rel (0) target = $region9
  $region8: #{sttformer_forward.17} parent=0 // pred_region
    _
  $region9: #{sttformer_forward.17} parent=0 // pred_fallthru
    _
  // Predicated region
  $region10: #{sttformer_forward.17} parent=0 // pred_check
    _
  $region11: #{sttformer_forward.17} parent=0 // pred_check_branch
    %15 = sbr.rel (0) target = $region13
  $region12: #{sttformer_forward.17} parent=0 // pred_region
    _
  $region13: #{sttformer_forward.17} parent=0 // pred_fallthru
    _
  // Predicated region
  $region14: #{sttformer_forward.17} parent=0 // pred_check
    _
  $region15: #{sttformer_forward.17} parent=0 // pred_check_branch
    %17 = sbr.rel (0) target = $region17
  $region16: #{sttformer_forward.17} parent=0 // pred_region
    _
  $region17: #{sttformer_forward.17} parent=0 // pred_fallthru
    _
  // Predicated region
  $region18: #{sttformer_forward.17} parent=0 // pred_check
    _
  $region19: #{sttformer_forward.17} parent=0 // pred_check_branch
    %19 = sbr.rel (0) target = $region21
  $region20: #{sttformer_forward.17} parent=0 // pred_region
    _
  $region21: #{sttformer_forward.17} parent=0 // pred_fallthru
    _
  %v21 = vld [vmem:[%s0] sm:$0xf]
  %v22 = vld [vmem:[%s0 + $0x4] sm:$0xf]
  %v23 = vld [vmem:[%s0 + $0x8] sm:$0xf]
  %v24 = vld [vmem:[%s0 + $0xc] sm:$0xf]
  %v25 = vld [vmem:[%s0 + $0x10] sm:$0xf]
  %v26 = vld [vmem:[%s0 + $0x14] sm:$0xf]
  %v27 = vld [vmem:[%s0 + $0x18] sm:$0xf]
  %v28 = vld [vmem:[%s0 + $0x1c] sm:$0xf]
  %v29 = vld [vmem:[%s1] sm:$0xf]
  %v30 = vld [vmem:[%s1 + $0x4] sm:$0xf]
  %v39 = vunpack.c.l.b16 %v21
  %v40 = vunpack.c.l.b16 %v22
  %v41 = vunpack.c.l.b16 %v23
  %v42 = vunpack.c.l.b16 %v24
  %v43 = vunpack.c.l.b16 %v25
  %v44 = vunpack.c.l.b16 %v26
  %v45 = vunpack.c.l.b16 %v27
  %v46 = vunpack.c.l.b16 %v28
  %v47 = vpack.c.b16 %v40, %v39
  %v48 = vpack.c.b16 %v42, %v41
  %v49 = vpack.c.b16 %v44, %v43
  %v50 = vpack.c.b16 %v46, %v45
  %v53 = vunpack.c.l.b16 %v29
  %v54 = vunpack.c.l.b16 %v30
  %v55 = vpack.c.b16 %v54, %v53
  %vm57 = vcmask 130048
  %v59 = vsel %vm57, %v47, 0
  %v62 = vsel %vm57, %v48, 0
  %v65 = vsel %vm57, %v49, 0
  %v68 = vsel %vm57, %v50, 0
  %70 = vmatpush.bf16.msra.mxu0 0
  %71 = vmatpush.bf16.msra.mxu0 0
  %72 = vmatpush.bf16.msra.mxu0 0
  %73 = vmatpush.bf16.msra.mxu0 0
  %74 = vmatpush.bf16.msra.mxu0 0
  %75 = vmatpush.bf16.msra.mxu0 0
  %76 = vmatpush.bf16.msra.mxu0 0
  %77 = vmatpush.bf16.msra.mxu0 %v55
  %78 = vmatmul.bf16.gmra.mxu0 %v59
  %v79 = vpop.f32.mrf.mxu0
  %v80 = vadd.f32 0.0, %v79
  %v81 = vpop.f32.mrf.mxu0
  %v82 = vadd.f32 0.0, %v81
  %83 = vmatmul.bf16.gmra.mxu0 %v62
  %v84 = vpop.f32.mrf.mxu0
  %v85 = vadd.f32 0.0, %v84
  %v86 = vpop.f32.mrf.mxu0
  %v87 = vadd.f32 0.0, %v86
  %88 = vmatmul.bf16.gmra.mxu0 %v65
  %v89 = vpop.f32.mrf.mxu0
  %v90 = vadd.f32 0.0, %v89
  %v91 = vpop.f32.mrf.mxu0
  %v92 = vadd.f32 0.0, %v91
  %93 = vmatmul.bf16.gmra.mxu0 %v68
  %v94 = vpop.f32.mrf.mxu0
  %v95 = vadd.f32 0.0, %v94
  %v96 = vpop.f32.mrf.mxu0
  %v97 = vadd.f32 0.0, %v96
  %98 = vdwg.mxu0
  %v99 = vld [vmem:[%s2] sm:$0x1]
  %v101 = vperm.slane %v99, 0
  %v103 = vmul.f32 %v80, %v101
  %v104 = vmul.f32 %v82, %v101
  %v105 = vmul.f32 %v85, %v101
  %v106 = vmul.f32 %v87, %v101
  %v107 = vmul.f32 %v90, %v101
  %v108 = vmul.f32 %v92, %v101
  %v109 = vmul.f32 %v95, %v101
  %v110 = vmul.f32 %v97, %v101
  %v111 = vld [vmem:[%s3] sm:$0x1]
  %v113 = vperm.slane %v111, 0
  %v115 = vadd.f32 %v103, %v113
  %v116 = vadd.f32 %v104, %v113
  %v117 = vadd.f32 %v105, %v113
  %v118 = vadd.f32 %v106, %v113
  %v119 = vadd.f32 %v107, %v113
  %v120 = vadd.f32 %v108, %v113
  %v121 = vadd.f32 %v109, %v113
  %v122 = vadd.f32 %v110, %v113
  %v123 = vld [vmem:[%s4] sm:$0xf]
  %v124 = vld [vmem:[%s4 + $0x4] sm:$0xf]
  %v125 = vld [vmem:[%s4 + $0x8] sm:$0xf]
  %v126 = vld [vmem:[%s4 + $0xc] sm:$0xf]
  %v127 = vld [vmem:[%s4 + $0x10] sm:$0xf]
  %v128 = vld [vmem:[%s4 + $0x14] sm:$0xf]
  %v129 = vld [vmem:[%s4 + $0x18] sm:$0xf]
  %v130 = vld [vmem:[%s4 + $0x1c] sm:$0xf]
  %v131 = vunpack.c.l.bf16 %v123
  %v132 = vunpack.c.l.bf16 %v124
  %v133 = vunpack.c.l.bf16 %v125
  %v134 = vunpack.c.l.bf16 %v126
  %v135 = vunpack.c.l.bf16 %v127
  %v136 = vunpack.c.l.bf16 %v128
  %v137 = vunpack.c.l.bf16 %v129
  %v138 = vunpack.c.l.bf16 %v130
  %v139 = vadd.f32 %v115, %v131
  %v140 = vadd.f32 %v116, %v132
  %v141 = vadd.f32 %v117, %v133
  %v142 = vadd.f32 %v118, %v134
  %v143 = vadd.f32 %v119, %v135
  %v144 = vadd.f32 %v120, %v136
  %v145 = vadd.f32 %v121, %v137
  %v146 = vadd.f32 %v122, %v138
  %vm147 = vcmp.ge.f32.partialorder %v139, 0.0
  %vm148 = vcmp.ge.f32.partialorder %v140, 0.0
  %vm149 = vcmp.ge.f32.partialorder %v141, 0.0
  %vm150 = vcmp.ge.f32.partialorder %v142, 0.0
  %vm151 = vcmp.ge.f32.partialorder %v143, 0.0
  %vm152 = vcmp.ge.f32.partialorder %v144, 0.0
  %vm153 = vcmp.ge.f32.partialorder %v145, 0.0
  %vm154 = vcmp.ge.f32.partialorder %v146, 0.0
  %v155 = vmul.f32 %v139, 0.1
  %v156 = vmul.f32 %v140, 0.1
  %v157 = vmul.f32 %v141, 0.1
  %v158 = vmul.f32 %v142, 0.1
  %v159 = vmul.f32 %v143, 0.1
  %v160 = vmul.f32 %v144, 0.1
  %v161 = vmul.f32 %v145, 0.1
  %v162 = vmul.f32 %v146, 0.1
  %v163 = vsel %vm147, %v139, %v155
  %v164 = vsel %vm148, %v140, %v156
  %v165 = vsel %vm149, %v141, %v157
  %v166 = vsel %vm150, %v142, %v158
  %v167 = vsel %vm151, %v143, %v159
  %v168 = vsel %vm152, %v144, %v160
  %v169 = vsel %vm153, %v145, %v161
  %v170 = vsel %vm154, %v146, %v162
  %v171 = vpack.c.bf16 %v163, %v163
  %v172 = vpack.c.bf16 %v164, %v164
  %v173 = vpack.c.bf16 %v165, %v165
  %v174 = vpack.c.bf16 %v166, %v166
  %v175 = vpack.c.bf16 %v167, %v167
  %v176 = vpack.c.bf16 %v168, %v168
  %v177 = vpack.c.bf16 %v169, %v169
  %v178 = vpack.c.bf16 %v170, %v170
  %vm179 = vcmask 125952
  %180 = vst.msk [vmem:[%s5] sm:$0xf] %vm179, %v171
  %181 = vst.msk [vmem:[%s5 + $0x4] sm:$0xf] %vm179, %v172
  %182 = vst.msk [vmem:[%s5 + $0x8] sm:$0xf] %vm179, %v173
  %183 = vst.msk [vmem:[%s5 + $0xc] sm:$0xf] %vm179, %v174
  %184 = vst.msk [vmem:[%s5 + $0x10] sm:$0xf] %vm179, %v175
  %185 = vst.msk [vmem:[%s5 + $0x14] sm:$0xf] %vm179, %v176
  %186 = vst.msk [vmem:[%s5 + $0x18] sm:$0xf] %vm179, %v177
  %187 = vst.msk [vmem:[%s5 + $0x1c] sm:$0xf] %vm179, %v178
  // Predicated region
  $region22: #{sttformer_forward.17} parent=0 // pred_check
    _
  $region23: #{sttformer_forward.17} parent=0 // pred_check_branch
    %189 = sbr.rel (0) target = $region25
  $region24: #{sttformer_forward.17} parent=0 // pred_region
    _
  $region25: #{sttformer_forward.17} parent=0 // pred_fallthru
    _
  // Predicated region
  $region26: #{sttformer_forward.17} parent=0 // pred_check
    _
  $region27: #{sttformer_forward.17} parent=0 // pred_check_branch
    %191 = sbr.rel (0) target = $region29
  $region28: #{sttformer_forward.17} parent=0 // pred_region
    _
  $region29: #{sttformer_forward.17} parent=0 // pred_fallthru
    _

// kernel: sttformer_forward.18
$region0: #{sttformer_forward.18}
  #allocation0 [shape = 'u32[]', space=smem, size = 0x4, offset = 0x4, fixed_abs, tag = 'smem constant byte address 0x4 - core index']
  #allocation1 [shape = 'u32[72,128]{1,0:T(1,128)}', space=vmem, size = 0x9000, scoped, tag = 'internal scratch']
  %s0 = inlined_call_operand.vmem [shape: bf16[2,48,16], index: 0, kind: input, shape index: {}]
  %s1 = inlined_call_operand.vmem [shape: bf16[3,16,16], index: 1, kind: input, shape index: {}]
  %s2 = inlined_call_operand.vmem [shape: f32[1,16], index: 2, kind: input, shape index: {}]
  %s3 = inlined_call_operand.vmem [shape: f32[1,16], index: 3, kind: input, shape index: {}]
  %s4 = inlined_call_operand.vmem [shape: bf16[2,32,16], index: 4, kind: input, shape index: {}]
  %s5 = inlined_call_operand.vmem [shape: bf16[2,32,16], index: 5, kind: output, shape index: {}]
  %s6 = sld [smem:[#allocation0]]
  $region53: #{sttformer_forward.18} parent=0
    _
  %s8 = ssub.s32 1, %s6
  %s9 = scalar_select 0, %s8, %s6
  loop: start=0, step=1, limit=4
  $region2: #{sttformer_forward.18} parent=0 // loop_pre_header
    _
  $region3: #{sttformer_forward.18} parent=0 // loop_header
    %s11 = sphi 0, %s15
    %p12 = scmp.ge.s32.totalorder %s11, 4
    %s21 = sphi 0, %s23
    %s24 = sphi 0, %s21
    %s25 = sphi 0, %s24
    %s41 = sphi 0, %s25
    %s45 = sphi 0, %s45
    %s47 = sphi 0, %s45
    %s48 = sphi 0, %s47
    %s62 = sphi 0, %s48
    %s66 = sphi 0, %s66
    %s68 = sphi 0, %s66
    %s69 = sphi 0, %s68
    %s83 = sphi 0, %s69
    %s87 = sphi 0, %s87
    %s89 = sphi 0, %s87
    %s90 = sphi 0, %s89
    %s104 = sphi 0, %s90
    %s110 = sphi 0, %s112
    %s113 = sphi 0, %s110
    %s114 = sphi 0, %s113
    %s130 = sphi 0, %s114
    %s136 = sphi 0, %s138
    %s139 = sphi 0, %s136
    %s140 = sphi 0, %s139
    %s156 = sphi 0, %s140
  $region4: #{sttformer_forward.18} parent=0 // loop_header_branch
    %14 = sbr.rel (%p12) target = $region8
  $region5: #{sttformer_forward.18} parent=0 // loop_body
    %s16 = ssub.s32 %s11, 1
    %s17 = ssub.s32 %s11, 2
    %s18 = sadd.s32 %s11, 1
    %s19 = ssub.s32 %s11, %s18
    %p20 = scmp.eq.s32.totalorder %s19, 0
    %s22 = sadd.s32 %s21, 1
    %s23 = scalar_select %p20, %s21, %s22
    %p26 = pneg %p20
    %p27 = scmp.eq.s32.totalorder %s11, 1
    %p28 = por %p26, %p27
    %p29 = scmp.ne.s32.totalorder %s21, %s24
    %p30 = scmp.eq.s32.totalorder %s11, 0
    %p31 = por %p29, %p30
    %p32 = scmp.ne.s32.totalorder %s21, %s24
    %p33 = scmp.eq.s32.totalorder %s16, 1
    %p34 = por %p32, %p33
    %p35 = scmp.ne.s32.totalorder %s24, %s25
    %p36 = scmp.eq.s32.totalorder %s16, 0
    %p37 = por %p35, %p36
    %p38 = scmp.ne.s32.totalorder %s24, %s25
    %p39 = scmp.eq.s32.totalorder %s17, 1
    %p40 = por %p38, %p39
    %p42 = scmp.ne.s32.totalorder %s25, %s41
    %p43 = scmp.eq.s32.totalorder %s17, 0
    %p44 = por %p42, %p43
    %s46 = sadd.s32 %s45, 1
    %p49 = scmp.eq.s32.totalorder %s11, 1
    %p50 = scmp.ne.s32.totalorder %s45, %s47
    %p51 = scmp.eq.s32.totalorder %s11, 0
    %p52 = por %p50, %p51
    %p53 = scmp.ne.s32.totalorder %s45, %s47
    %p54 = scmp.eq.s32.totalorder %s16, 1
    %p55 = por %p53, %p54
    %p56 = scmp.ne.s32.totalorder %s47, %s48
    %p57 = scmp.eq.s32.totalorder %s16, 0
    %p58 = por %p56, %p57
    %p59 = scmp.ne.s32.totalorder %s47, %s48
    %p60 = scmp.eq.s32.totalorder %s17, 1
    %p61 = por %p59, %p60
    %p63 = scmp.ne.s32.totalorder %s48, %s62
    %p64 = scmp.eq.s32.totalorder %s17, 0
    %p65 = por %p63, %p64
    %s67 = sadd.s32 %s66, 1
    %p70 = scmp.eq.s32.totalorder %s11, 1
    %p71 = scmp.ne.s32.totalorder %s66, %s68
    %p72 = scmp.eq.s32.totalorder %s11, 0
    %p73 = por %p71, %p72
    %p74 = scmp.ne.s32.totalorder %s66, %s68
    %p75 = scmp.eq.s32.totalorder %s16, 1
    %p76 = por %p74, %p75
    %p77 = scmp.ne.s32.totalorder %s68, %s69
    %p78 = scmp.eq.s32.totalorder %s16, 0
    %p79 = por %p77, %p78
    %p80 = scmp.ne.s32.totalorder %s68, %s69
    %p81 = scmp.eq.s32.totalorder %s17, 1
    %p82 = por %p80, %p81
    %p84 = scmp.ne.s32.totalorder %s69, %s83
    %p85 = scmp.eq.s32.totalorder %s17, 0
    %p86 = por %p84, %p85
    %s88 = sadd.s32 %s87, 1
    %p91 = scmp.eq.s32.totalorder %s11, 1
    %p92 = scmp.ne.s32.totalorder %s87, %s89
    %p93 = scmp.eq.s32.totalorder %s11, 0
    %p94 = por %p92, %p93
    %p95 = scmp.ne.s32.totalorder %s87, %s89
    %p96 = scmp.eq.s32.totalorder %s16, 1
    %p97 = por %p95, %p96
    %p98 = scmp.ne.s32.totalorder %s89, %s90
    %p99 = scmp.eq.s32.totalorder %s16, 0
    %p100 = por %p98, %p99
    %p101 = scmp.ne.s32.totalorder %s89, %s90
    %p102 = scmp.eq.s32.totalorder %s17, 1
    %p103 = por %p101, %p102
    %p105 = scmp.ne.s32.totalorder %s90, %s104
    %p106 = scmp.eq.s32.totalorder %s17, 0
    %p107 = por %p105, %p106
    %s108 = ssub.s32 %s11, %s18
    %p109 = scmp.eq.s32.totalorder %s108, 0
    %s111 = sadd.s32 %s110, 1
    %s112 = scalar_select %p109, %s110, %s111
    %p115 = pneg %p109
    %p116 = scmp.eq.s32.totalorder %s11, 1
    %p117 = por %p115, %p116
    %p118 = scmp.ne.s32.totalorder %s110, %s113
    %p119 = scmp.eq.s32.totalorder %s11, 0
    %p120 = por %p118, %p119
    %p121 = scmp.ne.s32.totalorder %s110, %s113
    %p122 = scmp.eq.s32.totalorder %s16, 1
    %p123 = por %p121, %p122
    %p124 = scmp.ne.s32.totalorder %s113, %s114
    %p125 = scmp.eq.s32.totalorder %s16, 0
    %p126 = por %p124, %p125
    %p127 = scmp.ne.s32.totalorder %s113, %s114
    %p128 = scmp.eq.s32.totalorder %s17, 1
    %p129 = por %p127, %p128
    %p131 = scmp.ne.s32.totalorder %s114, %s130
    %p132 = scmp.eq.s32.totalorder %s17, 0
    %p133 = por %p131, %p132
    %s134 = ssub.s32 %s11, %s18
    %p135 = scmp.eq.s32.totalorder %s134, 0
    %s137 = sadd.s32 %s136, 1
    %s138 = scalar_select %p135, %s136, %s137
    %p141 = pneg %p135
    %p142 = scmp.eq.s32.totalorder %s11, 1
    %p143 = por %p141, %p142
    %p144 = scmp.ne.s32.totalorder %s136, %s139
    %p145 = scmp.eq.s32.totalorder %s11, 0
    %p146 = por %p144, %p145
    %p147 = scmp.ne.s32.totalorder %s136, %s139
    %p148 = scmp.eq.s32.totalorder %s16, 1
    %p149 = por %p147, %p148
    %p150 = scmp.ne.s32.totalorder %s139, %s140
    %p151 = scmp.eq.s32.totalorder %s16, 0
    %p152 = por %p150, %p151
    %p153 = scmp.ne.s32.totalorder %s139, %s140
    %p154 = scmp.eq.s32.totalorder %s17, 1
    %p155 = por %p153, %p154
    %p157 = scmp.ne.s32.totalorder %s140, %s156
    %p158 = scmp.eq.s32.totalorder %s17, 0
    %p159 = por %p157, %p158
    %p160 = scmp.le.s32.totalorder 1, %s11
    %p161 = scmp.lt.s32.totalorder %s11, 3
    %p162 = pnand %p160, %p161
    %p163 = pneg %p162
    // Predicated region
    $region9: #{sttformer_forward.18} parent=5 // pred_check
      _
    $region10: #{sttformer_forward.18} parent=5 // pred_check_branch
      %165 = sbr.rel (%p162) target = $region12
    $region11: #{sttformer_forward.18} parent=5 // pred_region
      %s166 = ssub.s32 %s11, 1
      // Predicated region
      $region13: #{sttformer_forward.18} parent=11 // pred_check
        %p167 = pneg %p58
      $region14: #{sttformer_forward.18} parent=11 // pred_check_branch
        %169 = sbr.rel (%p167) target = $region16
      $region15: #{sttformer_forward.18} parent=11 // pred_region
        _
      $region16: #{sttformer_forward.18} parent=11 // pred_fallthru
        _
      // Predicated region
      $region17: #{sttformer_forward.18} parent=11 // pred_check
        %p170 = pneg %p79
      $region18: #{sttformer_forward.18} parent=11 // pred_check_branch
        %172 = sbr.rel (%p170) target = $region20
      $region19: #{sttformer_forward.18} parent=11 // pred_region
        _
      $region20: #{sttformer_forward.18} parent=11 // pred_fallthru
        _
      // Predicated region
      $region21: #{sttformer_forward.18} parent=11 // pred_check
        %p173 = pneg %p100
      $region22: #{sttformer_forward.18} parent=11 // pred_check_branch
        %175 = sbr.rel (%p173) target = $region24
      $region23: #{sttformer_forward.18} parent=11 // pred_region
        _
      $region24: #{sttformer_forward.18} parent=11 // pred_fallthru
        _
    $region12: #{sttformer_forward.18} parent=5 // pred_fallthru
      _
    %p176 = scmp.lt.s32.totalorder %s11, 2
    // Predicated region
    $region25: #{sttformer_forward.18} parent=5 // pred_check
      %p177 = pneg %p176
    $region26: #{sttformer_forward.18} parent=5 // pred_check_branch
      %179 = sbr.rel (%p177) target = $region28
    $region27: #{sttformer_forward.18} parent=5 // pred_region
      // Predicated region
      $region29: #{sttformer_forward.18} parent=27 // pred_check
        %p180 = pneg %p31
      $region30: #{sttformer_forward.18} parent=27 // pred_check_branch
        %182 = sbr.rel (%p180) target = $region32
      $region31: #{sttformer_forward.18} parent=27 // pred_region
        %p183 = scmp.lt.s32.totalorder %s11, 1
        %s184 = scalar_select %p183, %s11, 1
        %s185 = smul.addr %s184, 6
        %s186 = smul.addr %s185, 4
        %s187 = scalar_lea.vmem %s0, %s186
      $region32: #{sttformer_forward.18} parent=27 // pred_fallthru
        _
      // Predicated region
      $region33: #{sttformer_forward.18} parent=27 // pred_check
        %p188 = pneg %p120
      $region34: #{sttformer_forward.18} parent=27 // pred_check_branch
        %190 = sbr.rel (%p188) target = $region36
      $region35: #{sttformer_forward.18} parent=27 // pred_region
        %p191 = scmp.lt.s32.totalorder %s11, 1
        %s192 = scalar_select %p191, %s11, 1
        %s193 = smul.addr %s192, 4
        %s194 = smul.addr %s193, 4
        %s195 = scalar_lea.vmem %s4, %s194
      $region36: #{sttformer_forward.18} parent=27 // pred_fallthru
        _
    $region28: #{sttformer_forward.18} parent=5 // pred_fallthru
      _
    %p196 = scmp.le.s32.totalorder 1, %s11
    %p197 = scmp.lt.s32.totalorder %s11, 3
    %p198 = pnand %p196, %p197
    %p199 = pneg %p198
    // Predicated region
    $region37: #{sttformer_forward.18} parent=5 // pred_check
      _
    $region38: #{sttformer_forward.18} parent=5 // pred_check_branch
      %201 = sbr.rel (%p198) target = $region40
    $region39: #{sttformer_forward.18} parent=5 // pred_region
      %s202 = ssub.s32 %s11, 1
      %p203 = scmp.lt.s32.totalorder %s16, 1
      %s204 = scalar_select %p203, %s16, 1
      %s205 = smul.addr %s204, 6
      %s206 = smul.addr %s205, 4
      %s207 = scalar_lea.vmem %s0, %s206
      %p208 = pneg %p37
      %p209 = pneg %p34
      %p210 = pneg %p58
      %p211 = pneg %p55
      %p212 = pneg %p79
      %p213 = pneg %p76
      %p214 = pneg %p100
      %p215 = pneg %p97
      %p216 = scmp.lt.s32.totalorder %s16, 1
      %s217 = scalar_select %p216, %s16, 1
      %s218 = smul.addr %s217, 4
      %s219 = smul.addr %s218, 4
      %s220 = scalar_lea.vmem %s4, %s219
      %p221 = pneg %p126
      %p222 = pneg %p123
      %p223 = pneg %p152
      %p224 = pneg %p149
      %p225 = scmp.lt.s32.totalorder %s16, 1
      %s226 = scalar_select %p225, %s16, 1
      %s227 = smul.addr %s226, 4
      %s228 = smul.addr %s227, 4
      %s229 = scalar_lea.vmem %s5, %s228
      %p230 = scmp.lt.s32.totalorder %s16, 1
      %s231 = scalar_select %p230, %s16, 1
      %s232 = smul.addr %s231, 6
      %s233 = smul.addr %s232, 4
      %s234 = scalar_lea.vmem %s0, %s233
      %p235 = scmp.lt.s32.totalorder %s16, 1
      %s236 = scalar_select %p235, %s16, 1
      %s237 = smul.addr %s236, 4
      %s238 = smul.addr %s237, 4
      %s239 = scalar_lea.vmem %s4, %s238
      %p240 = scmp.lt.s32.totalorder %s16, 1
      %s241 = scalar_select %p240, %s16, 1
      %s242 = smul.addr %s241, 4
      %s243 = smul.addr %s242, 4
      %s244 = scalar_lea.vmem %s5, %s243
      %v246 = vld [vmem:[%s234] sm:$0xf]
      %v247 = vld [vmem:[%s234 + $0x4] sm:$0xf]
      %v248 = vld [vmem:[%s234 + $0x8] sm:$0xf]
      %v249 = vld [vmem:[%s234 + $0xc] sm:$0xf]
      %v250 = vld [vmem:[%s1] sm:$0xf]
      %v251 = vld [vmem:[%s1 + $0x4] sm:$0xf]
      %v252 = vld [vmem:[%s234 + $0x10] sm:$0xf]
      %s253 = scalar_lea.vmem %s1, 8
      %v254 = vld [vmem:[%s253] sm:$0xf]
      %v255 = vld [vmem:[%s253 + $0x4] sm:$0xf]
      %v260 = vunpack.c.l.b16 %v247
      %v261 = vunpack.c.l.b16 %v248
      %v262 = vunpack.c.l.b16 %v249
      %v263 = vunpack.c.l.b16 %v252
      %v264 = vpack.c.b16 %v261, %v260
      %v265 = vpack.c.b16 %v263, %v262
      %v268 = vunpack.c.l.b16 %v254
      %v269 = vunpack.c.l.b16 %v255
      %v270 = vpack.c.b16 %v269, %v268
      %vm272 = vcmask 130048
      %v274 = vsel %vm272, %v264, 0
      %v277 = vsel %vm272, %v265, 0
      %279 = vmatpush.bf16.msra.mxu0 0
      %280 = vmatpush.bf16.msra.mxu0 0
      %281 = vmatpush.bf16.msra.mxu0 0
      %282 = vmatpush.bf16.msra.mxu0 0
      %283 = vmatpush.bf16.msra.mxu0 0
      %284 = vmatpush.bf16.msra.mxu0 0
      %285 = vmatpush.bf16.msra.mxu0 0
      %286 = vmatpush.bf16.msra.mxu0 %v270
      %287 = vmatmul.bf16.gmra.mxu0 %v274
      %v288 = vpop.f32.mrf.mxu0
      %v289 = vadd.f32 0.0, %v288
      %v290 = vpop.f32.mrf.mxu0
      %v291 = vadd.f32 0.0, %v290
      %292 = vmatmul.bf16.gmra.mxu0 %v277
      %v293 = vpop.f32.mrf.mxu0
      %v294 = vadd.f32 0.0, %v293
      %v295 = vpop.f32.mrf.mxu0
      %v296 = vadd.f32 0.0, %v295
      %297 = vdwg.mxu0
      %v299 = vunpack.c.l.b16 %v246
      %v300 = vpack.c.b16 %v260, %v299
      %v301 = vpack.c.b16 %v262, %v261
      %v304 = vunpack.c.l.b16 %v250
      %v305 = vunpack.c.l.b16 %v251
      %v306 = vpack.c.b16 %v305, %v304
      %v309 = vsel %vm272, %v300, 0
      %v312 = vsel %vm272, %v301, 0
      %314 = vmatpush.bf16.msra.mxu0 0
      %315 = vmatpush.bf16.msra.mxu0 0
      %316 = vmatpush.bf16.msra.mxu0 0
      %317 = vmatpush.bf16.msra.mxu0 0
      %318 = vmatpush.bf16.msra.mxu0 0
      %319 = vmatpush.bf16.msra.mxu0 0
      %320 = vmatpush.bf16.msra.mxu0 0
      %321 = vmatpush.bf16.msra.mxu0 %v306
      %322 = vmatmul.bf16.gmra.mxu0 %v309
      %v323 = vpop.f32.mrf.mxu0
      %v324 = vadd.f32 %v289, %v323
      %v325 = vpop.f32.mrf.mxu0
      %v326 = vadd.f32 %v291, %v325
      %327 = vmatmul.bf16.gmra.mxu0 %v312
      %v328 = vpop.f32.mrf.mxu0
      %v329 = vadd.f32 %v294, %v328
      %v330 = vpop.f32.mrf.mxu0
      %v331 = vadd.f32 %v296, %v330
      %332 = vdwg.mxu0
      %v333 = vld [vmem:[%s234 + $0x8] sm:$0xf]
      %v334 = vld [vmem:[%s234 + $0xc] sm:$0xf]
      %v335 = vld [vmem:[%s234 + $0x10] sm:$0xf]
      %v336 = vld [vmem:[%s234 + $0x14] sm:$0xf]
      %s337 = scalar_lea.vmem %s1, 16
      %v338 = vld [vmem:[%s337] sm:$0xf]
      %v339 = vld [vmem:[%s337 + $0x4] sm:$0xf]
      %v344 = vunpack.c.l.b16 %v333
      %v345 = vunpack.c.l.b16 %v334
      %v346 = vunpack.c.l.b16 %v335
      %v347 = vunpack.c.l.b16 %v336
      %v348 = vpack.c.b16 %v345, %v344
      %v349 = vpack.c.b16 %v347, %v346
      %v352 = vunpack.c.l.b16 %v338
      %v353 = vunpack.c.l.b16 %v339
      %v354 = vpack.c.b16 %v353, %v352
      %v357 = vsel %vm272, %v348, 0
      %v360 = vsel %vm272, %v349, 0
      %362 = vmatpush.bf16.msra.mxu0 0
      %363 = vmatpush.bf16.msra.mxu0 0
      %364 = vmatpush.bf16.msra.mxu0 0
      %365 = vmatpush.bf16.msra.mxu0 0
      %366 = vmatpush.bf16.msra.mxu0 0
      %367 = vmatpush.bf16.msra.mxu0 0
      %368 = vmatpush.bf16.msra.mxu0 0
      %369 = vmatpush.bf16.msra.mxu0 %v354
      %370 = vmatmul.bf16.gmra.mxu0 %v357
      %v371 = vpop.f32.mrf.mxu0
      %v372 = vadd.f32 0.0, %v371
      %v373 = vpop.f32.mrf.mxu0
      %v374 = vadd.f32 0.0, %v373
      %375 = vmatmul.bf16.gmra.mxu0 %v360
      %v376 = vpop.f32.mrf.mxu0
      %v377 = vadd.f32 0.0, %v376
      %v378 = vpop.f32.mrf.mxu0
      %v379 = vadd.f32 0.0, %v378
      %380 = vdwg.mxu0
      %v381 = vadd.f32 %v324, %v372
      %v382 = vadd.f32 %v326, %v374
      %v383 = vadd.f32 %v329, %v377
      %v384 = vadd.f32 %v331, %v379
      %v385 = vld [vmem:[%s2] sm:$0x1]
      %v387 = vperm.slane %v385, 0
      %v389 = vmul.f32 %v381, %v387
      %v390 = vmul.f32 %v382, %v387
      %v391 = vmul.f32 %v383, %v387
      %v392 = vmul.f32 %v384, %v387
      %v393 = vld [vmem:[%s3] sm:$0x1]
      %v395 = vperm.slane %v393, 0
      %v397 = vadd.f32 %v389, %v395
      %v398 = vadd.f32 %v390, %v395
      %v399 = vadd.f32 %v391, %v395
      %v400 = vadd.f32 %v392, %v395
      %v401 = vld [vmem:[%s239] sm:$0xf]
      %v402 = vld [vmem:[%s239 + $0x4] sm:$0xf]
      %v403 = vld [vmem:[%s239 + $0x8] sm:$0xf]
      %v404 = vld [vmem:[%s239 + $0xc] sm:$0xf]
      %v405 = vunpack.c.l.bf16 %v401
      %v406 = vunpack.c.l.bf16 %v402
      %v407 = vunpack.c.l.bf16 %v403
      %v408 = vunpack.c.l.bf16 %v404
      %v409 = vadd.f32 %v397, %v405
      %v410 = vadd.f32 %v398, %v406
      %v411 = vadd.f32 %v399, %v407
      %v412 = vadd.f32 %v400, %v408
      %vm413 = vcmp.ge.f32.partialorder %v409, 0.0
      %vm414 = vcmp.ge.f32.partialorder %v410, 0.0
      %vm415 = vcmp.ge.f32.partialorder %v411, 0.0
      %vm416 = vcmp.ge.f32.partialorder %v412, 0.0
      %v417 = vmul.f32 %v409, 0.1
      %v418 = vmul.f32 %v410, 0.1
      %v419 = vmul.f32 %v411, 0.1
      %v420 = vmul.f32 %v412, 0.1
      %v421 = vsel %vm413, %v409, %v417
      %v422 = vsel %vm414, %v410, %v418
      %v423 = vsel %vm415, %v411, %v419
      %v424 = vsel %vm416, %v412, %v420
      %v425 = vpack.c.bf16 %v421, %v421
      %v426 = vpack.c.bf16 %v422, %v422
      %v427 = vpack.c.bf16 %v423, %v423
      %v428 = vpack.c.bf16 %v424, %v424
      %vm429 = vcmask 125952
      %430 = vst.msk [vmem:[%s244] sm:$0xf] %vm429, %v425
      %431 = vst.msk [vmem:[%s244 + $0x4] sm:$0xf] %vm429, %v426
      %432 = vst.msk [vmem:[%s244 + $0x8] sm:$0xf] %vm429, %v427
      %433 = vst.msk [vmem:[%s244 + $0xc] sm:$0xf] %vm429, %v428
      %p434 = scmp.lt.s32.totalorder %s16, 1
      %s435 = scalar_select %p434, %s16, 1
      %s436 = smul.addr %s435, 4
      %s437 = smul.addr %s436, 4
      %s438 = scalar_lea.vmem %s5, %s437
      // Predicated region
      $region41: #{sttformer_forward.18} parent=39 // pred_check
        %p439 = pneg %p149
      $region42: #{sttformer_forward.18} parent=39 // pred_check_branch
        %441 = sbr.rel (%p439) target = $region44
      $region43: #{sttformer_forward.18} parent=39 // pred_region
        _
      $region44: #{sttformer_forward.18} parent=39 // pred_fallthru
        _
    $region40: #{sttformer_forward.18} parent=5 // pred_fallthru
      _
    %p442 = scmp.le.s32.totalorder 2, %s11
    // Predicated region
    $region45: #{sttformer_forward.18} parent=5 // pred_check
      %p443 = pneg %p442
    $region46: #{sttformer_forward.18} parent=5 // pred_check_branch
      %445 = sbr.rel (%p443) target = $region48
    $region47: #{sttformer_forward.18} parent=5 // pred_region
      %s446 = ssub.s32 %s11, 2
      // Predicated region
      $region49: #{sttformer_forward.18} parent=47 // pred_check
        %p447 = pneg %p155
      $region50: #{sttformer_forward.18} parent=47 // pred_check_branch
        %449 = sbr.rel (%p447) target = $region52
      $region51: #{sttformer_forward.18} parent=47 // pred_region
        %p450 = scmp.lt.s32.totalorder %s17, 1
        %s451 = scalar_select %p450, %s17, 1
        %s452 = smul.addr %s451, 4
        %s453 = smul.addr %s452, 4
        %s454 = scalar_lea.vmem %s5, %s453
      $region52: #{sttformer_forward.18} parent=47 // pred_fallthru
        _
    $region48: #{sttformer_forward.18} parent=5 // pred_fallthru
      _
  $region6: #{sttformer_forward.18} parent=0 // loop_footer
    %s15 = sadd.s32 1, %s11
  $region7: #{sttformer_forward.18} parent=0 // loop_footer_branch
    %10 = sbr.rel target = $region3
  $region8: #{sttformer_forward.18} parent=0 // loop_exit
    _

// kernel: sttformer_forward.22
$region0: #{sttformer_forward.22}
  #allocation0 [shape = 'u32[]', space=smem, size = 0x4, offset = 0x4, fixed_abs, tag = 'smem constant byte address 0x4 - core index']
  #allocation1 [shape = 'u32[72,128]{1,0:T(1,128)}', space=vmem, size = 0x9000, scoped, tag = 'internal scratch']
  %s0 = inlined_call_operand.vmem [shape: bf16[2,50,32], index: 0, kind: input, shape index: {}]
  %s1 = inlined_call_operand.vmem [shape: bf16[3,32,32], index: 1, kind: input, shape index: {}]
  %s2 = inlined_call_operand.vmem [shape: f32[1,32], index: 2, kind: input, shape index: {}]
  %s3 = inlined_call_operand.vmem [shape: f32[1,32], index: 3, kind: input, shape index: {}]
  %s4 = inlined_call_operand.vmem [shape: bf16[2,40,32], index: 4, kind: input, shape index: {}]
  %s5 = inlined_call_operand.vmem [shape: bf16[2,40,32], index: 5, kind: output, shape index: {}]
  %s6 = sld [smem:[#allocation0]]
  $region53: #{sttformer_forward.22} parent=0
    _
  %s8 = ssub.s32 1, %s6
  %s9 = scalar_select 0, %s8, %s6
  loop: start=0, step=1, limit=4
  $region2: #{sttformer_forward.22} parent=0 // loop_pre_header
    _
  $region3: #{sttformer_forward.22} parent=0 // loop_header
    %s11 = sphi 0, %s15
    %p12 = scmp.ge.s32.totalorder %s11, 4
    %s21 = sphi 0, %s23
    %s24 = sphi 0, %s21
    %s25 = sphi 0, %s24
    %s41 = sphi 0, %s25
    %s45 = sphi 0, %s45
    %s47 = sphi 0, %s45
    %s48 = sphi 0, %s47
    %s62 = sphi 0, %s48
    %s66 = sphi 0, %s66
    %s68 = sphi 0, %s66
    %s69 = sphi 0, %s68
    %s83 = sphi 0, %s69
    %s87 = sphi 0, %s87
    %s89 = sphi 0, %s87
    %s90 = sphi 0, %s89
    %s104 = sphi 0, %s90
    %s110 = sphi 0, %s112
    %s113 = sphi 0, %s110
    %s114 = sphi 0, %s113
    %s130 = sphi 0, %s114
    %s136 = sphi 0, %s138
    %s139 = sphi 0, %s136
    %s140 = sphi 0, %s139
    %s156 = sphi 0, %s140
  $region4: #{sttformer_forward.22} parent=0 // loop_header_branch
    %14 = sbr.rel (%p12) target = $region8
  $region5: #{sttformer_forward.22} parent=0 // loop_body
    %s16 = ssub.s32 %s11, 1
    %s17 = ssub.s32 %s11, 2
    %s18 = sadd.s32 %s11, 1
    %s19 = ssub.s32 %s11, %s18
    %p20 = scmp.eq.s32.totalorder %s19, 0
    %s22 = sadd.s32 %s21, 1
    %s23 = scalar_select %p20, %s21, %s22
    %p26 = pneg %p20
    %p27 = scmp.eq.s32.totalorder %s11, 1
    %p28 = por %p26, %p27
    %p29 = scmp.ne.s32.totalorder %s21, %s24
    %p30 = scmp.eq.s32.totalorder %s11, 0
    %p31 = por %p29, %p30
    %p32 = scmp.ne.s32.totalorder %s21, %s24
    %p33 = scmp.eq.s32.totalorder %s16, 1
    %p34 = por %p32, %p33
    %p35 = scmp.ne.s32.totalorder %s24, %s25
    %p36 = scmp.eq.s32.totalorder %s16, 0
    %p37 = por %p35, %p36
    %p38 = scmp.ne.s32.totalorder %s24, %s25
    %p39 = scmp.eq.s32.totalorder %s17, 1
    %p40 = por %p38, %p39
    %p42 = scmp.ne.s32.totalorder %s25, %s41
    %p43 = scmp.eq.s32.totalorder %s17, 0
    %p44 = por %p42, %p43
    %s46 = sadd.s32 %s45, 1
    %p49 = scmp.eq.s32.totalorder %s11, 1
    %p50 = scmp.ne.s32.totalorder %s45, %s47
    %p51 = scmp.eq.s32.totalorder %s11, 0
    %p52 = por %p50, %p51
    %p53 = scmp.ne.s32.totalorder %s45, %s47
    %p54 = scmp.eq.s32.totalorder %s16, 1
    %p55 = por %p53, %p54
    %p56 = scmp.ne.s32.totalorder %s47, %s48
    %p57 = scmp.eq.s32.totalorder %s16, 0
    %p58 = por %p56, %p57
    %p59 = scmp.ne.s32.totalorder %s47, %s48
    %p60 = scmp.eq.s32.totalorder %s17, 1
    %p61 = por %p59, %p60
    %p63 = scmp.ne.s32.totalorder %s48, %s62
    %p64 = scmp.eq.s32.totalorder %s17, 0
    %p65 = por %p63, %p64
    %s67 = sadd.s32 %s66, 1
    %p70 = scmp.eq.s32.totalorder %s11, 1
    %p71 = scmp.ne.s32.totalorder %s66, %s68
    %p72 = scmp.eq.s32.totalorder %s11, 0
    %p73 = por %p71, %p72
    %p74 = scmp.ne.s32.totalorder %s66, %s68
    %p75 = scmp.eq.s32.totalorder %s16, 1
    %p76 = por %p74, %p75
    %p77 = scmp.ne.s32.totalorder %s68, %s69
    %p78 = scmp.eq.s32.totalorder %s16, 0
    %p79 = por %p77, %p78
    %p80 = scmp.ne.s32.totalorder %s68, %s69
    %p81 = scmp.eq.s32.totalorder %s17, 1
    %p82 = por %p80, %p81
    %p84 = scmp.ne.s32.totalorder %s69, %s83
    %p85 = scmp.eq.s32.totalorder %s17, 0
    %p86 = por %p84, %p85
    %s88 = sadd.s32 %s87, 1
    %p91 = scmp.eq.s32.totalorder %s11, 1
    %p92 = scmp.ne.s32.totalorder %s87, %s89
    %p93 = scmp.eq.s32.totalorder %s11, 0
    %p94 = por %p92, %p93
    %p95 = scmp.ne.s32.totalorder %s87, %s89
    %p96 = scmp.eq.s32.totalorder %s16, 1
    %p97 = por %p95, %p96
    %p98 = scmp.ne.s32.totalorder %s89, %s90
    %p99 = scmp.eq.s32.totalorder %s16, 0
    %p100 = por %p98, %p99
    %p101 = scmp.ne.s32.totalorder %s89, %s90
    %p102 = scmp.eq.s32.totalorder %s17, 1
    %p103 = por %p101, %p102
    %p105 = scmp.ne.s32.totalorder %s90, %s104
    %p106 = scmp.eq.s32.totalorder %s17, 0
    %p107 = por %p105, %p106
    %s108 = ssub.s32 %s11, %s18
    %p109 = scmp.eq.s32.totalorder %s108, 0
    %s111 = sadd.s32 %s110, 1
    %s112 = scalar_select %p109, %s110, %s111
    %p115 = pneg %p109
    %p116 = scmp.eq.s32.totalorder %s11, 1
    %p117 = por %p115, %p116
    %p118 = scmp.ne.s32.totalorder %s110, %s113
    %p119 = scmp.eq.s32.totalorder %s11, 0
    %p120 = por %p118, %p119
    %p121 = scmp.ne.s32.totalorder %s110, %s113
    %p122 = scmp.eq.s32.totalorder %s16, 1
    %p123 = por %p121, %p122
    %p124 = scmp.ne.s32.totalorder %s113, %s114
    %p125 = scmp.eq.s32.totalorder %s16, 0
    %p126 = por %p124, %p125
    %p127 = scmp.ne.s32.totalorder %s113, %s114
    %p128 = scmp.eq.s32.totalorder %s17, 1
    %p129 = por %p127, %p128
    %p131 = scmp.ne.s32.totalorder %s114, %s130
    %p132 = scmp.eq.s32.totalorder %s17, 0
    %p133 = por %p131, %p132
    %s134 = ssub.s32 %s11, %s18
    %p135 = scmp.eq.s32.totalorder %s134, 0
    %s137 = sadd.s32 %s136, 1
    %s138 = scalar_select %p135, %s136, %s137
    %p141 = pneg %p135
    %p142 = scmp.eq.s32.totalorder %s11, 1
    %p143 = por %p141, %p142
    %p144 = scmp.ne.s32.totalorder %s136, %s139
    %p145 = scmp.eq.s32.totalorder %s11, 0
    %p146 = por %p144, %p145
    %p147 = scmp.ne.s32.totalorder %s136, %s139
    %p148 = scmp.eq.s32.totalorder %s16, 1
    %p149 = por %p147, %p148
    %p150 = scmp.ne.s32.totalorder %s139, %s140
    %p151 = scmp.eq.s32.totalorder %s16, 0
    %p152 = por %p150, %p151
    %p153 = scmp.ne.s32.totalorder %s139, %s140
    %p154 = scmp.eq.s32.totalorder %s17, 1
    %p155 = por %p153, %p154
    %p157 = scmp.ne.s32.totalorder %s140, %s156
    %p158 = scmp.eq.s32.totalorder %s17, 0
    %p159 = por %p157, %p158
    %p160 = scmp.le.s32.totalorder 1, %s11
    %p161 = scmp.lt.s32.totalorder %s11, 3
    %p162 = pnand %p160, %p161
    %p163 = pneg %p162
    // Predicated region
    $region9: #{sttformer_forward.22} parent=5 // pred_check
      _
    $region10: #{sttformer_forward.22} parent=5 // pred_check_branch
      %165 = sbr.rel (%p162) target = $region12
    $region11: #{sttformer_forward.22} parent=5 // pred_region
      %s166 = ssub.s32 %s11, 1
      // Predicated region
      $region13: #{sttformer_forward.22} parent=11 // pred_check
        %p167 = pneg %p58
      $region14: #{sttformer_forward.22} parent=11 // pred_check_branch
        %169 = sbr.rel (%p167) target = $region16
      $region15: #{sttformer_forward.22} parent=11 // pred_region
        _
      $region16: #{sttformer_forward.22} parent=11 // pred_fallthru
        _
      // Predicated region
      $region17: #{sttformer_forward.22} parent=11 // pred_check
        %p170 = pneg %p79
      $region18: #{sttformer_forward.22} parent=11 // pred_check_branch
        %172 = sbr.rel (%p170) target = $region20
      $region19: #{sttformer_forward.22} parent=11 // pred_region
        _
      $region20: #{sttformer_forward.22} parent=11 // pred_fallthru
        _
      // Predicated region
      $region21: #{sttformer_forward.22} parent=11 // pred_check
        %p173 = pneg %p100
      $region22: #{sttformer_forward.22} parent=11 // pred_check_branch
        %175 = sbr.rel (%p173) target = $region24
      $region23: #{sttformer_forward.22} parent=11 // pred_region
        _
      $region24: #{sttformer_forward.22} parent=11 // pred_fallthru
        _
    $region12: #{sttformer_forward.22} parent=5 // pred_fallthru
      _
    %p176 = scmp.lt.s32.totalorder %s11, 2
    // Predicated region
    $region25: #{sttformer_forward.22} parent=5 // pred_check
      %p177 = pneg %p176
    $region26: #{sttformer_forward.22} parent=5 // pred_check_branch
      %179 = sbr.rel (%p177) target = $region28
    $region27: #{sttformer_forward.22} parent=5 // pred_region
      // Predicated region
      $region29: #{sttformer_forward.22} parent=27 // pred_check
        %p180 = pneg %p31
      $region30: #{sttformer_forward.22} parent=27 // pred_check_branch
        %182 = sbr.rel (%p180) target = $region32
      $region31: #{sttformer_forward.22} parent=27 // pred_region
        %p183 = scmp.lt.s32.totalorder %s11, 1
        %s184 = scalar_select %p183, %s11, 1
        %s185 = smul.addr %s184, 7
        %s186 = smul.addr %s185, 4
        %s187 = scalar_lea.vmem %s0, %s186
      $region32: #{sttformer_forward.22} parent=27 // pred_fallthru
        _
      // Predicated region
      $region33: #{sttformer_forward.22} parent=27 // pred_check
        %p188 = pneg %p120
      $region34: #{sttformer_forward.22} parent=27 // pred_check_branch
        %190 = sbr.rel (%p188) target = $region36
      $region35: #{sttformer_forward.22} parent=27 // pred_region
        %p191 = scmp.lt.s32.totalorder %s11, 1
        %s192 = scalar_select %p191, %s11, 1
        %s193 = smul.addr %s192, 5
        %s194 = smul.addr %s193, 4
        %s195 = scalar_lea.vmem %s4, %s194
      $region36: #{sttformer_forward.22} parent=27 // pred_fallthru
        _
    $region28: #{sttformer_forward.22} parent=5 // pred_fallthru
      _
    %p196 = scmp.le.s32.totalorder 1, %s11
    %p197 = scmp.lt.s32.totalorder %s11, 3
    %p198 = pnand %p196, %p197
    %p199 = pneg %p198
    // Predicated region
    $region37: #{sttformer_forward.22} parent=5 // pred_check
      _
    $region38: #{sttformer_forward.22} parent=5 // pred_check_branch
      %201 = sbr.rel (%p198) target = $region40
    $region39: #{sttformer_forward.22} parent=5 // pred_region
      %s202 = ssub.s32 %s11, 1
      %p203 = scmp.lt.s32.totalorder %s16, 1
      %s204 = scalar_select %p203, %s16, 1
      %s205 = smul.addr %s204, 7
      %s206 = smul.addr %s205, 4
      %s207 = scalar_lea.vmem %s0, %s206
      %p208 = pneg %p37
      %p209 = pneg %p34
      %p210 = pneg %p58
      %p211 = pneg %p55
      %p212 = pneg %p79
      %p213 = pneg %p76
      %p214 = pneg %p100
      %p215 = pneg %p97
      %p216 = scmp.lt.s32.totalorder %s16, 1
      %s217 = scalar_select %p216, %s16, 1
      %s218 = smul.addr %s217, 5
      %s219 = smul.addr %s218, 4
      %s220 = scalar_lea.vmem %s4, %s219
      %p221 = pneg %p126
      %p222 = pneg %p123
      %p223 = pneg %p152
      %p224 = pneg %p149
      %p225 = scmp.lt.s32.totalorder %s16, 1
      %s226 = scalar_select %p225, %s16, 1
      %s227 = smul.addr %s226, 5
      %s228 = smul.addr %s227, 4
      %s229 = scalar_lea.vmem %s5, %s228
      %p230 = scmp.lt.s32.totalorder %s16, 1
      %s231 = scalar_select %p230, %s16, 1
      %s232 = smul.addr %s231, 7
      %s233 = smul.addr %s232, 4
      %s234 = scalar_lea.vmem %s0, %s233
      %p235 = scmp.lt.s32.totalorder %s16, 1
      %s236 = scalar_select %p235, %s16, 1
      %s237 = smul.addr %s236, 5
      %s238 = smul.addr %s237, 4
      %s239 = scalar_lea.vmem %s4, %s238
      %p240 = scmp.lt.s32.totalorder %s16, 1
      %s241 = scalar_select %p240, %s16, 1
      %s242 = smul.addr %s241, 5
      %s243 = smul.addr %s242, 4
      %s244 = scalar_lea.vmem %s5, %s243
      %v246 = vld [vmem:[%s234] sm:$0xf]
      %v247 = vld [vmem:[%s234 + $0x4] sm:$0xf]
      %v248 = vld [vmem:[%s234 + $0x8] sm:$0xf]
      %v249 = vld [vmem:[%s234 + $0xc] sm:$0xf]
      %v250 = vld [vmem:[%s234 + $0x10] sm:$0xf]
      %v251 = vld [vmem:[%s1] sm:$0xf]
      %v252 = vld [vmem:[%s1 + $0x4] sm:$0xf]
      %v253 = vld [vmem:[%s1 + $0x8] sm:$0xf]
      %v254 = vld [vmem:[%s1 + $0xc] sm:$0xf]
      %v255 = vld [vmem:[%s234 + $0x14] sm:$0x1]
      %s256 = scalar_lea.vmem %s1, 16
      %v257 = vld [vmem:[%s256] sm:$0xf]
      %v258 = vld [vmem:[%s256 + $0x4] sm:$0xf]
      %v259 = vld [vmem:[%s256 + $0x8] sm:$0xf]
      %v260 = vld [vmem:[%s256 + $0xc] sm:$0xf]
      %v267 = vunpack.c.l.b16 %v246
      %v268 = vunpack.c.l.b16 %v247
      %v269 = vunpack.c.l.b16 %v248
      %v270 = vunpack.c.l.b16 %v249
      %v271 = vunpack.c.l.b16 %v250
      %v272 = vunpack.c.l.b16 %v255
      %v273 = vpack.c.b16 %v268, %v267
      %v274 = vpack.c.b16 %v270, %v269
      %v275 = vpack.c.b16 %v272, %v271
      %vm276 = vsmask.f32 7424
      %v278 = vshrl.u32 %v273, 16
      %v280 = vshll.u32 %v273, 16
      %v282 = vrot.slane %v280, 1
      %v283 = vor.u32 %v278, %v282
      %v285 = vshll.u32 %v274, 16
      %v287 = vrot.slane %v285, 1
      %v288 = vsel %vm276, %v283, %v287
      %v289 = vshrl.u32 %v274, 16
      %v291 = vor.u32 %v289, %v287
      %v293 = vshll.u32 %v275, 16
      %v295 = vrot.slane %v293, 1
      %v296 = vsel %vm276, %v291, %v295
      %v297 = vshrl.u32 %v275, 16
      %v299 = vor.u32 %v297, %v295
      %v304 = vunpack.c.l.b16 %v257
      %v305 = vunpack.c.l.b16 %v258
      %v306 = vunpack.c.l.b16 %v259
      %v307 = vunpack.c.l.b16 %v260
      %v308 = vpack.c.b16 %v305, %v304
      %v309 = vpack.c.b16 %v307, %v306
      %vm312 = vcmask 261120
      %v314 = vsel %vm312, %v288, 0
      %v317 = vsel %vm312, %v296, 0
      %v320 = vsel %vm312, %v299, 0
      %322 = vmatpush.bf16.msra.mxu0 0
      %323 = vmatpush.bf16.msra.mxu0 0
      %324 = vmatpush.bf16.msra.mxu0 0
      %325 = vmatpush.bf16.msra.mxu0 0
      %326 = vmatpush.bf16.msra.mxu0 0
      %327 = vmatpush.bf16.msra.mxu0 0
      %328 = vmatpush.bf16.msra.mxu0 %v309
      %329 = vmatpush.bf16.msra.mxu0 %v308
      %330 = vmatmul.bf16.gmra.mxu0 %v314
      %v331 = vpop.f32.mrf.mxu0
      %v332 = vadd.f32 0.0, %v331
      %v333 = vpop.f32.mrf.mxu0
      %v334 = vadd.f32 0.0, %v333
      %335 = vmatmul.bf16.gmra.mxu0 %v317
      %v336 = vpop.f32.mrf.mxu0
      %v337 = vadd.f32 0.0, %v336
      %v338 = vpop.f32.mrf.mxu0
      %v339 = vadd.f32 0.0, %v338
      %340 = vmatmul.bf16.gmra.mxu0 %v320
      %v341 = vpop.f32.mrf.mxu0
      %v342 = vadd.f32 0.0, %v341
      %v343 = vpop.f32.mrf.mxu0
      %344 = vdwg.mxu0
      %v345 = vpack.c.b16 %v271, %v271
      %v350 = vunpack.c.l.b16 %v251
      %v351 = vunpack.c.l.b16 %v252
      %v352 = vunpack.c.l.b16 %v253
      %v353 = vunpack.c.l.b16 %v254
      %v354 = vpack.c.b16 %v351, %v350
      %v355 = vpack.c.b16 %v353, %v352
      %v358 = vsel %vm312, %v273, 0
      %v360 = vsel %vm312, %v274, 0
      %v363 = vsel %vm312, %v345, 0
      %365 = vmatpush.bf16.msra.mxu0 0
      %366 = vmatpush.bf16.msra.mxu0 0
      %367 = vmatpush.bf16.msra.mxu0 0
      %368 = vmatpush.bf16.msra.mxu0 0
      %369 = vmatpush.bf16.msra.mxu0 0
      %370 = vmatpush.bf16.msra.mxu0 0
      %371 = vmatpush.bf16.msra.mxu0 %v355
      %372 = vmatpush.bf16.msra.mxu0 %v354
      %373 = vmatmul.bf16.gmra.mxu0 %v358
      %v374 = vpop.f32.mrf.mxu0
      %v375 = vadd.f32 %v332, %v374
      %v376 = vpop.f32.mrf.mxu0
      %v377 = vadd.f32 %v334, %v376
      %378 = vmatmul.bf16.gmra.mxu0 %v360
      %v379 = vpop.f32.mrf.mxu0
      %v380 = vadd.f32 %v337, %v379
      %v381 = vpop.f32.mrf.mxu0
      %v382 = vadd.f32 %v339, %v381
      %383 = vmatmul.bf16.gmra.mxu0 %v363
      %v384 = vpop.f32.mrf.mxu0
      %v385 = vadd.f32 %v342, %v384
      %v386 = vpop.f32.mrf.mxu0
      %387 = vdwg.mxu0
      %v388 = vld [vmem:[%s234] sm:$0xe]
      %s389 = scalar_lea.vmem %s1, 32
      %v390 = vld [vmem:[%s389] sm:$0xf]
      %v391 = vld [vmem:[%s389 + $0x4] sm:$0xf]
      %v392 = vld [vmem:[%s389 + $0x8] sm:$0xf]
      %v393 = vld [vmem:[%s389 + $0xc] sm:$0xf]
      %v395 = vunpack.c.l.b16 %v388
      %v396 = vpack.c.b16 %v268, %v395
      %vm397 = vcmask 1046528
      %v398 = vrot.slane %v396, 1
      %v399 = vrot.slane %v274, 1
      %v400 = vsel %vm397, %v398, %v399
      %v401 = vrot.slane %v275, 1
      %v402 = vsel %vm397, %v399, %v401
      %v407 = vunpack.c.l.b16 %v390
      %v408 = vunpack.c.l.b16 %v391
      %v409 = vunpack.c.l.b16 %v392
      %v410 = vunpack.c.l.b16 %v393
      %v411 = vpack.c.b16 %v408, %v407
      %v412 = vpack.c.b16 %v410, %v409
      %v416 = vsel %vm312, %v400, 0
      %v419 = vsel %vm312, %v402, 0
      %v422 = vsel %vm312, %v401, 0
      %424 = vmatpush.bf16.msra.mxu0 0
      %425 = vmatpush.bf16.msra.mxu0 0
      %426 = vmatpush.bf16.msra.mxu0 0
      %427 = vmatpush.bf16.msra.mxu0 0
      %428 = vmatpush.bf16.msra.mxu0 0
      %429 = vmatpush.bf16.msra.mxu0 0
      %430 = vmatpush.bf16.msra.mxu0 %v412
      %431 = vmatpush.bf16.msra.mxu0 %v411
      %432 = vmatmul.bf16.gmra.mxu0 %v416
      %v433 = vpop.f32.mrf.mxu0
      %v434 = vadd.f32 0.0, %v433
      %v435 = vpop.f32.mrf.mxu0
      %v436 = vadd.f32 0.0, %v435
      %437 = vmatmul.bf16.gmra.mxu0 %v419
      %v438 = vpop.f32.mrf.mxu0
      %v439 = vadd.f32 0.0, %v438
      %v440 = vpop.f32.mrf.mxu0
      %v441 = vadd.f32 0.0, %v440
      %442 = vmatmul.bf16.gmra.mxu0 %v422
      %v443 = vpop.f32.mrf.mxu0
      %v444 = vadd.f32 0.0, %v443
      %v445 = vpop.f32.mrf.mxu0
      %446 = vdwg.mxu0
      %v447 = vadd.f32 %v375, %v434
      %v448 = vadd.f32 %v377, %v436
      %v449 = vadd.f32 %v380, %v439
      %v450 = vadd.f32 %v382, %v441
      %v451 = vadd.f32 %v385, %v444
      %v452 = vld [vmem:[%s2] sm:$0x1]
      %v454 = vperm.slane %v452, 0
      %v456 = vmul.f32 %v447, %v454
      %v457 = vmul.f32 %v448, %v454
      %v458 = vmul.f32 %v449, %v454
      %v459 = vmul.f32 %v450, %v454
      %v460 = vmul.f32 %v451, %v454
      %v461 = vld [vmem:[%s3] sm:$0x1]
      %v463 = vperm.slane %v461, 0
      %v465 = vadd.f32 %v456, %v463
      %v466 = vadd.f32 %v457, %v463
      %v467 = vadd.f32 %v458, %v463
      %v468 = vadd.f32 %v459, %v463
      %v469 = vadd.f32 %v460, %v463
      %v470 = vld [vmem:[%s239] sm:$0xf]
      %v471 = vld [vmem:[%s239 + $0x4] sm:$0xf]
      %v472 = vld [vmem:[%s239 + $0x8] sm:$0xf]
      %v473 = vld [vmem:[%s239 + $0xc] sm:$0xf]
      %v474 = vld [vmem:[%s239 + $0x10] sm:$0xf]
      %v475 = vunpack.c.l.bf16 %v470
      %v476 = vunpack.c.l.bf16 %v471
      %v477 = vunpack.c.l.bf16 %v472
      %v478 = vunpack.c.l.bf16 %v473
      %v479 = vunpack.c.l.bf16 %v474
      %v480 = vadd.f32 %v465, %v475
      %v481 = vadd.f32 %v466, %v476
      %v482 = vadd.f32 %v467, %v477
      %v483 = vadd.f32 %v468, %v478
      %v484 = vadd.f32 %v469, %v479
      %vm485 = vcmp.ge.f32.partialorder %v480, 0.0
      %vm486 = vcmp.ge.f32.partialorder %v481, 0.0
      %vm487 = vcmp.ge.f32.partialorder %v482, 0.0
      %vm488 = vcmp.ge.f32.partialorder %v483, 0.0
      %vm489 = vcmp.ge.f32.partialorder %v484, 0.0
      %v490 = vmul.f32 %v480, 0.1
      %v491 = vmul.f32 %v481, 0.1
      %v492 = vmul.f32 %v482, 0.1
      %v493 = vmul.f32 %v483, 0.1
      %v494 = vmul.f32 %v484, 0.1
      %v495 = vsel %vm485, %v480, %v490
      %v496 = vsel %vm486, %v481, %v491
      %v497 = vsel %vm487, %v482, %v492
      %v498 = vsel %vm488, %v483, %v493
      %v499 = vsel %vm489, %v484, %v494
      %v500 = vpack.c.bf16 %v495, %v495
      %v501 = vpack.c.bf16 %v496, %v496
      %v502 = vpack.c.bf16 %v497, %v497
      %v503 = vpack.c.bf16 %v498, %v498
      %v504 = vpack.c.bf16 %v499, %v499
      %vm505 = vcmask 257024
      %506 = vst.msk [vmem:[%s244] sm:$0xf] %vm505, %v500
      %507 = vst.msk [vmem:[%s244 + $0x4] sm:$0xf] %vm505, %v501
      %508 = vst.msk [vmem:[%s244 + $0x8] sm:$0xf] %vm505, %v502
      %509 = vst.msk [vmem:[%s244 + $0xc] sm:$0xf] %vm505, %v503
      %510 = vst.msk [vmem:[%s244 + $0x10] sm:$0xf] %vm505, %v504
      %p511 = scmp.lt.s32.totalorder %s16, 1
      %s512 = scalar_select %p511, %s16, 1
      %s513 = smul.addr %s512, 5
      %s514 = smul.addr %s513, 4
      %s515 = scalar_lea.vmem %s5, %s514
      // Predicated region
      $region41: #{sttformer_forward.22} parent=39 // pred_check
        %p516 = pneg %p149
      $region42: #{sttformer_forward.22} parent=39 // pred_check_branch
        %518 = sbr.rel (%p516) target = $region44
      $region43: #{sttformer_forward.22} parent=39 // pred_region
        _
      $region44: #{sttformer_forward.22} parent=39 // pred_fallthru
        _
    $region40: #{sttformer_forward.22} parent=5 // pred_fallthru
      _
    %p519 = scmp.le.s32.totalorder 2, %s11
    // Predicated region
    $region45: #{sttformer_forward.22} parent=5 // pred_check
      %p520 = pneg %p519
    $region46: #{sttformer_forward.22} parent=5 // pred_check_branch
      %522 = sbr.rel (%p520) target = $region48
    $region47: #{sttformer_forward.22} parent=5 // pred_region
      %s523 = ssub.s32 %s11, 2
      // Predicated region
      $region49: #{sttformer_forward.22} parent=47 // pred_check
        %p524 = pneg %p155
      $region50: #{sttformer_forward.22} parent=47 // pred_check_branch
        %526 = sbr.rel (%p524) target = $region52
      $region51: #{sttformer_forward.22} parent=47 // pred_region
        %p527 = scmp.lt.s32.totalorder %s17, 1
        %s528 = scalar_select %p527, %s17, 1
        %s529 = smul.addr %s528, 5
        %s530 = smul.addr %s529, 4
        %s531 = scalar_lea.vmem %s5, %s530
      $region52: #{sttformer_forward.22} parent=47 // pred_fallthru
        _
    $region48: #{sttformer_forward.22} parent=5 // pred_fallthru
      _
  $region6: #{sttformer_forward.22} parent=0 // loop_footer
    %s15 = sadd.s32 1, %s11
  $region7: #{sttformer_forward.22} parent=0 // loop_footer_branch
    %10 = sbr.rel target = $region3
  $region8: #{sttformer_forward.22} parent=0 // loop_exit
    _

// kernel: sttformer_forward.23
$region0: #{sttformer_forward.23}
  #allocation0 [shape = 'u32[]', space=smem, size = 0x4, offset = 0x4, fixed_abs, tag = 'smem constant byte address 0x4 - core index']
  #allocation1 [shape = 'u32[72,128]{1,0:T(1,128)}', space=vmem, size = 0x9000, scoped, tag = 'internal scratch']
  %s0 = inlined_call_operand.vmem [shape: bf16[64,32], index: 0, kind: input, shape index: {}]
  %s1 = inlined_call_operand.vmem [shape: bf16[32,32], index: 1, kind: input, shape index: {}]
  %s2 = inlined_call_operand.vmem [shape: f32[1,32], index: 2, kind: input, shape index: {}]
  %s3 = inlined_call_operand.vmem [shape: f32[1,32], index: 3, kind: input, shape index: {}]
  %s4 = inlined_call_operand.vmem [shape: bf16[64,32], index: 4, kind: input, shape index: {}]
  %s5 = inlined_call_operand.vmem [shape: bf16[64,32], index: 5, kind: output, shape index: {}]
  %s6 = sld [smem:[#allocation0]]
  $region30: #{sttformer_forward.23} parent=0
    _
  %s8 = ssub.s32 1, %s6
  %s9 = scalar_select 0, %s8, %s6
  // Predicated region
  $region2: #{sttformer_forward.23} parent=0 // pred_check
    _
  $region3: #{sttformer_forward.23} parent=0 // pred_check_branch
    %11 = sbr.rel (0) target = $region5
  $region4: #{sttformer_forward.23} parent=0 // pred_region
    _
  $region5: #{sttformer_forward.23} parent=0 // pred_fallthru
    _
  // Predicated region
  $region6: #{sttformer_forward.23} parent=0 // pred_check
    _
  $region7: #{sttformer_forward.23} parent=0 // pred_check_branch
    %13 = sbr.rel (0) target = $region9
  $region8: #{sttformer_forward.23} parent=0 // pred_region
    _
  $region9: #{sttformer_forward.23} parent=0 // pred_fallthru
    _
  // Predicated region
  $region10: #{sttformer_forward.23} parent=0 // pred_check
    _
  $region11: #{sttformer_forward.23} parent=0 // pred_check_branch
    %15 = sbr.rel (0) target = $region13
  $region12: #{sttformer_forward.23} parent=0 // pred_region
    _
  $region13: #{sttformer_forward.23} parent=0 // pred_fallthru
    _
  // Predicated region
  $region14: #{sttformer_forward.23} parent=0 // pred_check
    _
  $region15: #{sttformer_forward.23} parent=0 // pred_check_branch
    %17 = sbr.rel (0) target = $region17
  $region16: #{sttformer_forward.23} parent=0 // pred_region
    _
  $region17: #{sttformer_forward.23} parent=0 // pred_fallthru
    _
  // Predicated region
  $region18: #{sttformer_forward.23} parent=0 // pred_check
    _
  $region19: #{sttformer_forward.23} parent=0 // pred_check_branch
    %19 = sbr.rel (0) target = $region21
  $region20: #{sttformer_forward.23} parent=0 // pred_region
    _
  $region21: #{sttformer_forward.23} parent=0 // pred_fallthru
    _
  %v21 = vld [vmem:[%s0] sm:$0xf]
  %v22 = vld [vmem:[%s0 + $0x4] sm:$0xf]
  %v23 = vld [vmem:[%s0 + $0x8] sm:$0xf]
  %v24 = vld [vmem:[%s0 + $0xc] sm:$0xf]
  %v25 = vld [vmem:[%s0 + $0x10] sm:$0xf]
  %v26 = vld [vmem:[%s0 + $0x14] sm:$0xf]
  %v27 = vld [vmem:[%s0 + $0x18] sm:$0xf]
  %v28 = vld [vmem:[%s0 + $0x1c] sm:$0xf]
  %v29 = vld [vmem:[%s1] sm:$0xf]
  %v30 = vld [vmem:[%s1 + $0x4] sm:$0xf]
  %v31 = vld [vmem:[%s1 + $0x8] sm:$0xf]
  %v32 = vld [vmem:[%s1 + $0xc] sm:$0xf]
  %v41 = vunpack.c.l.b16 %v21
  %v42 = vunpack.c.l.b16 %v22
  %v43 = vunpack.c.l.b16 %v23
  %v44 = vunpack.c.l.b16 %v24
  %v45 = vunpack.c.l.b16 %v25
  %v46 = vunpack.c.l.b16 %v26
  %v47 = vunpack.c.l.b16 %v27
  %v48 = vunpack.c.l.b16 %v28
  %v49 = vpack.c.b16 %v42, %v41
  %v50 = vpack.c.b16 %v44, %v43
  %v51 = vpack.c.b16 %v46, %v45
  %v52 = vpack.c.b16 %v48, %v47
  %v57 = vunpack.c.l.b16 %v29
  %v58 = vunpack.c.l.b16 %v30
  %v59 = vunpack.c.l.b16 %v31
  %v60 = vunpack.c.l.b16 %v32
  %v61 = vpack.c.b16 %v58, %v57
  %v62 = vpack.c.b16 %v60, %v59
  %vm65 = vcmask 261120
  %v67 = vsel %vm65, %v49, 0
  %v70 = vsel %vm65, %v50, 0
  %v73 = vsel %vm65, %v51, 0
  %v76 = vsel %vm65, %v52, 0
  %78 = vmatpush.bf16.msra.mxu0 0
  %79 = vmatpush.bf16.msra.mxu0 0
  %80 = vmatpush.bf16.msra.mxu0 0
  %81 = vmatpush.bf16.msra.mxu0 0
  %82 = vmatpush.bf16.msra.mxu0 0
  %83 = vmatpush.bf16.msra.mxu0 0
  %84 = vmatpush.bf16.msra.mxu0 %v62
  %85 = vmatpush.bf16.msra.mxu0 %v61
  %86 = vmatmul.bf16.gmra.mxu0 %v67
  %v87 = vpop.f32.mrf.mxu0
  %v88 = vadd.f32 0.0, %v87
  %v89 = vpop.f32.mrf.mxu0
  %v90 = vadd.f32 0.0, %v89
  %91 = vmatmul.bf16.gmra.mxu0 %v70
  %v92 = vpop.f32.mrf.mxu0
  %v93 = vadd.f32 0.0, %v92
  %v94 = vpop.f32.mrf.mxu0
  %v95 = vadd.f32 0.0, %v94
  %96 = vmatmul.bf16.gmra.mxu0 %v73
  %v97 = vpop.f32.mrf.mxu0
  %v98 = vadd.f32 0.0, %v97
  %v99 = vpop.f32.mrf.mxu0
  %v100 = vadd.f32 0.0, %v99
  %101 = vmatmul.bf16.gmra.mxu0 %v76
  %v102 = vpop.f32.mrf.mxu0
  %v103 = vadd.f32 0.0, %v102
  %v104 = vpop.f32.mrf.mxu0
  %v105 = vadd.f32 0.0, %v104
  %106 = vdwg.mxu0
  %v107 = vld [vmem:[%s2] sm:$0x1]
  %v109 = vperm.slane %v107, 0
  %v111 = vmul.f32 %v88, %v109
  %v112 = vmul.f32 %v90, %v109
  %v113 = vmul.f32 %v93, %v109
  %v114 = vmul.f32 %v95, %v109
  %v115 = vmul.f32 %v98, %v109
  %v116 = vmul.f32 %v100, %v109
  %v117 = vmul.f32 %v103, %v109
  %v118 = vmul.f32 %v105, %v109
  %v119 = vld [vmem:[%s3] sm:$0x1]
  %v121 = vperm.slane %v119, 0
  %v123 = vadd.f32 %v111, %v121
  %v124 = vadd.f32 %v112, %v121
  %v125 = vadd.f32 %v113, %v121
  %v126 = vadd.f32 %v114, %v121
  %v127 = vadd.f32 %v115, %v121
  %v128 = vadd.f32 %v116, %v121
  %v129 = vadd.f32 %v117, %v121
  %v130 = vadd.f32 %v118, %v121
  %v131 = vld [vmem:[%s4] sm:$0xf]
  %v132 = vld [vmem:[%s4 + $0x4] sm:$0xf]
  %v133 = vld [vmem:[%s4 + $0x8] sm:$0xf]
  %v134 = vld [vmem:[%s4 + $0xc] sm:$0xf]
  %v135 = vld [vmem:[%s4 + $0x10] sm:$0xf]
  %v136 = vld [vmem:[%s4 + $0x14] sm:$0xf]
  %v137 = vld [vmem:[%s4 + $0x18] sm:$0xf]
  %v138 = vld [vmem:[%s4 + $0x1c] sm:$0xf]
  %v139 = vunpack.c.l.bf16 %v131
  %v140 = vunpack.c.l.bf16 %v132
  %v141 = vunpack.c.l.bf16 %v133
  %v142 = vunpack.c.l.bf16 %v134
  %v143 = vunpack.c.l.bf16 %v135
  %v144 = vunpack.c.l.bf16 %v136
  %v145 = vunpack.c.l.bf16 %v137
  %v146 = vunpack.c.l.bf16 %v138
  %v147 = vadd.f32 %v123, %v139
  %v148 = vadd.f32 %v124, %v140
  %v149 = vadd.f32 %v125, %v141
  %v150 = vadd.f32 %v126, %v142
  %v151 = vadd.f32 %v127, %v143
  %v152 = vadd.f32 %v128, %v144
  %v153 = vadd.f32 %v129, %v145
  %v154 = vadd.f32 %v130, %v146
  %vm155 = vcmp.ge.f32.partialorder %v147, 0.0
  %vm156 = vcmp.ge.f32.partialorder %v148, 0.0
  %vm157 = vcmp.ge.f32.partialorder %v149, 0.0
  %vm158 = vcmp.ge.f32.partialorder %v150, 0.0
  %vm159 = vcmp.ge.f32.partialorder %v151, 0.0
  %vm160 = vcmp.ge.f32.partialorder %v152, 0.0
  %vm161 = vcmp.ge.f32.partialorder %v153, 0.0
  %vm162 = vcmp.ge.f32.partialorder %v154, 0.0
  %v163 = vmul.f32 %v147, 0.1
  %v164 = vmul.f32 %v148, 0.1
  %v165 = vmul.f32 %v149, 0.1
  %v166 = vmul.f32 %v150, 0.1
  %v167 = vmul.f32 %v151, 0.1
  %v168 = vmul.f32 %v152, 0.1
  %v169 = vmul.f32 %v153, 0.1
  %v170 = vmul.f32 %v154, 0.1
  %v171 = vsel %vm155, %v147, %v163
  %v172 = vsel %vm156, %v148, %v164
  %v173 = vsel %vm157, %v149, %v165
  %v174 = vsel %vm158, %v150, %v166
  %v175 = vsel %vm159, %v151, %v167
  %v176 = vsel %vm160, %v152, %v168
  %v177 = vsel %vm161, %v153, %v169
  %v178 = vsel %vm162, %v154, %v170
  %v179 = vpack.c.bf16 %v171, %v171
  %v180 = vpack.c.bf16 %v172, %v172
  %v181 = vpack.c.bf16 %v173, %v173
  %v182 = vpack.c.bf16 %v174, %v174
  %v183 = vpack.c.bf16 %v175, %v175
  %v184 = vpack.c.bf16 %v176, %v176
  %v185 = vpack.c.bf16 %v177, %v177
  %v186 = vpack.c.bf16 %v178, %v178
  %vm187 = vcmask 257024
  %188 = vst.msk [vmem:[%s5] sm:$0xf] %vm187, %v179
  %189 = vst.msk [vmem:[%s5 + $0x4] sm:$0xf] %vm187, %v180
  %190 = vst.msk [vmem:[%s5 + $0x8] sm:$0xf] %vm187, %v181
  %191 = vst.msk [vmem:[%s5 + $0xc] sm:$0xf] %vm187, %v182
  %192 = vst.msk [vmem:[%s5 + $0x10] sm:$0xf] %vm187, %v183
  %193 = vst.msk [vmem:[%s5 + $0x14] sm:$0xf] %vm187, %v184
  %194 = vst.msk [vmem:[%s5 + $0x18] sm:$0xf] %vm187, %v185
  %195 = vst.msk [vmem:[%s5 + $0x1c] sm:$0xf] %vm187, %v186
  // Predicated region
  $region22: #{sttformer_forward.23} parent=0 // pred_check
    _
  $region23: #{sttformer_forward.23} parent=0 // pred_check_branch
    %197 = sbr.rel (0) target = $region25
  $region24: #{sttformer_forward.23} parent=0 // pred_region
    _
  $region25: #{sttformer_forward.23} parent=0 // pred_fallthru
    _
  // Predicated region
  $region26: #{sttformer_forward.23} parent=0 // pred_check
    _
  $region27: #{sttformer_forward.23} parent=0 // pred_check_branch
    %199 = sbr.rel (0) target = $region29
  $region28: #{sttformer_forward.23} parent=0 // pred_region
    _
  $region29: #{sttformer_forward.23} parent=0 // pred_fallthru
    _

// kernel: sttformer_forward.24
$region0: #{sttformer_forward.24}
  #allocation0 [shape = 'u32[]', space=smem, size = 0x4, offset = 0x4, fixed_abs, tag = 'smem constant byte address 0x4 - core index']
  #allocation1 [shape = 'u32[72,128]{1,0:T(1,128)}', space=vmem, size = 0x9000, scoped, tag = 'internal scratch']
  %s0 = inlined_call_operand.vmem [shape: bf16[64,32], index: 0, kind: input, shape index: {}]
  %s1 = inlined_call_operand.vmem [shape: bf16[32,32], index: 1, kind: input, shape index: {}]
  %s2 = inlined_call_operand.vmem [shape: f32[1,32], index: 2, kind: input, shape index: {}]
  %s3 = inlined_call_operand.vmem [shape: f32[1,32], index: 3, kind: input, shape index: {}]
  %s4 = inlined_call_operand.vmem [shape: bf16[64,32], index: 4, kind: output, shape index: {}]
  %s5 = sld [smem:[#allocation0]]
  $region26: #{sttformer_forward.24} parent=0
    _
  %s7 = ssub.s32 1, %s5
  %s8 = scalar_select 0, %s7, %s5
  // Predicated region
  $region2: #{sttformer_forward.24} parent=0 // pred_check
    _
  $region3: #{sttformer_forward.24} parent=0 // pred_check_branch
    %10 = sbr.rel (0) target = $region5
  $region4: #{sttformer_forward.24} parent=0 // pred_region
    _
  $region5: #{sttformer_forward.24} parent=0 // pred_fallthru
    _
  // Predicated region
  $region6: #{sttformer_forward.24} parent=0 // pred_check
    _
  $region7: #{sttformer_forward.24} parent=0 // pred_check_branch
    %12 = sbr.rel (0) target = $region9
  $region8: #{sttformer_forward.24} parent=0 // pred_region
    _
  $region9: #{sttformer_forward.24} parent=0 // pred_fallthru
    _
  // Predicated region
  $region10: #{sttformer_forward.24} parent=0 // pred_check
    _
  $region11: #{sttformer_forward.24} parent=0 // pred_check_branch
    %14 = sbr.rel (0) target = $region13
  $region12: #{sttformer_forward.24} parent=0 // pred_region
    _
  $region13: #{sttformer_forward.24} parent=0 // pred_fallthru
    _
  // Predicated region
  $region14: #{sttformer_forward.24} parent=0 // pred_check
    _
  $region15: #{sttformer_forward.24} parent=0 // pred_check_branch
    %16 = sbr.rel (0) target = $region17
  $region16: #{sttformer_forward.24} parent=0 // pred_region
    _
  $region17: #{sttformer_forward.24} parent=0 // pred_fallthru
    _
  %v18 = vld [vmem:[%s0] sm:$0xf]
  %v19 = vld [vmem:[%s0 + $0x4] sm:$0xf]
  %v20 = vld [vmem:[%s0 + $0x8] sm:$0xf]
  %v21 = vld [vmem:[%s0 + $0xc] sm:$0xf]
  %v22 = vld [vmem:[%s0 + $0x10] sm:$0xf]
  %v23 = vld [vmem:[%s0 + $0x14] sm:$0xf]
  %v24 = vld [vmem:[%s0 + $0x18] sm:$0xf]
  %v25 = vld [vmem:[%s0 + $0x1c] sm:$0xf]
  %v26 = vld [vmem:[%s1] sm:$0xf]
  %v27 = vld [vmem:[%s1 + $0x4] sm:$0xf]
  %v28 = vld [vmem:[%s1 + $0x8] sm:$0xf]
  %v29 = vld [vmem:[%s1 + $0xc] sm:$0xf]
  %v38 = vunpack.c.l.b16 %v18
  %v39 = vunpack.c.l.b16 %v19
  %v40 = vunpack.c.l.b16 %v20
  %v41 = vunpack.c.l.b16 %v21
  %v42 = vunpack.c.l.b16 %v22
  %v43 = vunpack.c.l.b16 %v23
  %v44 = vunpack.c.l.b16 %v24
  %v45 = vunpack.c.l.b16 %v25
  %v46 = vpack.c.b16 %v39, %v38
  %v47 = vpack.c.b16 %v41, %v40
  %v48 = vpack.c.b16 %v43, %v42
  %v49 = vpack.c.b16 %v45, %v44
  %v54 = vunpack.c.l.b16 %v26
  %v55 = vunpack.c.l.b16 %v27
  %v56 = vunpack.c.l.b16 %v28
  %v57 = vunpack.c.l.b16 %v29
  %v58 = vpack.c.b16 %v55, %v54
  %v59 = vpack.c.b16 %v57, %v56
  %vm62 = vcmask 261120
  %v64 = vsel %vm62, %v46, 0
  %v67 = vsel %vm62, %v47, 0
  %v70 = vsel %vm62, %v48, 0
  %v73 = vsel %vm62, %v49, 0
  %75 = vmatpush.bf16.msra.mxu0 0
  %76 = vmatpush.bf16.msra.mxu0 0
  %77 = vmatpush.bf16.msra.mxu0 0
  %78 = vmatpush.bf16.msra.mxu0 0
  %79 = vmatpush.bf16.msra.mxu0 0
  %80 = vmatpush.bf16.msra.mxu0 0
  %81 = vmatpush.bf16.msra.mxu0 %v59
  %82 = vmatpush.bf16.msra.mxu0 %v58
  %83 = vmatmul.bf16.gmra.mxu0 %v64
  %v84 = vpop.f32.mrf.mxu0
  %v85 = vadd.f32 0.0, %v84
  %v86 = vpop.f32.mrf.mxu0
  %v87 = vadd.f32 0.0, %v86
  %88 = vmatmul.bf16.gmra.mxu0 %v67
  %v89 = vpop.f32.mrf.mxu0
  %v90 = vadd.f32 0.0, %v89
  %v91 = vpop.f32.mrf.mxu0
  %v92 = vadd.f32 0.0, %v91
  %93 = vmatmul.bf16.gmra.mxu0 %v70
  %v94 = vpop.f32.mrf.mxu0
  %v95 = vadd.f32 0.0, %v94
  %v96 = vpop.f32.mrf.mxu0
  %v97 = vadd.f32 0.0, %v96
  %98 = vmatmul.bf16.gmra.mxu0 %v73
  %v99 = vpop.f32.mrf.mxu0
  %v100 = vadd.f32 0.0, %v99
  %v101 = vpop.f32.mrf.mxu0
  %v102 = vadd.f32 0.0, %v101
  %103 = vdwg.mxu0
  %v104 = vld [vmem:[%s2] sm:$0x1]
  %v106 = vperm.slane %v104, 0
  %v108 = vmul.f32 %v85, %v106
  %v109 = vmul.f32 %v87, %v106
  %v110 = vmul.f32 %v90, %v106
  %v111 = vmul.f32 %v92, %v106
  %v112 = vmul.f32 %v95, %v106
  %v113 = vmul.f32 %v97, %v106
  %v114 = vmul.f32 %v100, %v106
  %v115 = vmul.f32 %v102, %v106
  %v116 = vld [vmem:[%s3] sm:$0x1]
  %v118 = vperm.slane %v116, 0
  %v120 = vadd.f32 %v108, %v118
  %v121 = vadd.f32 %v109, %v118
  %v122 = vadd.f32 %v110, %v118
  %v123 = vadd.f32 %v111, %v118
  %v124 = vadd.f32 %v112, %v118
  %v125 = vadd.f32 %v113, %v118
  %v126 = vadd.f32 %v114, %v118
  %v127 = vadd.f32 %v115, %v118
  %v128 = vpack.c.bf16 %v120, %v120
  %v129 = vpack.c.bf16 %v121, %v121
  %v130 = vpack.c.bf16 %v122, %v122
  %v131 = vpack.c.bf16 %v123, %v123
  %v132 = vpack.c.bf16 %v124, %v124
  %v133 = vpack.c.bf16 %v125, %v125
  %v134 = vpack.c.bf16 %v126, %v126
  %v135 = vpack.c.bf16 %v127, %v127
  %vm136 = vcmask 257024
  %137 = vst.msk [vmem:[%s4] sm:$0xf] %vm136, %v128
  %138 = vst.msk [vmem:[%s4 + $0x4] sm:$0xf] %vm136, %v129
  %139 = vst.msk [vmem:[%s4 + $0x8] sm:$0xf] %vm136, %v130
  %140 = vst.msk [vmem:[%s4 + $0xc] sm:$0xf] %vm136, %v131
  %141 = vst.msk [vmem:[%s4 + $0x10] sm:$0xf] %vm136, %v132
  %142 = vst.msk [vmem:[%s4 + $0x14] sm:$0xf] %vm136, %v133
  %143 = vst.msk [vmem:[%s4 + $0x18] sm:$0xf] %vm136, %v134
  %144 = vst.msk [vmem:[%s4 + $0x1c] sm:$0xf] %vm136, %v135
  // Predicated region
  $region18: #{sttformer_forward.24} parent=0 // pred_check
    _
  $region19: #{sttformer_forward.24} parent=0 // pred_check_branch
    %146 = sbr.rel (0) target = $region21
  $region20: #{sttformer_forward.24} parent=0 // pred_region
    _
  $region21: #{sttformer_forward.24} parent=0 // pred_fallthru
    _
  // Predicated region
  $region22: #{sttformer_forward.24} parent=0 // pred_check
    _
  $region23: #{sttformer_forward.24} parent=0 // pred_check_branch
    %148 = sbr.rel (0) target = $region25
  $region24: #{sttformer_forward.24} parent=0 // pred_region
    _
  $region25: #{sttformer_forward.24} parent=0 // pred_fallthru
    _

// kernel: sttformer_forward.25
$region0: #{sttformer_forward.25}
  #allocation0 [shape = 'u32[]', space=smem, size = 0x4, offset = 0x4, fixed_abs, tag = 'smem constant byte address 0x4 - core index']
  #allocation1 [shape = 'u32[72,128]{1,0:T(1,128)}', space=vmem, size = 0x9000, scoped, tag = 'internal scratch']
  %s0 = inlined_call_operand.vmem [shape: bf16[2,48,32], index: 0, kind: input, shape index: {}]
  %s1 = inlined_call_operand.vmem [shape: bf16[3,32,32], index: 1, kind: input, shape index: {}]
  %s2 = inlined_call_operand.vmem [shape: f32[1,32], index: 2, kind: input, shape index: {}]
  %s3 = inlined_call_operand.vmem [shape: f32[1,32], index: 3, kind: input, shape index: {}]
  %s4 = inlined_call_operand.vmem [shape: bf16[2,32,32], index: 4, kind: input, shape index: {}]
  %s5 = inlined_call_operand.vmem [shape: bf16[2,32,32], index: 5, kind: output, shape index: {}]
  %s6 = sld [smem:[#allocation0]]
  $region53: #{sttformer_forward.25} parent=0
    _
  %s8 = ssub.s32 1, %s6
  %s9 = scalar_select 0, %s8, %s6
  loop: start=0, step=1, limit=4
  $region2: #{sttformer_forward.25} parent=0 // loop_pre_header
    _
  $region3: #{sttformer_forward.25} parent=0 // loop_header
    %s11 = sphi 0, %s15
    %p12 = scmp.ge.s32.totalorder %s11, 4
    %s21 = sphi 0, %s23
    %s24 = sphi 0, %s21
    %s25 = sphi 0, %s24
    %s41 = sphi 0, %s25
    %s45 = sphi 0, %s45
    %s47 = sphi 0, %s45
    %s48 = sphi 0, %s47
    %s62 = sphi 0, %s48
    %s66 = sphi 0, %s66
    %s68 = sphi 0, %s66
    %s69 = sphi 0, %s68
    %s83 = sphi 0, %s69
    %s87 = sphi 0, %s87
    %s89 = sphi 0, %s87
    %s90 = sphi 0, %s89
    %s104 = sphi 0, %s90
    %s110 = sphi 0, %s112
    %s113 = sphi 0, %s110
    %s114 = sphi 0, %s113
    %s130 = sphi 0, %s114
    %s136 = sphi 0, %s138
    %s139 = sphi 0, %s136
    %s140 = sphi 0, %s139
    %s156 = sphi 0, %s140
  $region4: #{sttformer_forward.25} parent=0 // loop_header_branch
    %14 = sbr.rel (%p12) target = $region8
  $region5: #{sttformer_forward.25} parent=0 // loop_body
    %s16 = ssub.s32 %s11, 1
    %s17 = ssub.s32 %s11, 2
    %s18 = sadd.s32 %s11, 1
    %s19 = ssub.s32 %s11, %s18
    %p20 = scmp.eq.s32.totalorder %s19, 0
    %s22 = sadd.s32 %s21, 1
    %s23 = scalar_select %p20, %s21, %s22
    %p26 = pneg %p20
    %p27 = scmp.eq.s32.totalorder %s11, 1
    %p28 = por %p26, %p27
    %p29 = scmp.ne.s32.totalorder %s21, %s24
    %p30 = scmp.eq.s32.totalorder %s11, 0
    %p31 = por %p29, %p30
    %p32 = scmp.ne.s32.totalorder %s21, %s24
    %p33 = scmp.eq.s32.totalorder %s16, 1
    %p34 = por %p32, %p33
    %p35 = scmp.ne.s32.totalorder %s24, %s25
    %p36 = scmp.eq.s32.totalorder %s16, 0
    %p37 = por %p35, %p36
    %p38 = scmp.ne.s32.totalorder %s24, %s25
    %p39 = scmp.eq.s32.totalorder %s17, 1
    %p40 = por %p38, %p39
    %p42 = scmp.ne.s32.totalorder %s25, %s41
    %p43 = scmp.eq.s32.totalorder %s17, 0
    %p44 = por %p42, %p43
    %s46 = sadd.s32 %s45, 1
    %p49 = scmp.eq.s32.totalorder %s11, 1
    %p50 = scmp.ne.s32.totalorder %s45, %s47
    %p51 = scmp.eq.s32.totalorder %s11, 0
    %p52 = por %p50, %p51
    %p53 = scmp.ne.s32.totalorder %s45, %s47
    %p54 = scmp.eq.s32.totalorder %s16, 1
    %p55 = por %p53, %p54
    %p56 = scmp.ne.s32.totalorder %s47, %s48
    %p57 = scmp.eq.s32.totalorder %s16, 0
    %p58 = por %p56, %p57
    %p59 = scmp.ne.s32.totalorder %s47, %s48
    %p60 = scmp.eq.s32.totalorder %s17, 1
    %p61 = por %p59, %p60
    %p63 = scmp.ne.s32.totalorder %s48, %s62
    %p64 = scmp.eq.s32.totalorder %s17, 0
    %p65 = por %p63, %p64
    %s67 = sadd.s32 %s66, 1
    %p70 = scmp.eq.s32.totalorder %s11, 1
    %p71 = scmp.ne.s32.totalorder %s66, %s68
    %p72 = scmp.eq.s32.totalorder %s11, 0
    %p73 = por %p71, %p72
    %p74 = scmp.ne.s32.totalorder %s66, %s68
    %p75 = scmp.eq.s32.totalorder %s16, 1
    %p76 = por %p74, %p75
    %p77 = scmp.ne.s32.totalorder %s68, %s69
    %p78 = scmp.eq.s32.totalorder %s16, 0
    %p79 = por %p77, %p78
    %p80 = scmp.ne.s32.totalorder %s68, %s69
    %p81 = scmp.eq.s32.totalorder %s17, 1
    %p82 = por %p80, %p81
    %p84 = scmp.ne.s32.totalorder %s69, %s83
    %p85 = scmp.eq.s32.totalorder %s17, 0
    %p86 = por %p84, %p85
    %s88 = sadd.s32 %s87, 1
    %p91 = scmp.eq.s32.totalorder %s11, 1
    %p92 = scmp.ne.s32.totalorder %s87, %s89
    %p93 = scmp.eq.s32.totalorder %s11, 0
    %p94 = por %p92, %p93
    %p95 = scmp.ne.s32.totalorder %s87, %s89
    %p96 = scmp.eq.s32.totalorder %s16, 1
    %p97 = por %p95, %p96
    %p98 = scmp.ne.s32.totalorder %s89, %s90
    %p99 = scmp.eq.s32.totalorder %s16, 0
    %p100 = por %p98, %p99
    %p101 = scmp.ne.s32.totalorder %s89, %s90
    %p102 = scmp.eq.s32.totalorder %s17, 1
    %p103 = por %p101, %p102
    %p105 = scmp.ne.s32.totalorder %s90, %s104
    %p106 = scmp.eq.s32.totalorder %s17, 0
    %p107 = por %p105, %p106
    %s108 = ssub.s32 %s11, %s18
    %p109 = scmp.eq.s32.totalorder %s108, 0
    %s111 = sadd.s32 %s110, 1
    %s112 = scalar_select %p109, %s110, %s111
    %p115 = pneg %p109
    %p116 = scmp.eq.s32.totalorder %s11, 1
    %p117 = por %p115, %p116
    %p118 = scmp.ne.s32.totalorder %s110, %s113
    %p119 = scmp.eq.s32.totalorder %s11, 0
    %p120 = por %p118, %p119
    %p121 = scmp.ne.s32.totalorder %s110, %s113
    %p122 = scmp.eq.s32.totalorder %s16, 1
    %p123 = por %p121, %p122
    %p124 = scmp.ne.s32.totalorder %s113, %s114
    %p125 = scmp.eq.s32.totalorder %s16, 0
    %p126 = por %p124, %p125
    %p127 = scmp.ne.s32.totalorder %s113, %s114
    %p128 = scmp.eq.s32.totalorder %s17, 1
    %p129 = por %p127, %p128
    %p131 = scmp.ne.s32.totalorder %s114, %s130
    %p132 = scmp.eq.s32.totalorder %s17, 0
    %p133 = por %p131, %p132
    %s134 = ssub.s32 %s11, %s18
    %p135 = scmp.eq.s32.totalorder %s134, 0
    %s137 = sadd.s32 %s136, 1
    %s138 = scalar_select %p135, %s136, %s137
    %p141 = pneg %p135
    %p142 = scmp.eq.s32.totalorder %s11, 1
    %p143 = por %p141, %p142
    %p144 = scmp.ne.s32.totalorder %s136, %s139
    %p145 = scmp.eq.s32.totalorder %s11, 0
    %p146 = por %p144, %p145
    %p147 = scmp.ne.s32.totalorder %s136, %s139
    %p148 = scmp.eq.s32.totalorder %s16, 1
    %p149 = por %p147, %p148
    %p150 = scmp.ne.s32.totalorder %s139, %s140
    %p151 = scmp.eq.s32.totalorder %s16, 0
    %p152 = por %p150, %p151
    %p153 = scmp.ne.s32.totalorder %s139, %s140
    %p154 = scmp.eq.s32.totalorder %s17, 1
    %p155 = por %p153, %p154
    %p157 = scmp.ne.s32.totalorder %s140, %s156
    %p158 = scmp.eq.s32.totalorder %s17, 0
    %p159 = por %p157, %p158
    %p160 = scmp.le.s32.totalorder 1, %s11
    %p161 = scmp.lt.s32.totalorder %s11, 3
    %p162 = pnand %p160, %p161
    %p163 = pneg %p162
    // Predicated region
    $region9: #{sttformer_forward.25} parent=5 // pred_check
      _
    $region10: #{sttformer_forward.25} parent=5 // pred_check_branch
      %165 = sbr.rel (%p162) target = $region12
    $region11: #{sttformer_forward.25} parent=5 // pred_region
      %s166 = ssub.s32 %s11, 1
      // Predicated region
      $region13: #{sttformer_forward.25} parent=11 // pred_check
        %p167 = pneg %p58
      $region14: #{sttformer_forward.25} parent=11 // pred_check_branch
        %169 = sbr.rel (%p167) target = $region16
      $region15: #{sttformer_forward.25} parent=11 // pred_region
        _
      $region16: #{sttformer_forward.25} parent=11 // pred_fallthru
        _
      // Predicated region
      $region17: #{sttformer_forward.25} parent=11 // pred_check
        %p170 = pneg %p79
      $region18: #{sttformer_forward.25} parent=11 // pred_check_branch
        %172 = sbr.rel (%p170) target = $region20
      $region19: #{sttformer_forward.25} parent=11 // pred_region
        _
      $region20: #{sttformer_forward.25} parent=11 // pred_fallthru
        _
      // Predicated region
      $region21: #{sttformer_forward.25} parent=11 // pred_check
        %p173 = pneg %p100
      $region22: #{sttformer_forward.25} parent=11 // pred_check_branch
        %175 = sbr.rel (%p173) target = $region24
      $region23: #{sttformer_forward.25} parent=11 // pred_region
        _
      $region24: #{sttformer_forward.25} parent=11 // pred_fallthru
        _
    $region12: #{sttformer_forward.25} parent=5 // pred_fallthru
      _
    %p176 = scmp.lt.s32.totalorder %s11, 2
    // Predicated region
    $region25: #{sttformer_forward.25} parent=5 // pred_check
      %p177 = pneg %p176
    $region26: #{sttformer_forward.25} parent=5 // pred_check_branch
      %179 = sbr.rel (%p177) target = $region28
    $region27: #{sttformer_forward.25} parent=5 // pred_region
      // Predicated region
      $region29: #{sttformer_forward.25} parent=27 // pred_check
        %p180 = pneg %p31
      $region30: #{sttformer_forward.25} parent=27 // pred_check_branch
        %182 = sbr.rel (%p180) target = $region32
      $region31: #{sttformer_forward.25} parent=27 // pred_region
        %p183 = scmp.lt.s32.totalorder %s11, 1
        %s184 = scalar_select %p183, %s11, 1
        %s185 = smul.addr %s184, 6
        %s186 = smul.addr %s185, 4
        %s187 = scalar_lea.vmem %s0, %s186
      $region32: #{sttformer_forward.25} parent=27 // pred_fallthru
        _
      // Predicated region
      $region33: #{sttformer_forward.25} parent=27 // pred_check
        %p188 = pneg %p120
      $region34: #{sttformer_forward.25} parent=27 // pred_check_branch
        %190 = sbr.rel (%p188) target = $region36
      $region35: #{sttformer_forward.25} parent=27 // pred_region
        %p191 = scmp.lt.s32.totalorder %s11, 1
        %s192 = scalar_select %p191, %s11, 1
        %s193 = smul.addr %s192, 4
        %s194 = smul.addr %s193, 4
        %s195 = scalar_lea.vmem %s4, %s194
      $region36: #{sttformer_forward.25} parent=27 // pred_fallthru
        _
    $region28: #{sttformer_forward.25} parent=5 // pred_fallthru
      _
    %p196 = scmp.le.s32.totalorder 1, %s11
    %p197 = scmp.lt.s32.totalorder %s11, 3
    %p198 = pnand %p196, %p197
    %p199 = pneg %p198
    // Predicated region
    $region37: #{sttformer_forward.25} parent=5 // pred_check
      _
    $region38: #{sttformer_forward.25} parent=5 // pred_check_branch
      %201 = sbr.rel (%p198) target = $region40
    $region39: #{sttformer_forward.25} parent=5 // pred_region
      %s202 = ssub.s32 %s11, 1
      %p203 = scmp.lt.s32.totalorder %s16, 1
      %s204 = scalar_select %p203, %s16, 1
      %s205 = smul.addr %s204, 6
      %s206 = smul.addr %s205, 4
      %s207 = scalar_lea.vmem %s0, %s206
      %p208 = pneg %p37
      %p209 = pneg %p34
      %p210 = pneg %p58
      %p211 = pneg %p55
      %p212 = pneg %p79
      %p213 = pneg %p76
      %p214 = pneg %p100
      %p215 = pneg %p97
      %p216 = scmp.lt.s32.totalorder %s16, 1
      %s217 = scalar_select %p216, %s16, 1
      %s218 = smul.addr %s217, 4
      %s219 = smul.addr %s218, 4
      %s220 = scalar_lea.vmem %s4, %s219
      %p221 = pneg %p126
      %p222 = pneg %p123
      %p223 = pneg %p152
      %p224 = pneg %p149
      %p225 = scmp.lt.s32.totalorder %s16, 1
      %s226 = scalar_select %p225, %s16, 1
      %s227 = smul.addr %s226, 4
      %s228 = smul.addr %s227, 4
      %s229 = scalar_lea.vmem %s5, %s228
      %p230 = scmp.lt.s32.totalorder %s16, 1
      %s231 = scalar_select %p230, %s16, 1
      %s232 = smul.addr %s231, 6
      %s233 = smul.addr %s232, 4
      %s234 = scalar_lea.vmem %s0, %s233
      %p235 = scmp.lt.s32.totalorder %s16, 1
      %s236 = scalar_select %p235, %s16, 1
      %s237 = smul.addr %s236, 4
      %s238 = smul.addr %s237, 4
      %s239 = scalar_lea.vmem %s4, %s238
      %p240 = scmp.lt.s32.totalorder %s16, 1
      %s241 = scalar_select %p240, %s16, 1
      %s242 = smul.addr %s241, 4
      %s243 = smul.addr %s242, 4
      %s244 = scalar_lea.vmem %s5, %s243
      %v246 = vld [vmem:[%s234] sm:$0xf]
      %v247 = vld [vmem:[%s234 + $0x4] sm:$0xf]
      %v248 = vld [vmem:[%s234 + $0x8] sm:$0xf]
      %v249 = vld [vmem:[%s234 + $0xc] sm:$0xf]
      %v250 = vld [vmem:[%s1] sm:$0xf]
      %v251 = vld [vmem:[%s1 + $0x4] sm:$0xf]
      %v252 = vld [vmem:[%s1 + $0x8] sm:$0xf]
      %v253 = vld [vmem:[%s1 + $0xc] sm:$0xf]
      %v254 = vld [vmem:[%s234 + $0x10] sm:$0xf]
      %s255 = scalar_lea.vmem %s1, 16
      %v256 = vld [vmem:[%s255] sm:$0xf]
      %v257 = vld [vmem:[%s255 + $0x4] sm:$0xf]
      %v258 = vld [vmem:[%s255 + $0x8] sm:$0xf]
      %v259 = vld [vmem:[%s255 + $0xc] sm:$0xf]
      %v264 = vunpack.c.l.b16 %v247
      %v265 = vunpack.c.l.b16 %v248
      %v266 = vunpack.c.l.b16 %v249
      %v267 = vunpack.c.l.b16 %v254
      %v268 = vpack.c.b16 %v265, %v264
      %v269 = vpack.c.b16 %v267, %v266
      %v274 = vunpack.c.l.b16 %v256
      %v275 = vunpack.c.l.b16 %v257
      %v276 = vunpack.c.l.b16 %v258
      %v277 = vunpack.c.l.b16 %v259
      %v278 = vpack.c.b16 %v275, %v274
      %v279 = vpack.c.b16 %v277, %v276
      %vm282 = vcmask 261120
      %v284 = vsel %vm282, %v268, 0
      %v287 = vsel %vm282, %v269, 0
      %289 = vmatpush.bf16.msra.mxu0 0
      %290 = vmatpush.bf16.msra.mxu0 0
      %291 = vmatpush.bf16.msra.mxu0 0
      %292 = vmatpush.bf16.msra.mxu0 0
      %293 = vmatpush.bf16.msra.mxu0 0
      %294 = vmatpush.bf16.msra.mxu0 0
      %295 = vmatpush.bf16.msra.mxu0 %v279
      %296 = vmatpush.bf16.msra.mxu0 %v278
      %297 = vmatmul.bf16.gmra.mxu0 %v284
      %v298 = vpop.f32.mrf.mxu0
      %v299 = vadd.f32 0.0, %v298
      %v300 = vpop.f32.mrf.mxu0
      %v301 = vadd.f32 0.0, %v300
      %302 = vmatmul.bf16.gmra.mxu0 %v287
      %v303 = vpop.f32.mrf.mxu0
      %v304 = vadd.f32 0.0, %v303
      %v305 = vpop.f32.mrf.mxu0
      %v306 = vadd.f32 0.0, %v305
      %307 = vdwg.mxu0
      %v309 = vunpack.c.l.b16 %v246
      %v310 = vpack.c.b16 %v264, %v309
      %v311 = vpack.c.b16 %v266, %v265
      %v316 = vunpack.c.l.b16 %v250
      %v317 = vunpack.c.l.b16 %v251
      %v318 = vunpack.c.l.b16 %v252
      %v319 = vunpack.c.l.b16 %v253
      %v320 = vpack.c.b16 %v317, %v316
      %v321 = vpack.c.b16 %v319, %v318
      %v325 = vsel %vm282, %v310, 0
      %v328 = vsel %vm282, %v311, 0
      %330 = vmatpush.bf16.msra.mxu0 0
      %331 = vmatpush.bf16.msra.mxu0 0
      %332 = vmatpush.bf16.msra.mxu0 0
      %333 = vmatpush.bf16.msra.mxu0 0
      %334 = vmatpush.bf16.msra.mxu0 0
      %335 = vmatpush.bf16.msra.mxu0 0
      %336 = vmatpush.bf16.msra.mxu0 %v321
      %337 = vmatpush.bf16.msra.mxu0 %v320
      %338 = vmatmul.bf16.gmra.mxu0 %v325
      %v339 = vpop.f32.mrf.mxu0
      %v340 = vadd.f32 %v299, %v339
      %v341 = vpop.f32.mrf.mxu0
      %v342 = vadd.f32 %v301, %v341
      %343 = vmatmul.bf16.gmra.mxu0 %v328
      %v344 = vpop.f32.mrf.mxu0
      %v345 = vadd.f32 %v304, %v344
      %v346 = vpop.f32.mrf.mxu0
      %v347 = vadd.f32 %v306, %v346
      %348 = vdwg.mxu0
      %v349 = vld [vmem:[%s234 + $0x8] sm:$0xf]
      %v350 = vld [vmem:[%s234 + $0xc] sm:$0xf]
      %v351 = vld [vmem:[%s234 + $0x10] sm:$0xf]
      %v352 = vld [vmem:[%s234 + $0x14] sm:$0xf]
      %s353 = scalar_lea.vmem %s1, 32
      %v354 = vld [vmem:[%s353] sm:$0xf]
      %v355 = vld [vmem:[%s353 + $0x4] sm:$0xf]
      %v356 = vld [vmem:[%s353 + $0x8] sm:$0xf]
      %v357 = vld [vmem:[%s353 + $0xc] sm:$0xf]
      %v362 = vunpack.c.l.b16 %v349
      %v363 = vunpack.c.l.b16 %v350
      %v364 = vunpack.c.l.b16 %v351
      %v365 = vunpack.c.l.b16 %v352
      %v366 = vpack.c.b16 %v363, %v362
      %v367 = vpack.c.b16 %v365, %v364
      %v372 = vunpack.c.l.b16 %v354
      %v373 = vunpack.c.l.b16 %v355
      %v374 = vunpack.c.l.b16 %v356
      %v375 = vunpack.c.l.b16 %v357
      %v376 = vpack.c.b16 %v373, %v372
      %v377 = vpack.c.b16 %v375, %v374
      %v381 = vsel %vm282, %v366, 0
      %v384 = vsel %vm282, %v367, 0
      %386 = vmatpush.bf16.msra.mxu0 0
      %387 = vmatpush.bf16.msra.mxu0 0
      %388 = vmatpush.bf16.msra.mxu0 0
      %389 = vmatpush.bf16.msra.mxu0 0
      %390 = vmatpush.bf16.msra.mxu0 0
      %391 = vmatpush.bf16.msra.mxu0 0
      %392 = vmatpush.bf16.msra.mxu0 %v377
      %393 = vmatpush.bf16.msra.mxu0 %v376
      %394 = vmatmul.bf16.gmra.mxu0 %v381
      %v395 = vpop.f32.mrf.mxu0
      %v396 = vadd.f32 0.0, %v395
      %v397 = vpop.f32.mrf.mxu0
      %v398 = vadd.f32 0.0, %v397
      %399 = vmatmul.bf16.gmra.mxu0 %v384
      %v400 = vpop.f32.mrf.mxu0
      %v401 = vadd.f32 0.0, %v400
      %v402 = vpop.f32.mrf.mxu0
      %v403 = vadd.f32 0.0, %v402
      %404 = vdwg.mxu0
      %v405 = vadd.f32 %v340, %v396
      %v406 = vadd.f32 %v342, %v398
      %v407 = vadd.f32 %v345, %v401
      %v408 = vadd.f32 %v347, %v403
      %v409 = vld [vmem:[%s2] sm:$0x1]
      %v411 = vperm.slane %v409, 0
      %v413 = vmul.f32 %v405, %v411
      %v414 = vmul.f32 %v406, %v411
      %v415 = vmul.f32 %v407, %v411
      %v416 = vmul.f32 %v408, %v411
      %v417 = vld [vmem:[%s3] sm:$0x1]
      %v419 = vperm.slane %v417, 0
      %v421 = vadd.f32 %v413, %v419
      %v422 = vadd.f32 %v414, %v419
      %v423 = vadd.f32 %v415, %v419
      %v424 = vadd.f32 %v416, %v419
      %v425 = vld [vmem:[%s239] sm:$0xf]
      %v426 = vld [vmem:[%s239 + $0x4] sm:$0xf]
      %v427 = vld [vmem:[%s239 + $0x8] sm:$0xf]
      %v428 = vld [vmem:[%s239 + $0xc] sm:$0xf]
      %v429 = vunpack.c.l.bf16 %v425
      %v430 = vunpack.c.l.bf16 %v426
      %v431 = vunpack.c.l.bf16 %v427
      %v432 = vunpack.c.l.bf16 %v428
      %v433 = vadd.f32 %v421, %v429
      %v434 = vadd.f32 %v422, %v430
      %v435 = vadd.f32 %v423, %v431
      %v436 = vadd.f32 %v424, %v432
      %vm437 = vcmp.ge.f32.partialorder %v433, 0.0
      %vm438 = vcmp.ge.f32.partialorder %v434, 0.0
      %vm439 = vcmp.ge.f32.partialorder %v435, 0.0
      %vm440 = vcmp.ge.f32.partialorder %v436, 0.0
      %v441 = vmul.f32 %v433, 0.1
      %v442 = vmul.f32 %v434, 0.1
      %v443 = vmul.f32 %v435, 0.1
      %v444 = vmul.f32 %v436, 0.1
      %v445 = vsel %vm437, %v433, %v441
      %v446 = vsel %vm438, %v434, %v442
      %v447 = vsel %vm439, %v435, %v443
      %v448 = vsel %vm440, %v436, %v444
      %v449 = vpack.c.bf16 %v445, %v445
      %v450 = vpack.c.bf16 %v446, %v446
      %v451 = vpack.c.bf16 %v447, %v447
      %v452 = vpack.c.bf16 %v448, %v448
      %vm453 = vcmask 257024
      %454 = vst.msk [vmem:[%s244] sm:$0xf] %vm453, %v449
      %455 = vst.msk [vmem:[%s244 + $0x4] sm:$0xf] %vm453, %v450
      %456 = vst.msk [vmem:[%s244 + $0x8] sm:$0xf] %vm453, %v451
      %457 = vst.msk [vmem:[%s244 + $0xc] sm:$0xf] %vm453, %v452
      %p458 = scmp.lt.s32.totalorder %s16, 1
      %s459 = scalar_select %p458, %s16, 1
      %s460 = smul.addr %s459, 4
      %s461 = smul.addr %s460, 4
      %s462 = scalar_lea.vmem %s5, %s461
      // Predicated region
      $region41: #{sttformer_forward.25} parent=39 // pred_check
        %p463 = pneg %p149
      $region42: #{sttformer_forward.25} parent=39 // pred_check_branch
        %465 = sbr.rel (%p463) target = $region44
      $region43: #{sttformer_forward.25} parent=39 // pred_region
        _
      $region44: #{sttformer_forward.25} parent=39 // pred_fallthru
        _
    $region40: #{sttformer_forward.25} parent=5 // pred_fallthru
      _
    %p466 = scmp.le.s32.totalorder 2, %s11
    // Predicated region
    $region45: #{sttformer_forward.25} parent=5 // pred_check
      %p467 = pneg %p466
    $region46: #{sttformer_forward.25} parent=5 // pred_check_branch
      %469 = sbr.rel (%p467) target = $region48
    $region47: #{sttformer_forward.25} parent=5 // pred_region
      %s470 = ssub.s32 %s11, 2
      // Predicated region
      $region49: #{sttformer_forward.25} parent=47 // pred_check
        %p471 = pneg %p155
      $region50: #{sttformer_forward.25} parent=47 // pred_check_branch
        %473 = sbr.rel (%p471) target = $region52
      $region51: #{sttformer_forward.25} parent=47 // pred_region
        %p474 = scmp.lt.s32.totalorder %s17, 1
        %s475 = scalar_select %p474, %s17, 1
        %s476 = smul.addr %s475, 4
        %s477 = smul.addr %s476, 4
        %s478 = scalar_lea.vmem %s5, %s477
      $region52: #{sttformer_forward.25} parent=47 // pred_fallthru
        _
    $region48: #{sttformer_forward.25} parent=5 // pred_fallthru
      _
  $region6: #{sttformer_forward.25} parent=0 // loop_footer
    %s15 = sadd.s32 1, %s11
  $region7: #{sttformer_forward.25} parent=0 // loop_footer_branch
    %10 = sbr.rel target = $region3
  $region8: #{sttformer_forward.25} parent=0 // loop_exit
    _

</llo_original>
